<compile_context>
chip_gen: v5e
topology: v5e:2x2
jax: 0.10.0
libtpu: 0.0.40
codegen_flags: <defaults>
</compile_context>

<pallas_src>
import jax
import jax.numpy as jnp
from jax.experimental import pallas as pl
from jax.experimental.pallas import tpu as pltpu

NUM_LAYERS = 3
D_MODEL = 64
IN_C = 1
OUT_C = 1
BN_EPS = 1e-5


# ----------------------------------------------------------------------------
# Kernel: whole DSS forward for one batch element per grid step, (C, N) layout.
# ----------------------------------------------------------------------------
def dss_kernel(x_ref,
               w0c, b0c, w1, b1,
               lxs, lxt, m1w, m1b, m2w, m2b,
               g1w, g1b, g2w, g2b, cAw, cBw, cb,
               dbs, dbt, d1w, d1b, d2w, d2b, d3w, d3b,
               o_ref):
    f32 = jnp.float32
    bf16 = jnp.bfloat16

    x = x_ref[0].astype(f32)                      # (1, N): the whole set, lane-dense
    # True set size: the whole set is resident per grid step (no N tiling /
    # padding), so shape[-1] is the real N the mean must divide by.
    inv_n = 1.0 / x.shape[-1]

    # ---- stem: Conv1d(1->64)+BN+ReLU (folded) as a VPU outer product ----
    h = jnp.maximum(w0c[...] * x + b0c[...], 0.0)                       # (64, N)
    # ---- stem: Conv1d(64->D)+BN+ReLU (folded), MXU bf16 operands ----
    h = jnp.maximum(
        jnp.dot(w1[...], h.astype(bf16), preferred_element_type=f32) + b1[...],
        0.0)                                                            # (D, N)

    # ---- DSS layers (statically unrolled, stacked per-layer weights) ----
    for l in range(NUM_LAYERS):
        # x_bn + ReLU (cannot fold: ReLU sits between this BN and the next conv)
        xb = jnp.maximum(h * lxs[l] + lxt[l], 0.0)                      # (D, N)
        # mlp: Conv(D->D/2)+BN+ReLU (BN folded), Conv(D/2->D)
        h1 = jnp.maximum(
            jnp.dot(m1w[l], xb.astype(bf16), preferred_element_type=f32) + m1b[l],
            0.0)                                                        # (D/2, N)
        h2 = jnp.dot(m2w[l], h1.astype(bf16),
                     preferred_element_type=f32) + m2b[l]               # (D, N)

        # cat_proj conv on the *uncentered* features: depends only on h2, so the
        # MXU starts immediately; centering is applied below via its lane-mean.
        acc = jnp.dot(cAw[l], h2.astype(bf16),
                      preferred_element_type=f32)                       # (D, N)

        # set pooling (mean over the N points) for the global-feature branch,
        # and the lane-mean of acc (== convA(gf)) -- both cheap XLU reductions.
        gf = jnp.sum(h2, axis=1, keepdims=True) * inv_n                 # (D, 1)
        acc_mean = jnp.sum(acc, axis=1, keepdims=True) * inv_n          # (D, 1)

        # tiny global-feature MLP (D,1) -- hides under the big matmul's drain
        g = jnp.maximum(jnp.dot(g1w[l], gf, preferred_element_type=f32) + g1b[l],
                        0.0)
        g = jnp.dot(g2w[l], g, preferred_element_type=f32) + g2b[l]     # (D, 1)

        # residual: x + convA(h2) - convA(gf) + linearB(g) + folded biases
        h = h + acc + (jnp.dot(cBw[l], g, preferred_element_type=f32)
                       + cb[l] - acc_mean)

    # ---- decoder: BN ReLU Conv(D,D) ReLU Conv(D,64) ReLU Conv(64,OUT_C) ----
    d = jnp.maximum(h * dbs[...] + dbt[...], 0.0)
    d = jnp.maximum(
        jnp.dot(d1w[...], d.astype(bf16), preferred_element_type=f32) + d1b[...],
        0.0)
    d = jnp.maximum(
        jnp.dot(d2w[...], d.astype(bf16), preferred_element_type=f32) + d2b[...],
        0.0)
    out = jnp.dot(d3w[...], d, preferred_element_type=f32) + d3b[...]   # (OUT_C, N)

    o_ref[0] = out.astype(o_ref.dtype)            # lane-dense (OUT_C, N) store


# ----------------------------------------------------------------------------
# Wrapper
# ----------------------------------------------------------------------------
def dss_forward(x, params):
    """x: (B, N, Cin) like the PyTorch module.  Returns (B, OUT_C, N)."""
    B, N, Cin = x.shape
    assert Cin == IN_C == 1
    # TODO(synk): in_channels > 1 would need a transposed input DMA and a real
    # stem matmul; the module default (in_channels=1) is handled on the VPU.
    x_ncl = x.reshape(B, IN_C, N)   # pure metadata reshape (only a size-1 dim moves)

    def full_spec(a):
        nd = a.ndim
        return pl.BlockSpec(a.shape, lambda b, _nd=nd: (0,) * _nd)

    in_specs = [pl.BlockSpec((1, IN_C, N), lambda b: (b, 0, 0))]
    in_specs += [full_spec(p) for p in params]
    out_specs = pl.BlockSpec((1, OUT_C, N), lambda b: (b, 0, 0))

    return pl.pallas_call(
        dss_kernel,
        out_shape=jax.ShapeDtypeStruct((B, OUT_C, N), x.dtype),
        grid_spec=pltpu.PrefetchScalarGridSpec(
            num_scalar_prefetch=0,
            grid=(B,),
            in_specs=in_specs,
            out_specs=out_specs,
        ),
        compiler_params=pltpu.CompilerParams(dimension_semantics=("parallel",)),
    )(x_ncl, *params)


# ----------------------------------------------------------------------------
# Deterministic parameter construction with host-side BN / bias folding.
# Weights use the PyTorch (out_C, in_C) layout; per-channel vectors are
# (C, 1) columns (broadcast over the lane/point axis in the kernel).
# ----------------------------------------------------------------------------
def _dense(key, cin, cout):
    kw, kb = jax.random.split(key)
    w = jax.random.normal(kw, (cout, cin), jnp.float32) / (cin ** 0.5)
    b = 0.02 * jax.random.normal(kb, (cout, 1), jnp.float32)
    return w, b


def _bn(key, c):
    kg, kb = jax.random.split(key)
    gamma = 1.0 + 0.1 * jax.random.normal(kg, (c, 1), jnp.float32)
    beta = 0.1 * jax.random.normal(kb, (c, 1), jnp.float32)
    # eval-mode BN with construction-time stats: running_mean=0, running_var=1
    scale = gamma / jnp.sqrt(1.0 + BN_EPS)
    shift = beta
    return scale, shift


def _fold(w, b, s, t):
    # BN(W @ h + b) = (s * W) @ h + (s * b + t)   (s, t per output channel)
    return w * s, b * s + t


def init_params(key):
    D, L = D_MODEL, NUM_LAYERS
    bf16 = jnp.bfloat16
    keys = iter(jax.random.split(key, 64))

    # stem
    w0, b0 = _dense(next(keys), IN_C, 64)
    s0, t0 = _bn(next(keys), 64)
    w0c, b0c = _fold(w0, b0, s0, t0)                 # (64,1) f32, used on the VPU
    w1, b1 = _dense(next(keys), 64, D)
    s1, t1 = _bn(next(keys), D)
    w1, b1 = _fold(w1, b1, s1, t1)

    lxs, lxt = [], []
    m1w, m1b, m2w, m2b = [], [], [], []
    g1w, g1b, g2w, g2b = [], [], [], []
    cAw, cBw, cb = [], [], []
    for _ in range(L):
        s, t = _bn(next(keys), D); lxs.append(s); lxt.append(t)
        w, b = _dense(next(keys), D, D // 2)
        s, t = _bn(next(keys), D // 2)
        w, b = _fold(w, b, s, t); m1w.append(w); m1b.append(b)
        w, b = _dense(next(keys), D // 2, D); m2w.append(w); m2b.append(b)
        w, b = _dense(next(keys), D, D); g1w.append(w); g1b.append(b)
        w, b = _dense(next(keys), D, D); g2w.append(w); g2b.append(b)
        wA, bA = _dense(next(keys), D, D)
        wB, bB = _dense(next(keys), D, D)
        s, t = _bn(next(keys), D)
        # project_bn(A + B) = (s*WA)@hc + (s*WB)@g + (s*(bA+bB) + t)
        cAw.append(wA * s); cBw.append(wB * s); cb.append((bA + bB) * s + t)

    dbs, dbt = _bn(next(keys), D)
    d1w, d1b = _dense(next(keys), D, D)
    d2w, d2b = _dense(next(keys), D, 64)
    d3w, d3b = _dense(next(keys), 64, OUT_C)

    stk = lambda xs: jnp.stack(xs, 0)
    return [
        w0c, b0c, w1.astype(bf16), b1,
        stk(lxs), stk(lxt),
        stk(m1w).astype(bf16), stk(m1b),
        stk(m2w).astype(bf16), stk(m2b),
        stk(g1w), stk(g1b), stk(g2w), stk(g2b),
        stk(cAw).astype(bf16), stk(cBw), stk(cb),
        dbs, dbt,
        d1w.astype(bf16), d1b, d2w.astype(bf16), d2b,
        d3w, d3b,
    ]


# ----------------------------------------------------------------------------
# Pure-JAX reference: same folded parameters, same centering decomposition and
# same precision policy (bf16 operands / f32 accumulation on the large matmuls,
# f32 elsewhere) so it matches the kernel tightly while staying mathematically
# identical to the PyTorch forward.
# ----------------------------------------------------------------------------
def dss_ref(x, params):
    (w0c, b0c, w1, b1, lxs, lxt, m1w, m1b, m2w, m2b,
     g1w, g1b, g2w, g2b, cAw, cBw, cb, dbs, dbt,
     d1w, d1b, d2w, d2b, d3w, d3b) = params
    B, N, _ = x.shape
    f32, bf16 = jnp.float32, jnp.bfloat16

    def mm_big(w, h):    # bf16 operands, f32 accumulation
        return jnp.einsum('oi,bin->bon', w, h.astype(bf16),
                          preferred_element_type=f32)

    def mm_tiny(w, h):   # f32 path for the (D,1) global-feature vectors
        return jnp.einsum('oi,bin->bon', w, h, preferred_element_type=f32)

    xr = x.reshape(B, 1, N).astype(f32)
    h = jnp.maximum(w0c[None] * xr + b0c[None], 0.0)
    h = jnp.maximum(mm_big(w1, h) + b1[None], 0.0)
    for l in range(NUM_LAYERS):
        xb = jnp.maximum(h * lxs[l][None] + lxt[l][None], 0.0)
        h1 = jnp.maximum(mm_big(m1w[l], xb) + m1b[l][None], 0.0)
        h2 = mm_big(m2w[l], h1) + m2b[l][None]
        acc = mm_big(cAw[l], h2)
        gf = jnp.mean(h2, axis=-1, keepdims=True)
        acc_mean = jnp.mean(acc, axis=-1, keepdims=True)
        g = jnp.maximum(mm_tiny(g1w[l], gf) + g1b[l][None], 0.0)
        g = mm_tiny(g2w[l], g) + g2b[l][None]
        h = h + acc + mm_tiny(cBw[l], g) + cb[l][None] - acc_mean
    d = jnp.maximum(h * dbs[None] + dbt[None], 0.0)
    d = jnp.maximum(mm_big(d1w, d) + d1b[None], 0.0)
    d = jnp.maximum(mm_big(d2w, d) + d2b[None], 0.0)
    out = mm_tiny(d3w, d) + d3b[None]
    return out                                              # (B, OUT_C, N)


if __name__ == "__main__":
    key = jax.random.PRNGKey(0)
    k_in, k_par = jax.random.split(key)

    B, N = 2, 128
    # PyTorch DSS.forward takes input (B, N, C) with C = in_channels = 1.
    x = jax.random.normal(k_in, (B, N, IN_C), jnp.float32)
    params = init_params(k_par)

    out = jax.block_until_ready(dss_forward(x, params))
    ref = jax.block_until_ready(dss_ref(x, params))

    assert out.shape == (B, OUT_C, N), out.shape
    assert jnp.allclose(out, ref, atol=2e-2, rtol=2e-2), (
        float(jnp.max(jnp.abs(out - ref))))

    print("KERNEL_OK")
</pallas_src>

<mosaic_0001>
module attributes {stable_mosaic.version = 11 : i64} {
  func.func @dss_kernel(%arg0: i32, %arg1: memref<1x1x128xf32, #tpu.memory_space<vmem>>, %arg2: memref<64x1xf32, #tpu.memory_space<vmem>>, %arg3: memref<64x1xf32, #tpu.memory_space<vmem>>, %arg4: memref<64x64xbf16, #tpu.memory_space<vmem>>, %arg5: memref<64x1xf32, #tpu.memory_space<vmem>>, %arg6: memref<3x64x1xf32, #tpu.memory_space<vmem>>, %arg7: memref<3x64x1xf32, #tpu.memory_space<vmem>>, %arg8: memref<3x32x64xbf16, #tpu.memory_space<vmem>>, %arg9: memref<3x32x1xf32, #tpu.memory_space<vmem>>, %arg10: memref<3x64x32xbf16, #tpu.memory_space<vmem>>, %arg11: memref<3x64x1xf32, #tpu.memory_space<vmem>>, %arg12: memref<3x64x64xf32, #tpu.memory_space<vmem>>, %arg13: memref<3x64x1xf32, #tpu.memory_space<vmem>>, %arg14: memref<3x64x64xf32, #tpu.memory_space<vmem>>, %arg15: memref<3x64x1xf32, #tpu.memory_space<vmem>>, %arg16: memref<3x64x64xbf16, #tpu.memory_space<vmem>>, %arg17: memref<3x64x64xf32, #tpu.memory_space<vmem>>, %arg18: memref<3x64x1xf32, #tpu.memory_space<vmem>>, %arg19: memref<64x1xf32, #tpu.memory_space<vmem>>, %arg20: memref<64x1xf32, #tpu.memory_space<vmem>>, %arg21: memref<64x64xbf16, #tpu.memory_space<vmem>>, %arg22: memref<64x1xf32, #tpu.memory_space<vmem>>, %arg23: memref<64x64xbf16, #tpu.memory_space<vmem>>, %arg24: memref<64x1xf32, #tpu.memory_space<vmem>>, %arg25: memref<1x64xf32, #tpu.memory_space<vmem>>, %arg26: memref<1x1xf32, #tpu.memory_space<vmem>>, %arg27: memref<1x1x128xf32, #tpu.memory_space<vmem>>) attributes {dimension_semantics = [#tpu.dimension_semantics<parallel>], iteration_bounds = array<i64: 2>, scalar_prefetch = 0 : i64, scratch_operands = 0 : i64, tpu.core_type = #tpu.core_type<tc>, window_params = [{transform_indices = @transform_0, window_bounds = array<i64: 1, 1, 128>}, {pipeline_mode = #tpu.pipeline_mode<synchronous>, transform_indices = @transform_1, window_bounds = array<i64: 64, 1>}, {pipeline_mode = #tpu.pipeline_mode<synchronous>, transform_indices = @transform_2, window_bounds = array<i64: 64, 1>}, {pipeline_mode = #tpu.pipeline_mode<synchronous>, transform_indices = @transform_3, window_bounds = array<i64: 64, 64>}, {pipeline_mode = #tpu.pipeline_mode<synchronous>, transform_indices = @transform_4, window_bounds = array<i64: 64, 1>}, {pipeline_mode = #tpu.pipeline_mode<synchronous>, transform_indices = @transform_5, window_bounds = array<i64: 3, 64, 1>}, {pipeline_mode = #tpu.pipeline_mode<synchronous>, transform_indices = @transform_6, window_bounds = array<i64: 3, 64, 1>}, {pipeline_mode = #tpu.pipeline_mode<synchronous>, transform_indices = @transform_7, window_bounds = array<i64: 3, 32, 64>}, {pipeline_mode = #tpu.pipeline_mode<synchronous>, transform_indices = @transform_8, window_bounds = array<i64: 3, 32, 1>}, {pipeline_mode = #tpu.pipeline_mode<synchronous>, transform_indices = @transform_9, window_bounds = array<i64: 3, 64, 32>}, {pipeline_mode = #tpu.pipeline_mode<synchronous>, transform_indices = @transform_10, window_bounds = array<i64: 3, 64, 1>}, {pipeline_mode = #tpu.pipeline_mode<synchronous>, transform_indices = @transform_11, window_bounds = array<i64: 3, 64, 64>}, {pipeline_mode = #tpu.pipeline_mode<synchronous>, transform_indices = @transform_12, window_bounds = array<i64: 3, 64, 1>}, {pipeline_mode = #tpu.pipeline_mode<synchronous>, transform_indices = @transform_13, window_bounds = array<i64: 3, 64, 64>}, {pipeline_mode = #tpu.pipeline_mode<synchronous>, transform_indices = @transform_14, window_bounds = array<i64: 3, 64, 1>}, {pipeline_mode = #tpu.pipeline_mode<synchronous>, transform_indices = @transform_15, window_bounds = array<i64: 3, 64, 64>}, {pipeline_mode = #tpu.pipeline_mode<synchronous>, transform_indices = @transform_16, window_bounds = array<i64: 3, 64, 64>}, {pipeline_mode = #tpu.pipeline_mode<synchronous>, transform_indices = @transform_17, window_bounds = array<i64: 3, 64, 1>}, {pipeline_mode = #tpu.pipeline_mode<synchronous>, transform_indices = @transform_18, window_bounds = array<i64: 64, 1>}, {pipeline_mode = #tpu.pipeline_mode<synchronous>, transform_indices = @transform_19, window_bounds = array<i64: 64, 1>}, {pipeline_mode = #tpu.pipeline_mode<synchronous>, transform_indices = @transform_20, window_bounds = array<i64: 64, 64>}, {pipeline_mode = #tpu.pipeline_mode<synchronous>, transform_indices = @transform_21, window_bounds = array<i64: 64, 1>}, {pipeline_mode = #tpu.pipeline_mode<synchronous>, transform_indices = @transform_22, window_bounds = array<i64: 64, 64>}, {pipeline_mode = #tpu.pipeline_mode<synchronous>, transform_indices = @transform_23, window_bounds = array<i64: 64, 1>}, {pipeline_mode = #tpu.pipeline_mode<synchronous>, transform_indices = @transform_24, window_bounds = array<i64: 1, 64>}, {pipeline_mode = #tpu.pipeline_mode<synchronous>, transform_indices = @transform_25, window_bounds = array<i64: 1, 1>}, {transform_indices = @transform_26, window_bounds = array<i64: 1, 1, 128>}]} {
    %c0 = arith.constant 0 : index
    %c0_0 = arith.constant 0 : index
    %c0_1 = arith.constant 0 : index
    %0 = vector.load %arg1[%c0, %c0_0, %c0_1] : memref<1x1x128xf32, #tpu.memory_space<vmem>>, vector<1x1x128xf32>
    %1 = vector.shape_cast %0 : vector<1x1x128xf32> to vector<1x128xf32>
    %c0_2 = arith.constant 0 : index
    %c0_3 = arith.constant 0 : index
    %2 = vector.load %arg2[%c0_2, %c0_3] : memref<64x1xf32, #tpu.memory_space<vmem>>, vector<64x1xf32>
    %3 = vector.broadcast %2 : vector<64x1xf32> to vector<64x128xf32>
    %4 = vector.broadcast %1 : vector<1x128xf32> to vector<64x128xf32>
    %5 = arith.mulf %3, %4 : vector<64x128xf32>
    %c0_4 = arith.constant 0 : index
    %c0_5 = arith.constant 0 : index
    %6 = vector.load %arg3[%c0_4, %c0_5] : memref<64x1xf32, #tpu.memory_space<vmem>>, vector<64x1xf32>
    %7 = vector.broadcast %6 : vector<64x1xf32> to vector<64x128xf32>
    %8 = arith.addf %5, %7 : vector<64x128xf32>
    %cst = arith.constant 0.000000e+00 : f32
    %9 = vector.broadcast %cst : f32 to vector<64x128xf32>
    %10 = arith.maximumf %8, %9 : vector<64x128xf32>
    %c0_6 = arith.constant 0 : index
    %c0_7 = arith.constant 0 : index
    %11 = vector.load %arg4[%c0_6, %c0_7] : memref<64x64xbf16, #tpu.memory_space<vmem>>, vector<64x64xbf16>
    %12 = arith.truncf %10 : vector<64x128xf32> to vector<64x128xbf16>
    %cst_8 = arith.constant dense<0.000000e+00> : vector<64x128xf32>
    %13 = tpu.matmul %11, %12, %cst_8 {dimension_numbers = #tpu.dot_dimension_numbers<[1], [0], [0], [1], [0, 0, 1, 1], [], []>} : vector<64x64xbf16>, vector<64x128xbf16>, vector<64x128xf32> -> vector<64x128xf32>
    %c0_9 = arith.constant 0 : index
    %c0_10 = arith.constant 0 : index
    %14 = vector.load %arg5[%c0_9, %c0_10] : memref<64x1xf32, #tpu.memory_space<vmem>>, vector<64x1xf32>
    %15 = vector.broadcast %14 : vector<64x1xf32> to vector<64x128xf32>
    %16 = arith.addf %13, %15 : vector<64x128xf32>
    %cst_11 = arith.constant 0.000000e+00 : f32
    %17 = vector.broadcast %cst_11 : f32 to vector<64x128xf32>
    %18 = arith.maximumf %16, %17 : vector<64x128xf32>
    %c0_12 = arith.constant 0 : index
    %c0_13 = arith.constant 0 : index
    %c0_14 = arith.constant 0 : index
    %19 = vector.load %arg6[%c0_12, %c0_13, %c0_14] : memref<3x64x1xf32, #tpu.memory_space<vmem>>, vector<1x64x1xf32>
    %20 = vector.shape_cast %19 : vector<1x64x1xf32> to vector<64x1xf32>
    %21 = vector.broadcast %20 : vector<64x1xf32> to vector<64x128xf32>
    %22 = arith.mulf %18, %21 : vector<64x128xf32>
    %c0_15 = arith.constant 0 : index
    %c0_16 = arith.constant 0 : index
    %c0_17 = arith.constant 0 : index
    %23 = vector.load %arg7[%c0_15, %c0_16, %c0_17] : memref<3x64x1xf32, #tpu.memory_space<vmem>>, vector<1x64x1xf32>
    %24 = vector.shape_cast %23 : vector<1x64x1xf32> to vector<64x1xf32>
    %25 = vector.broadcast %24 : vector<64x1xf32> to vector<64x128xf32>
    %26 = arith.addf %22, %25 : vector<64x128xf32>
    %cst_18 = arith.constant 0.000000e+00 : f32
    %27 = vector.broadcast %cst_18 : f32 to vector<64x128xf32>
    %28 = arith.maximumf %26, %27 : vector<64x128xf32>
    %c0_19 = arith.constant 0 : index
    %c0_20 = arith.constant 0 : index
    %c0_21 = arith.constant 0 : index
    %29 = vector.load %arg8[%c0_19, %c0_20, %c0_21] : memref<3x32x64xbf16, #tpu.memory_space<vmem>>, vector<1x32x64xbf16>
    %30 = vector.shape_cast %29 : vector<1x32x64xbf16> to vector<32x64xbf16>
    %31 = arith.truncf %28 : vector<64x128xf32> to vector<64x128xbf16>
    %cst_22 = arith.constant dense<0.000000e+00> : vector<32x128xf32>
    %32 = tpu.matmul %30, %31, %cst_22 {dimension_numbers = #tpu.dot_dimension_numbers<[1], [0], [0], [1], [0, 0, 1, 1], [], []>} : vector<32x64xbf16>, vector<64x128xbf16>, vector<32x128xf32> -> vector<32x128xf32>
    %c0_23 = arith.constant 0 : index
    %c0_24 = arith.constant 0 : index
    %c0_25 = arith.constant 0 : index
    %33 = vector.load %arg9[%c0_23, %c0_24, %c0_25] : memref<3x32x1xf32, #tpu.memory_space<vmem>>, vector<1x32x1xf32>
    %34 = vector.shape_cast %33 : vector<1x32x1xf32> to vector<32x1xf32>
    %35 = vector.broadcast %34 : vector<32x1xf32> to vector<32x128xf32>
    %36 = arith.addf %32, %35 : vector<32x128xf32>
    %cst_26 = arith.constant 0.000000e+00 : f32
    %37 = vector.broadcast %cst_26 : f32 to vector<32x128xf32>
    %38 = arith.maximumf %36, %37 : vector<32x128xf32>
    %c0_27 = arith.constant 0 : index
    %c0_28 = arith.constant 0 : index
    %c0_29 = arith.constant 0 : index
    %39 = vector.load %arg10[%c0_27, %c0_28, %c0_29] : memref<3x64x32xbf16, #tpu.memory_space<vmem>>, vector<1x64x32xbf16>
    %40 = vector.shape_cast %39 : vector<1x64x32xbf16> to vector<64x32xbf16>
    %41 = arith.truncf %38 : vector<32x128xf32> to vector<32x128xbf16>
    %cst_30 = arith.constant dense<0.000000e+00> : vector<64x128xf32>
    %42 = tpu.matmul %40, %41, %cst_30 {dimension_numbers = #tpu.dot_dimension_numbers<[1], [0], [0], [1], [0, 0, 1, 1], [], []>} : vector<64x32xbf16>, vector<32x128xbf16>, vector<64x128xf32> -> vector<64x128xf32>
    %c0_31 = arith.constant 0 : index
    %c0_32 = arith.constant 0 : index
    %c0_33 = arith.constant 0 : index
    %43 = vector.load %arg11[%c0_31, %c0_32, %c0_33] : memref<3x64x1xf32, #tpu.memory_space<vmem>>, vector<1x64x1xf32>
    %44 = vector.shape_cast %43 : vector<1x64x1xf32> to vector<64x1xf32>
    %45 = vector.broadcast %44 : vector<64x1xf32> to vector<64x128xf32>
    %46 = arith.addf %42, %45 : vector<64x128xf32>
    %c0_34 = arith.constant 0 : index
    %c0_35 = arith.constant 0 : index
    %c0_36 = arith.constant 0 : index
    %47 = vector.load %arg16[%c0_34, %c0_35, %c0_36] : memref<3x64x64xbf16, #tpu.memory_space<vmem>>, vector<1x64x64xbf16>
    %48 = vector.shape_cast %47 : vector<1x64x64xbf16> to vector<64x64xbf16>
    %49 = arith.truncf %46 : vector<64x128xf32> to vector<64x128xbf16>
    %cst_37 = arith.constant dense<0.000000e+00> : vector<64x128xf32>
    %50 = tpu.matmul %48, %49, %cst_37 {dimension_numbers = #tpu.dot_dimension_numbers<[1], [0], [0], [1], [0, 0, 1, 1], [], []>} : vector<64x64xbf16>, vector<64x128xbf16>, vector<64x128xf32> -> vector<64x128xf32>
    %cst_38 = arith.constant dense<0.000000e+00> : vector<64xf32>
    %51 = vector.multi_reduction <add>, %46, %cst_38 [1] : vector<64x128xf32> to vector<64xf32>
    %52 = vector.shape_cast %51 : vector<64xf32> to vector<64x1xf32>
    %cst_39 = arith.constant 7.812500e-03 : f32
    %53 = vector.broadcast %cst_39 : f32 to vector<64x1xf32>
    %54 = arith.mulf %52, %53 : vector<64x1xf32>
    %cst_40 = arith.constant dense<0.000000e+00> : vector<64xf32>
    %55 = vector.multi_reduction <add>, %50, %cst_40 [1] : vector<64x128xf32> to vector<64xf32>
    %56 = vector.shape_cast %55 : vector<64xf32> to vector<64x1xf32>
    %cst_41 = arith.constant 7.812500e-03 : f32
    %57 = vector.broadcast %cst_41 : f32 to vector<64x1xf32>
    %58 = arith.mulf %56, %57 : vector<64x1xf32>
    %c0_42 = arith.constant 0 : index
    %c0_43 = arith.constant 0 : index
    %c0_44 = arith.constant 0 : index
    %59 = vector.load %arg12[%c0_42, %c0_43, %c0_44] : memref<3x64x64xf32, #tpu.memory_space<vmem>>, vector<1x64x64xf32>
    %60 = vector.shape_cast %59 : vector<1x64x64xf32> to vector<64x64xf32>
    %cst_45 = arith.constant dense<0.000000e+00> : vector<64x1xf32>
    %61 = tpu.matmul %60, %54, %cst_45 {dimension_numbers = #tpu.dot_dimension_numbers<[1], [0], [0], [1], [0, 0, 1, 1], [], []>} : vector<64x64xf32>, vector<64x1xf32>, vector<64x1xf32> -> vector<64x1xf32>
    %c0_46 = arith.constant 0 : index
    %c0_47 = arith.constant 0 : index
    %c0_48 = arith.constant 0 : index
    %62 = vector.load %arg13[%c0_46, %c0_47, %c0_48] : memref<3x64x1xf32, #tpu.memory_space<vmem>>, vector<1x64x1xf32>
    %63 = vector.shape_cast %62 : vector<1x64x1xf32> to vector<64x1xf32>
    %64 = arith.addf %61, %63 : vector<64x1xf32>
    %cst_49 = arith.constant 0.000000e+00 : f32
    %65 = vector.broadcast %cst_49 : f32 to vector<64x1xf32>
    %66 = arith.maximumf %64, %65 : vector<64x1xf32>
    %c0_50 = arith.constant 0 : index
    %c0_51 = arith.constant 0 : index
    %c0_52 = arith.constant 0 : index
    %67 = vector.load %arg14[%c0_50, %c0_51, %c0_52] : memref<3x64x64xf32, #tpu.memory_space<vmem>>, vector<1x64x64xf32>
    %68 = vector.shape_cast %67 : vector<1x64x64xf32> to vector<64x64xf32>
    %cst_53 = arith.constant dense<0.000000e+00> : vector<64x1xf32>
    %69 = tpu.matmul %68, %66, %cst_53 {dimension_numbers = #tpu.dot_dimension_numbers<[1], [0], [0], [1], [0, 0, 1, 1], [], []>} : vector<64x64xf32>, vector<64x1xf32>, vector<64x1xf32> -> vector<64x1xf32>
    %c0_54 = arith.constant 0 : index
    %c0_55 = arith.constant 0 : index
    %c0_56 = arith.constant 0 : index
    %70 = vector.load %arg15[%c0_54, %c0_55, %c0_56] : memref<3x64x1xf32, #tpu.memory_space<vmem>>, vector<1x64x1xf32>
    %71 = vector.shape_cast %70 : vector<1x64x1xf32> to vector<64x1xf32>
    %72 = arith.addf %69, %71 : vector<64x1xf32>
    %73 = arith.addf %18, %50 : vector<64x128xf32>
    %c0_57 = arith.constant 0 : index
    %c0_58 = arith.constant 0 : index
    %c0_59 = arith.constant 0 : index
    %74 = vector.load %arg17[%c0_57, %c0_58, %c0_59] : memref<3x64x64xf32, #tpu.memory_space<vmem>>, vector<1x64x64xf32>
    %75 = vector.shape_cast %74 : vector<1x64x64xf32> to vector<64x64xf32>
    %cst_60 = arith.constant dense<0.000000e+00> : vector<64x1xf32>
    %76 = tpu.matmul %75, %72, %cst_60 {dimension_numbers = #tpu.dot_dimension_numbers<[1], [0], [0], [1], [0, 0, 1, 1], [], []>} : vector<64x64xf32>, vector<64x1xf32>, vector<64x1xf32> -> vector<64x1xf32>
    %c0_61 = arith.constant 0 : index
    %c0_62 = arith.constant 0 : index
    %c0_63 = arith.constant 0 : index
    %77 = vector.load %arg18[%c0_61, %c0_62, %c0_63] : memref<3x64x1xf32, #tpu.memory_space<vmem>>, vector<1x64x1xf32>
    %78 = vector.shape_cast %77 : vector<1x64x1xf32> to vector<64x1xf32>
    %79 = arith.addf %76, %78 : vector<64x1xf32>
    %80 = arith.subf %79, %58 : vector<64x1xf32>
    %81 = vector.broadcast %80 : vector<64x1xf32> to vector<64x128xf32>
    %82 = arith.addf %73, %81 : vector<64x128xf32>
    %c1 = arith.constant 1 : index
    %c0_64 = arith.constant 0 : index
    %c0_65 = arith.constant 0 : index
    %83 = vector.load %arg6[%c1, %c0_64, %c0_65] : memref<3x64x1xf32, #tpu.memory_space<vmem>>, vector<1x64x1xf32>
    %84 = vector.shape_cast %83 : vector<1x64x1xf32> to vector<64x1xf32>
    %85 = vector.broadcast %84 : vector<64x1xf32> to vector<64x128xf32>
    %86 = arith.mulf %82, %85 : vector<64x128xf32>
    %c1_66 = arith.constant 1 : index
    %c0_67 = arith.constant 0 : index
    %c0_68 = arith.constant 0 : index
    %87 = vector.load %arg7[%c1_66, %c0_67, %c0_68] : memref<3x64x1xf32, #tpu.memory_space<vmem>>, vector<1x64x1xf32>
    %88 = vector.shape_cast %87 : vector<1x64x1xf32> to vector<64x1xf32>
    %89 = vector.broadcast %88 : vector<64x1xf32> to vector<64x128xf32>
    %90 = arith.addf %86, %89 : vector<64x128xf32>
    %cst_69 = arith.constant 0.000000e+00 : f32
    %91 = vector.broadcast %cst_69 : f32 to vector<64x128xf32>
    %92 = arith.maximumf %90, %91 : vector<64x128xf32>
    %c1_70 = arith.constant 1 : index
    %c0_71 = arith.constant 0 : index
    %c0_72 = arith.constant 0 : index
    %93 = vector.load %arg8[%c1_70, %c0_71, %c0_72] : memref<3x32x64xbf16, #tpu.memory_space<vmem>>, vector<1x32x64xbf16>
    %94 = vector.shape_cast %93 : vector<1x32x64xbf16> to vector<32x64xbf16>
    %95 = arith.truncf %92 : vector<64x128xf32> to vector<64x128xbf16>
    %cst_73 = arith.constant dense<0.000000e+00> : vector<32x128xf32>
    %96 = tpu.matmul %94, %95, %cst_73 {dimension_numbers = #tpu.dot_dimension_numbers<[1], [0], [0], [1], [0, 0, 1, 1], [], []>} : vector<32x64xbf16>, vector<64x128xbf16>, vector<32x128xf32> -> vector<32x128xf32>
    %c1_74 = arith.constant 1 : index
    %c0_75 = arith.constant 0 : index
    %c0_76 = arith.constant 0 : index
    %97 = vector.load %arg9[%c1_74, %c0_75, %c0_76] : memref<3x32x1xf32, #tpu.memory_space<vmem>>, vector<1x32x1xf32>
    %98 = vector.shape_cast %97 : vector<1x32x1xf32> to vector<32x1xf32>
    %99 = vector.broadcast %98 : vector<32x1xf32> to vector<32x128xf32>
    %100 = arith.addf %96, %99 : vector<32x128xf32>
    %cst_77 = arith.constant 0.000000e+00 : f32
    %101 = vector.broadcast %cst_77 : f32 to vector<32x128xf32>
    %102 = arith.maximumf %100, %101 : vector<32x128xf32>
    %c1_78 = arith.constant 1 : index
    %c0_79 = arith.constant 0 : index
    %c0_80 = arith.constant 0 : index
    %103 = vector.load %arg10[%c1_78, %c0_79, %c0_80] : memref<3x64x32xbf16, #tpu.memory_space<vmem>>, vector<1x64x32xbf16>
    %104 = vector.shape_cast %103 : vector<1x64x32xbf16> to vector<64x32xbf16>
    %105 = arith.truncf %102 : vector<32x128xf32> to vector<32x128xbf16>
    %cst_81 = arith.constant dense<0.000000e+00> : vector<64x128xf32>
    %106 = tpu.matmul %104, %105, %cst_81 {dimension_numbers = #tpu.dot_dimension_numbers<[1], [0], [0], [1], [0, 0, 1, 1], [], []>} : vector<64x32xbf16>, vector<32x128xbf16>, vector<64x128xf32> -> vector<64x128xf32>
    %c1_82 = arith.constant 1 : index
    %c0_83 = arith.constant 0 : index
    %c0_84 = arith.constant 0 : index
    %107 = vector.load %arg11[%c1_82, %c0_83, %c0_84] : memref<3x64x1xf32, #tpu.memory_space<vmem>>, vector<1x64x1xf32>
    %108 = vector.shape_cast %107 : vector<1x64x1xf32> to vector<64x1xf32>
    %109 = vector.broadcast %108 : vector<64x1xf32> to vector<64x128xf32>
    %110 = arith.addf %106, %109 : vector<64x128xf32>
    %c1_85 = arith.constant 1 : index
    %c0_86 = arith.constant 0 : index
    %c0_87 = arith.constant 0 : index
    %111 = vector.load %arg16[%c1_85, %c0_86, %c0_87] : memref<3x64x64xbf16, #tpu.memory_space<vmem>>, vector<1x64x64xbf16>
    %112 = vector.shape_cast %111 : vector<1x64x64xbf16> to vector<64x64xbf16>
    %113 = arith.truncf %110 : vector<64x128xf32> to vector<64x128xbf16>
    %cst_88 = arith.constant dense<0.000000e+00> : vector<64x128xf32>
    %114 = tpu.matmul %112, %113, %cst_88 {dimension_numbers = #tpu.dot_dimension_numbers<[1], [0], [0], [1], [0, 0, 1, 1], [], []>} : vector<64x64xbf16>, vector<64x128xbf16>, vector<64x128xf32> -> vector<64x128xf32>
    %cst_89 = arith.constant dense<0.000000e+00> : vector<64xf32>
    %115 = vector.multi_reduction <add>, %110, %cst_89 [1] : vector<64x128xf32> to vector<64xf32>
    %116 = vector.shape_cast %115 : vector<64xf32> to vector<64x1xf32>
    %cst_90 = arith.constant 7.812500e-03 : f32
    %117 = vector.broadcast %cst_90 : f32 to vector<64x1xf32>
    %118 = arith.mulf %116, %117 : vector<64x1xf32>
    %cst_91 = arith.constant dense<0.000000e+00> : vector<64xf32>
    %119 = vector.multi_reduction <add>, %114, %cst_91 [1] : vector<64x128xf32> to vector<64xf32>
    %120 = vector.shape_cast %119 : vector<64xf32> to vector<64x1xf32>
    %cst_92 = arith.constant 7.812500e-03 : f32
    %121 = vector.broadcast %cst_92 : f32 to vector<64x1xf32>
    %122 = arith.mulf %120, %121 : vector<64x1xf32>
    %c1_93 = arith.constant 1 : index
    %c0_94 = arith.constant 0 : index
    %c0_95 = arith.constant 0 : index
    %123 = vector.load %arg12[%c1_93, %c0_94, %c0_95] : memref<3x64x64xf32, #tpu.memory_space<vmem>>, vector<1x64x64xf32>
    %124 = vector.shape_cast %123 : vector<1x64x64xf32> to vector<64x64xf32>
    %cst_96 = arith.constant dense<0.000000e+00> : vector<64x1xf32>
    %125 = tpu.matmul %124, %118, %cst_96 {dimension_numbers = #tpu.dot_dimension_numbers<[1], [0], [0], [1], [0, 0, 1, 1], [], []>} : vector<64x64xf32>, vector<64x1xf32>, vector<64x1xf32> -> vector<64x1xf32>
    %c1_97 = arith.constant 1 : index
    %c0_98 = arith.constant 0 : index
    %c0_99 = arith.constant 0 : index
    %126 = vector.load %arg13[%c1_97, %c0_98, %c0_99] : memref<3x64x1xf32, #tpu.memory_space<vmem>>, vector<1x64x1xf32>
    %127 = vector.shape_cast %126 : vector<1x64x1xf32> to vector<64x1xf32>
    %128 = arith.addf %125, %127 : vector<64x1xf32>
    %cst_100 = arith.constant 0.000000e+00 : f32
    %129 = vector.broadcast %cst_100 : f32 to vector<64x1xf32>
    %130 = arith.maximumf %128, %129 : vector<64x1xf32>
    %c1_101 = arith.constant 1 : index
    %c0_102 = arith.constant 0 : index
    %c0_103 = arith.constant 0 : index
    %131 = vector.load %arg14[%c1_101, %c0_102, %c0_103] : memref<3x64x64xf32, #tpu.memory_space<vmem>>, vector<1x64x64xf32>
    %132 = vector.shape_cast %131 : vector<1x64x64xf32> to vector<64x64xf32>
    %cst_104 = arith.constant dense<0.000000e+00> : vector<64x1xf32>
    %133 = tpu.matmul %132, %130, %cst_104 {dimension_numbers = #tpu.dot_dimension_numbers<[1], [0], [0], [1], [0, 0, 1, 1], [], []>} : vector<64x64xf32>, vector<64x1xf32>, vector<64x1xf32> -> vector<64x1xf32>
    %c1_105 = arith.constant 1 : index
    %c0_106 = arith.constant 0 : index
    %c0_107 = arith.constant 0 : index
    %134 = vector.load %arg15[%c1_105, %c0_106, %c0_107] : memref<3x64x1xf32, #tpu.memory_space<vmem>>, vector<1x64x1xf32>
    %135 = vector.shape_cast %134 : vector<1x64x1xf32> to vector<64x1xf32>
    %136 = arith.addf %133, %135 : vector<64x1xf32>
    %137 = arith.addf %82, %114 : vector<64x128xf32>
    %c1_108 = arith.constant 1 : index
    %c0_109 = arith.constant 0 : index
    %c0_110 = arith.constant 0 : index
    %138 = vector.load %arg17[%c1_108, %c0_109, %c0_110] : memref<3x64x64xf32, #tpu.memory_space<vmem>>, vector<1x64x64xf32>
    %139 = vector.shape_cast %138 : vector<1x64x64xf32> to vector<64x64xf32>
    %cst_111 = arith.constant dense<0.000000e+00> : vector<64x1xf32>
    %140 = tpu.matmul %139, %136, %cst_111 {dimension_numbers = #tpu.dot_dimension_numbers<[1], [0], [0], [1], [0, 0, 1, 1], [], []>} : vector<64x64xf32>, vector<64x1xf32>, vector<64x1xf32> -> vector<64x1xf32>
    %c1_112 = arith.constant 1 : index
    %c0_113 = arith.constant 0 : index
    %c0_114 = arith.constant 0 : index
    %141 = vector.load %arg18[%c1_112, %c0_113, %c0_114] : memref<3x64x1xf32, #tpu.memory_space<vmem>>, vector<1x64x1xf32>
    %142 = vector.shape_cast %141 : vector<1x64x1xf32> to vector<64x1xf32>
    %143 = arith.addf %140, %142 : vector<64x1xf32>
    %144 = arith.subf %143, %122 : vector<64x1xf32>
    %145 = vector.broadcast %144 : vector<64x1xf32> to vector<64x128xf32>
    %146 = arith.addf %137, %145 : vector<64x128xf32>
    %c2 = arith.constant 2 : index
    %c0_115 = arith.constant 0 : index
    %c0_116 = arith.constant 0 : index
    %147 = vector.load %arg6[%c2, %c0_115, %c0_116] : memref<3x64x1xf32, #tpu.memory_space<vmem>>, vector<1x64x1xf32>
    %148 = vector.shape_cast %147 : vector<1x64x1xf32> to vector<64x1xf32>
    %149 = vector.broadcast %148 : vector<64x1xf32> to vector<64x128xf32>
    %150 = arith.mulf %146, %149 : vector<64x128xf32>
    %c2_117 = arith.constant 2 : index
    %c0_118 = arith.constant 0 : index
    %c0_119 = arith.constant 0 : index
    %151 = vector.load %arg7[%c2_117, %c0_118, %c0_119] : memref<3x64x1xf32, #tpu.memory_space<vmem>>, vector<1x64x1xf32>
    %152 = vector.shape_cast %151 : vector<1x64x1xf32> to vector<64x1xf32>
    %153 = vector.broadcast %152 : vector<64x1xf32> to vector<64x128xf32>
    %154 = arith.addf %150, %153 : vector<64x128xf32>
    %cst_120 = arith.constant 0.000000e+00 : f32
    %155 = vector.broadcast %cst_120 : f32 to vector<64x128xf32>
    %156 = arith.maximumf %154, %155 : vector<64x128xf32>
    %c2_121 = arith.constant 2 : index
    %c0_122 = arith.constant 0 : index
    %c0_123 = arith.constant 0 : index
    %157 = vector.load %arg8[%c2_121, %c0_122, %c0_123] : memref<3x32x64xbf16, #tpu.memory_space<vmem>>, vector<1x32x64xbf16>
    %158 = vector.shape_cast %157 : vector<1x32x64xbf16> to vector<32x64xbf16>
    %159 = arith.truncf %156 : vector<64x128xf32> to vector<64x128xbf16>
    %cst_124 = arith.constant dense<0.000000e+00> : vector<32x128xf32>
    %160 = tpu.matmul %158, %159, %cst_124 {dimension_numbers = #tpu.dot_dimension_numbers<[1], [0], [0], [1], [0, 0, 1, 1], [], []>} : vector<32x64xbf16>, vector<64x128xbf16>, vector<32x128xf32> -> vector<32x128xf32>
    %c2_125 = arith.constant 2 : index
    %c0_126 = arith.constant 0 : index
    %c0_127 = arith.constant 0 : index
    %161 = vector.load %arg9[%c2_125, %c0_126, %c0_127] : memref<3x32x1xf32, #tpu.memory_space<vmem>>, vector<1x32x1xf32>
    %162 = vector.shape_cast %161 : vector<1x32x1xf32> to vector<32x1xf32>
    %163 = vector.broadcast %162 : vector<32x1xf32> to vector<32x128xf32>
    %164 = arith.addf %160, %163 : vector<32x128xf32>
    %cst_128 = arith.constant 0.000000e+00 : f32
    %165 = vector.broadcast %cst_128 : f32 to vector<32x128xf32>
    %166 = arith.maximumf %164, %165 : vector<32x128xf32>
    %c2_129 = arith.constant 2 : index
    %c0_130 = arith.constant 0 : index
    %c0_131 = arith.constant 0 : index
    %167 = vector.load %arg10[%c2_129, %c0_130, %c0_131] : memref<3x64x32xbf16, #tpu.memory_space<vmem>>, vector<1x64x32xbf16>
    %168 = vector.shape_cast %167 : vector<1x64x32xbf16> to vector<64x32xbf16>
    %169 = arith.truncf %166 : vector<32x128xf32> to vector<32x128xbf16>
    %cst_132 = arith.constant dense<0.000000e+00> : vector<64x128xf32>
    %170 = tpu.matmul %168, %169, %cst_132 {dimension_numbers = #tpu.dot_dimension_numbers<[1], [0], [0], [1], [0, 0, 1, 1], [], []>} : vector<64x32xbf16>, vector<32x128xbf16>, vector<64x128xf32> -> vector<64x128xf32>
    %c2_133 = arith.constant 2 : index
    %c0_134 = arith.constant 0 : index
    %c0_135 = arith.constant 0 : index
    %171 = vector.load %arg11[%c2_133, %c0_134, %c0_135] : memref<3x64x1xf32, #tpu.memory_space<vmem>>, vector<1x64x1xf32>
    %172 = vector.shape_cast %171 : vector<1x64x1xf32> to vector<64x1xf32>
    %173 = vector.broadcast %172 : vector<64x1xf32> to vector<64x128xf32>
    %174 = arith.addf %170, %173 : vector<64x128xf32>
    %c2_136 = arith.constant 2 : index
    %c0_137 = arith.constant 0 : index
    %c0_138 = arith.constant 0 : index
    %175 = vector.load %arg16[%c2_136, %c0_137, %c0_138] : memref<3x64x64xbf16, #tpu.memory_space<vmem>>, vector<1x64x64xbf16>
    %176 = vector.shape_cast %175 : vector<1x64x64xbf16> to vector<64x64xbf16>
    %177 = arith.truncf %174 : vector<64x128xf32> to vector<64x128xbf16>
    %cst_139 = arith.constant dense<0.000000e+00> : vector<64x128xf32>
    %178 = tpu.matmul %176, %177, %cst_139 {dimension_numbers = #tpu.dot_dimension_numbers<[1], [0], [0], [1], [0, 0, 1, 1], [], []>} : vector<64x64xbf16>, vector<64x128xbf16>, vector<64x128xf32> -> vector<64x128xf32>
    %cst_140 = arith.constant dense<0.000000e+00> : vector<64xf32>
    %179 = vector.multi_reduction <add>, %174, %cst_140 [1] : vector<64x128xf32> to vector<64xf32>
    %180 = vector.shape_cast %179 : vector<64xf32> to vector<64x1xf32>
    %cst_141 = arith.constant 7.812500e-03 : f32
    %181 = vector.broadcast %cst_141 : f32 to vector<64x1xf32>
    %182 = arith.mulf %180, %181 : vector<64x1xf32>
    %cst_142 = arith.constant dense<0.000000e+00> : vector<64xf32>
    %183 = vector.multi_reduction <add>, %178, %cst_142 [1] : vector<64x128xf32> to vector<64xf32>
    %184 = vector.shape_cast %183 : vector<64xf32> to vector<64x1xf32>
    %cst_143 = arith.constant 7.812500e-03 : f32
    %185 = vector.broadcast %cst_143 : f32 to vector<64x1xf32>
    %186 = arith.mulf %184, %185 : vector<64x1xf32>
    %c2_144 = arith.constant 2 : index
    %c0_145 = arith.constant 0 : index
    %c0_146 = arith.constant 0 : index
    %187 = vector.load %arg12[%c2_144, %c0_145, %c0_146] : memref<3x64x64xf32, #tpu.memory_space<vmem>>, vector<1x64x64xf32>
    %188 = vector.shape_cast %187 : vector<1x64x64xf32> to vector<64x64xf32>
    %cst_147 = arith.constant dense<0.000000e+00> : vector<64x1xf32>
    %189 = tpu.matmul %188, %182, %cst_147 {dimension_numbers = #tpu.dot_dimension_numbers<[1], [0], [0], [1], [0, 0, 1, 1], [], []>} : vector<64x64xf32>, vector<64x1xf32>, vector<64x1xf32> -> vector<64x1xf32>
    %c2_148 = arith.constant 2 : index
    %c0_149 = arith.constant 0 : index
    %c0_150 = arith.constant 0 : index
    %190 = vector.load %arg13[%c2_148, %c0_149, %c0_150] : memref<3x64x1xf32, #tpu.memory_space<vmem>>, vector<1x64x1xf32>
    %191 = vector.shape_cast %190 : vector<1x64x1xf32> to vector<64x1xf32>
    %192 = arith.addf %189, %191 : vector<64x1xf32>
    %cst_151 = arith.constant 0.000000e+00 : f32
    %193 = vector.broadcast %cst_151 : f32 to vector<64x1xf32>
    %194 = arith.maximumf %192, %193 : vector<64x1xf32>
    %c2_152 = arith.constant 2 : index
    %c0_153 = arith.constant 0 : index
    %c0_154 = arith.constant 0 : index
    %195 = vector.load %arg14[%c2_152, %c0_153, %c0_154] : memref<3x64x64xf32, #tpu.memory_space<vmem>>, vector<1x64x64xf32>
    %196 = vector.shape_cast %195 : vector<1x64x64xf32> to vector<64x64xf32>
    %cst_155 = arith.constant dense<0.000000e+00> : vector<64x1xf32>
    %197 = tpu.matmul %196, %194, %cst_155 {dimension_numbers = #tpu.dot_dimension_numbers<[1], [0], [0], [1], [0, 0, 1, 1], [], []>} : vector<64x64xf32>, vector<64x1xf32>, vector<64x1xf32> -> vector<64x1xf32>
    %c2_156 = arith.constant 2 : index
    %c0_157 = arith.constant 0 : index
    %c0_158 = arith.constant 0 : index
    %198 = vector.load %arg15[%c2_156, %c0_157, %c0_158] : memref<3x64x1xf32, #tpu.memory_space<vmem>>, vector<1x64x1xf32>
    %199 = vector.shape_cast %198 : vector<1x64x1xf32> to vector<64x1xf32>
    %200 = arith.addf %197, %199 : vector<64x1xf32>
    %201 = arith.addf %146, %178 : vector<64x128xf32>
    %c2_159 = arith.constant 2 : index
    %c0_160 = arith.constant 0 : index
    %c0_161 = arith.constant 0 : index
    %202 = vector.load %arg17[%c2_159, %c0_160, %c0_161] : memref<3x64x64xf32, #tpu.memory_space<vmem>>, vector<1x64x64xf32>
    %203 = vector.shape_cast %202 : vector<1x64x64xf32> to vector<64x64xf32>
    %cst_162 = arith.constant dense<0.000000e+00> : vector<64x1xf32>
    %204 = tpu.matmul %203, %200, %cst_162 {dimension_numbers = #tpu.dot_dimension_numbers<[1], [0], [0], [1], [0, 0, 1, 1], [], []>} : vector<64x64xf32>, vector<64x1xf32>, vector<64x1xf32> -> vector<64x1xf32>
    %c2_163 = arith.constant 2 : index
    %c0_164 = arith.constant 0 : index
    %c0_165 = arith.constant 0 : index
    %205 = vector.load %arg18[%c2_163, %c0_164, %c0_165] : memref<3x64x1xf32, #tpu.memory_space<vmem>>, vector<1x64x1xf32>
    %206 = vector.shape_cast %205 : vector<1x64x1xf32> to vector<64x1xf32>
    %207 = arith.addf %204, %206 : vector<64x1xf32>
    %208 = arith.subf %207, %186 : vector<64x1xf32>
    %209 = vector.broadcast %208 : vector<64x1xf32> to vector<64x128xf32>
    %210 = arith.addf %201, %209 : vector<64x128xf32>
    %c0_166 = arith.constant 0 : index
    %c0_167 = arith.constant 0 : index
    %211 = vector.load %arg19[%c0_166, %c0_167] : memref<64x1xf32, #tpu.memory_space<vmem>>, vector<64x1xf32>
    %212 = vector.broadcast %211 : vector<64x1xf32> to vector<64x128xf32>
    %213 = arith.mulf %210, %212 : vector<64x128xf32>
    %c0_168 = arith.constant 0 : index
    %c0_169 = arith.constant 0 : index
    %214 = vector.load %arg20[%c0_168, %c0_169] : memref<64x1xf32, #tpu.memory_space<vmem>>, vector<64x1xf32>
    %215 = vector.broadcast %214 : vector<64x1xf32> to vector<64x128xf32>
    %216 = arith.addf %213, %215 : vector<64x128xf32>
    %cst_170 = arith.constant 0.000000e+00 : f32
    %217 = vector.broadcast %cst_170 : f32 to vector<64x128xf32>
    %218 = arith.maximumf %216, %217 : vector<64x128xf32>
    %c0_171 = arith.constant 0 : index
    %c0_172 = arith.constant 0 : index
    %219 = vector.load %arg21[%c0_171, %c0_172] : memref<64x64xbf16, #tpu.memory_space<vmem>>, vector<64x64xbf16>
    %220 = arith.truncf %218 : vector<64x128xf32> to vector<64x128xbf16>
    %cst_173 = arith.constant dense<0.000000e+00> : vector<64x128xf32>
    %221 = tpu.matmul %219, %220, %cst_173 {dimension_numbers = #tpu.dot_dimension_numbers<[1], [0], [0], [1], [0, 0, 1, 1], [], []>} : vector<64x64xbf16>, vector<64x128xbf16>, vector<64x128xf32> -> vector<64x128xf32>
    %c0_174 = arith.constant 0 : index
    %c0_175 = arith.constant 0 : index
    %222 = vector.load %arg22[%c0_174, %c0_175] : memref<64x1xf32, #tpu.memory_space<vmem>>, vector<64x1xf32>
    %223 = vector.broadcast %222 : vector<64x1xf32> to vector<64x128xf32>
    %224 = arith.addf %221, %223 : vector<64x128xf32>
    %cst_176 = arith.constant 0.000000e+00 : f32
    %225 = vector.broadcast %cst_176 : f32 to vector<64x128xf32>
    %226 = arith.maximumf %224, %225 : vector<64x128xf32>
    %c0_177 = arith.constant 0 : index
    %c0_178 = arith.constant 0 : index
    %227 = vector.load %arg23[%c0_177, %c0_178] : memref<64x64xbf16, #tpu.memory_space<vmem>>, vector<64x64xbf16>
    %228 = arith.truncf %226 : vector<64x128xf32> to vector<64x128xbf16>
    %cst_179 = arith.constant dense<0.000000e+00> : vector<64x128xf32>
    %229 = tpu.matmul %227, %228, %cst_179 {dimension_numbers = #tpu.dot_dimension_numbers<[1], [0], [0], [1], [0, 0, 1, 1], [], []>} : vector<64x64xbf16>, vector<64x128xbf16>, vector<64x128xf32> -> vector<64x128xf32>
    %c0_180 = arith.constant 0 : index
    %c0_181 = arith.constant 0 : index
    %230 = vector.load %arg24[%c0_180, %c0_181] : memref<64x1xf32, #tpu.memory_space<vmem>>, vector<64x1xf32>
    %231 = vector.broadcast %230 : vector<64x1xf32> to vector<64x128xf32>
    %232 = arith.addf %229, %231 : vector<64x128xf32>
    %cst_182 = arith.constant 0.000000e+00 : f32
    %233 = vector.broadcast %cst_182 : f32 to vector<64x128xf32>
    %234 = arith.maximumf %232, %233 : vector<64x128xf32>
    %c0_183 = arith.constant 0 : index
    %c0_184 = arith.constant 0 : index
    %235 = vector.load %arg25[%c0_183, %c0_184] : memref<1x64xf32, #tpu.memory_space<vmem>>, vector<1x64xf32>
    %cst_185 = arith.constant dense<0.000000e+00> : vector<1x128xf32>
    %236 = tpu.matmul %235, %234, %cst_185 {dimension_numbers = #tpu.dot_dimension_numbers<[1], [0], [0], [1], [0, 0, 1, 1], [], []>} : vector<1x64xf32>, vector<64x128xf32>, vector<1x128xf32> -> vector<1x128xf32>
    %c0_186 = arith.constant 0 : index
    %c0_187 = arith.constant 0 : index
    %237 = vector.load %arg26[%c0_186, %c0_187] : memref<1x1xf32, #tpu.memory_space<vmem>>, vector<1x1xf32>
    %238 = vector.broadcast %237 : vector<1x1xf32> to vector<1x128xf32>
    %239 = arith.addf %236, %238 : vector<1x128xf32>
    %c0_188 = arith.constant 0 : index
    %c0_189 = arith.constant 0 : index
    %c0_190 = arith.constant 0 : index
    %240 = vector.load %arg27[%c0_188, %c0_189, %c0_190] : memref<1x1x128xf32, #tpu.memory_space<vmem>>, vector<1x1x128xf32>
    %241 = vector.shape_cast %240 : vector<1x1x128xf32> to vector<1x128xf32>
    %242 = vector.shape_cast %239 : vector<1x128xf32> to vector<1x1x128xf32>
    tpu.vector_store %arg27[%c0_188, %c0_189, %c0_190], %242 {strides = array<i32>} : memref<1x1x128xf32, #tpu.memory_space<vmem>>, vector<1x1x128xf32>,
    return
  }
  func.func @transform_0(%arg0: i32) -> (i32, i32, i32) {
    %c0_i32 = arith.constant 0 : i32
    %c0_i32_0 = arith.constant 0 : i32
    %c0_i32_1 = arith.constant 0 : i32
    return %arg0, %c0_i32, %c0_i32_0 : i32, i32, i32
  }
  func.func @transform_1(%arg0: i32) -> (i32, i32) {
    %c0_i32 = arith.constant 0 : i32
    %c0_i32_0 = arith.constant 0 : i32
    %c0_i32_1 = arith.constant 0 : i32
    return %c0_i32, %c0_i32_0 : i32, i32
  }
  func.func @transform_2(%arg0: i32) -> (i32, i32) {
    %c0_i32 = arith.constant 0 : i32
    %c0_i32_0 = arith.constant 0 : i32
    %c0_i32_1 = arith.constant 0 : i32
    return %c0_i32, %c0_i32_0 : i32, i32
  }
  func.func @transform_3(%arg0: i32) -> (i32, i32) {
    %c0_i32 = arith.constant 0 : i32
    %c0_i32_0 = arith.constant 0 : i32
    %c0_i32_1 = arith.constant 0 : i32
    return %c0_i32, %c0_i32_0 : i32, i32
  }
  func.func @transform_4(%arg0: i32) -> (i32, i32) {
    %c0_i32 = arith.constant 0 : i32
    %c0_i32_0 = arith.constant 0 : i32
    %c0_i32_1 = arith.constant 0 : i32
    return %c0_i32, %c0_i32_0 : i32, i32
  }
  func.func @transform_5(%arg0: i32) -> (i32, i32, i32) {
    %c0_i32 = arith.constant 0 : i32
    %c0_i32_0 = arith.constant 0 : i32
    %c0_i32_1 = arith.constant 0 : i32
    %c0_i32_2 = arith.constant 0 : i32
    return %c0_i32, %c0_i32_0, %c0_i32_1 : i32, i32, i32
  }
  func.func @transform_6(%arg0: i32) -> (i32, i32, i32) {
    %c0_i32 = arith.constant 0 : i32
    %c0_i32_0 = arith.constant 0 : i32
    %c0_i32_1 = arith.constant 0 : i32
    %c0_i32_2 = arith.constant 0 : i32
    return %c0_i32, %c0_i32_0, %c0_i32_1 : i32, i32, i32
  }
  func.func @transform_7(%arg0: i32) -> (i32, i32, i32) {
    %c0_i32 = arith.constant 0 : i32
    %c0_i32_0 = arith.constant 0 : i32
    %c0_i32_1 = arith.constant 0 : i32
    %c0_i32_2 = arith.constant 0 : i32
    return %c0_i32, %c0_i32_0, %c0_i32_1 : i32, i32, i32
  }
  func.func @transform_8(%arg0: i32) -> (i32, i32, i32) {
    %c0_i32 = arith.constant 0 : i32
    %c0_i32_0 = arith.constant 0 : i32
    %c0_i32_1 = arith.constant 0 : i32
    %c0_i32_2 = arith.constant 0 : i32
    return %c0_i32, %c0_i32_0, %c0_i32_1 : i32, i32, i32
  }
  func.func @transform_9(%arg0: i32) -> (i32, i32, i32) {
    %c0_i32 = arith.constant 0 : i32
    %c0_i32_0 = arith.constant 0 : i32
    %c0_i32_1 = arith.constant 0 : i32
    %c0_i32_2 = arith.constant 0 : i32
    return %c0_i32, %c0_i32_0, %c0_i32_1 : i32, i32, i32
  }
  func.func @transform_10(%arg0: i32) -> (i32, i32, i32) {
    %c0_i32 = arith.constant 0 : i32
    %c0_i32_0 = arith.constant 0 : i32
    %c0_i32_1 = arith.constant 0 : i32
    %c0_i32_2 = arith.constant 0 : i32
    return %c0_i32, %c0_i32_0, %c0_i32_1 : i32, i32, i32
  }
  func.func @transform_11(%arg0: i32) -> (i32, i32, i32) {
    %c0_i32 = arith.constant 0 : i32
    %c0_i32_0 = arith.constant 0 : i32
    %c0_i32_1 = arith.constant 0 : i32
    %c0_i32_2 = arith.constant 0 : i32
    return %c0_i32, %c0_i32_0, %c0_i32_1 : i32, i32, i32
  }
  func.func @transform_12(%arg0: i32) -> (i32, i32, i32) {
    %c0_i32 = arith.constant 0 : i32
    %c0_i32_0 = arith.constant 0 : i32
    %c0_i32_1 = arith.constant 0 : i32
    %c0_i32_2 = arith.constant 0 : i32
    return %c0_i32, %c0_i32_0, %c0_i32_1 : i32, i32, i32
  }
  func.func @transform_13(%arg0: i32) -> (i32, i32, i32) {
    %c0_i32 = arith.constant 0 : i32
    %c0_i32_0 = arith.constant 0 : i32
    %c0_i32_1 = arith.constant 0 : i32
    %c0_i32_2 = arith.constant 0 : i32
    return %c0_i32, %c0_i32_0, %c0_i32_1 : i32, i32, i32
  }
  func.func @transform_14(%arg0: i32) -> (i32, i32, i32) {
    %c0_i32 = arith.constant 0 : i32
    %c0_i32_0 = arith.constant 0 : i32
    %c0_i32_1 = arith.constant 0 : i32
    %c0_i32_2 = arith.constant 0 : i32
    return %c0_i32, %c0_i32_0, %c0_i32_1 : i32, i32, i32
  }
  func.func @transform_15(%arg0: i32) -> (i32, i32, i32) {
    %c0_i32 = arith.constant 0 : i32
    %c0_i32_0 = arith.constant 0 : i32
    %c0_i32_1 = arith.constant 0 : i32
    %c0_i32_2 = arith.constant 0 : i32
    return %c0_i32, %c0_i32_0, %c0_i32_1 : i32, i32, i32
  }
  func.func @transform_16(%arg0: i32) -> (i32, i32, i32) {
    %c0_i32 = arith.constant 0 : i32
    %c0_i32_0 = arith.constant 0 : i32
    %c0_i32_1 = arith.constant 0 : i32
    %c0_i32_2 = arith.constant 0 : i32
    return %c0_i32, %c0_i32_0, %c0_i32_1 : i32, i32, i32
  }
  func.func @transform_17(%arg0: i32) -> (i32, i32, i32) {
    %c0_i32 = arith.constant 0 : i32
    %c0_i32_0 = arith.constant 0 : i32
    %c0_i32_1 = arith.constant 0 : i32
    %c0_i32_2 = arith.constant 0 : i32
    return %c0_i32, %c0_i32_0, %c0_i32_1 : i32, i32, i32
  }
  func.func @transform_18(%arg0: i32) -> (i32, i32) {
    %c0_i32 = arith.constant 0 : i32
    %c0_i32_0 = arith.constant 0 : i32
    %c0_i32_1 = arith.constant 0 : i32
    return %c0_i32, %c0_i32_0 : i32, i32
  }
  func.func @transform_19(%arg0: i32) -> (i32, i32) {
    %c0_i32 = arith.constant 0 : i32
    %c0_i32_0 = arith.constant 0 : i32
    %c0_i32_1 = arith.constant 0 : i32
    return %c0_i32, %c0_i32_0 : i32, i32
  }
  func.func @transform_20(%arg0: i32) -> (i32, i32) {
    %c0_i32 = arith.constant 0 : i32
    %c0_i32_0 = arith.constant 0 : i32
    %c0_i32_1 = arith.constant 0 : i32
    return %c0_i32, %c0_i32_0 : i32, i32
  }
  func.func @transform_21(%arg0: i32) -> (i32, i32) {
    %c0_i32 = arith.constant 0 : i32
    %c0_i32_0 = arith.constant 0 : i32
    %c0_i32_1 = arith.constant 0 : i32
    return %c0_i32, %c0_i32_0 : i32, i32
  }
  func.func @transform_22(%arg0: i32) -> (i32, i32) {
    %c0_i32 = arith.constant 0 : i32
    %c0_i32_0 = arith.constant 0 : i32
    %c0_i32_1 = arith.constant 0 : i32
    return %c0_i32, %c0_i32_0 : i32, i32
  }
  func.func @transform_23(%arg0: i32) -> (i32, i32) {
    %c0_i32 = arith.constant 0 : i32
    %c0_i32_0 = arith.constant 0 : i32
    %c0_i32_1 = arith.constant 0 : i32
    return %c0_i32, %c0_i32_0 : i32, i32
  }
  func.func @transform_24(%arg0: i32) -> (i32, i32) {
    %c0_i32 = arith.constant 0 : i32
    %c0_i32_0 = arith.constant 0 : i32
    %c0_i32_1 = arith.constant 0 : i32
    return %c0_i32, %c0_i32_0 : i32, i32
  }
  func.func @transform_25(%arg0: i32) -> (i32, i32) {
    %c0_i32 = arith.constant 0 : i32
    %c0_i32_0 = arith.constant 0 : i32
    %c0_i32_1 = arith.constant 0 : i32
    return %c0_i32, %c0_i32_0 : i32, i32
  }
  func.func @transform_26(%arg0: i32) -> (i32, i32, i32) {
    %c0_i32 = arith.constant 0 : i32
    %c0_i32_0 = arith.constant 0 : i32
    %c0_i32_1 = arith.constant 0 : i32
    return %arg0, %c0_i32, %c0_i32_0 : i32, i32, i32
  }
}

</mosaic_0001>

<llo_original>
// kernel: tpu_custom_call.1
$region0: #{tpu_custom_call.1}
  #allocation0 [shape = 'u32[]', space=smem, size = 0x4, offset = 0x4, fixed_abs, tag = 'smem constant byte address 0x4 - core index']
  #allocation1 [shape = 'u32[72,128]{1,0:T(1,128)}', space=vmem, size = 0x9000, scoped, tag = 'internal scratch']
  #allocation2 [shape = 'f32[1,1]{1,0:T(1,128)S(1)}', space=vmem, size = 0x200, scoped, tag = 'scoped memory for tpu_custom_call.1']
  %s0 = inlined_call_operand.vmem [shape: f32[2,1,128], index: 0, kind: input, shape index: {}]
  %s1 = inlined_call_operand.vmem [shape: f32[64,1], index: 1, kind: input, shape index: {}]
  %s2 = inlined_call_operand.vmem [shape: f32[64,1], index: 2, kind: input, shape index: {}]
  %s3 = inlined_call_operand.vmem [shape: bf16[64,64], index: 3, kind: input, shape index: {}]
  %s4 = inlined_call_operand.vmem [shape: f32[64,1], index: 4, kind: input, shape index: {}]
  %s5 = inlined_call_operand.vmem [shape: f32[3,64,1], index: 5, kind: input, shape index: {}]
  %s6 = inlined_call_operand.vmem [shape: f32[3,64,1], index: 6, kind: input, shape index: {}]
  %s7 = inlined_call_operand.vmem [shape: bf16[3,32,64], index: 7, kind: input, shape index: {}]
  %s8 = inlined_call_operand.vmem [shape: f32[3,32,1], index: 8, kind: input, shape index: {}]
  %s9 = inlined_call_operand.vmem [shape: bf16[3,64,32], index: 9, kind: input, shape index: {}]
  %s10 = inlined_call_operand.vmem [shape: f32[3,64,1], index: 10, kind: input, shape index: {}]
  %s11 = inlined_call_operand.vmem [shape: f32[3,64,64], index: 11, kind: input, shape index: {}]
  %s12 = inlined_call_operand.vmem [shape: f32[3,64,1], index: 12, kind: input, shape index: {}]
  %s13 = inlined_call_operand.vmem [shape: f32[3,64,64], index: 13, kind: input, shape index: {}]
  %s14 = inlined_call_operand.vmem [shape: f32[3,64,1], index: 14, kind: input, shape index: {}]
  %s15 = inlined_call_operand.vmem [shape: bf16[3,64,64], index: 15, kind: input, shape index: {}]
  %s16 = inlined_call_operand.vmem [shape: f32[3,64,64], index: 16, kind: input, shape index: {}]
  %s17 = inlined_call_operand.vmem [shape: f32[3,64,1], index: 17, kind: input, shape index: {}]
  %s18 = inlined_call_operand.vmem [shape: f32[64,1], index: 18, kind: input, shape index: {}]
  %s19 = inlined_call_operand.vmem [shape: f32[64,1], index: 19, kind: input, shape index: {}]
  %s20 = inlined_call_operand.vmem [shape: bf16[64,64], index: 20, kind: input, shape index: {}]
  %s21 = inlined_call_operand.vmem [shape: f32[64,1], index: 21, kind: input, shape index: {}]
  %s22 = inlined_call_operand.vmem [shape: bf16[64,64], index: 22, kind: input, shape index: {}]
  %s23 = inlined_call_operand.vmem [shape: f32[64,1], index: 23, kind: input, shape index: {}]
  %s24 = inlined_call_operand.vmem [shape: f32[1,64], index: 24, kind: input, shape index: {}]
  %s25 = inlined_call_operand.<no memory space> [shape: f32[1,1], index: 25, kind: input, shape index: {}]
  %s26 = inlined_call_operand.hbm [shape: f32[2,1,128], index: 26, kind: output, shape index: {}]
  %s27 = sld [smem:[#allocation0]]
  $region137: #{tpu_custom_call.1} parent=0
    _
  %s29 = ssub.s32 1, %s27
  %s30 = scalar_select 0, %s29, %s27
  %v31 = vstv %s25
  %32 = vst [vmem:[#allocation2] sm:$0x1] %v31
  $region1: #{tpu_custom_call.1} parent=0
    #allocation3 [shape = 'u8[1024]{0}', space=vmem, size = 0x400, scoped, tag = 'output window, operand 0']
    #allocation4 [shape = 's32[2]{0}', space=sflag, size = 0x8, scoped, tag = 'scoped memory for tpu_custom_call.1']
    %33 = vsyncpa [#allocation4], 0
    %s34 = scalar_lea.sflag [#allocation4], 1
    %35 = vsyncpa %s34, 0
    loop: start=0, step=1, limit=4
    $region2: #{tpu_custom_call.1} parent=1 // loop_pre_header
      _
    $region3: #{tpu_custom_call.1} parent=1 // loop_header
      %s37 = sphi 0, %s41
      %p38 = scmp.ge.s32.totalorder %s37, 4
      %s47 = sphi 0, %s49
      %s50 = sphi 0, %s47
      %s51 = sphi 0, %s50
      %s67 = sphi 0, %s51
      %s71 = sphi 0, %s71
      %s73 = sphi 0, %s71
      %s74 = sphi 0, %s73
      %s88 = sphi 0, %s74
      %s92 = sphi 0, %s92
      %s94 = sphi 0, %s92
      %s95 = sphi 0, %s94
      %s109 = sphi 0, %s95
      %s113 = sphi 0, %s113
      %s115 = sphi 0, %s113
      %s116 = sphi 0, %s115
      %s130 = sphi 0, %s116
      %s134 = sphi 0, %s134
      %s136 = sphi 0, %s134
      %s137 = sphi 0, %s136
      %s151 = sphi 0, %s137
      %s155 = sphi 0, %s155
      %s157 = sphi 0, %s155
      %s158 = sphi 0, %s157
      %s172 = sphi 0, %s158
      %s176 = sphi 0, %s176
      %s178 = sphi 0, %s176
      %s179 = sphi 0, %s178
      %s193 = sphi 0, %s179
      %s197 = sphi 0, %s197
      %s199 = sphi 0, %s197
      %s200 = sphi 0, %s199
      %s214 = sphi 0, %s200
      %s218 = sphi 0, %s218
      %s220 = sphi 0, %s218
      %s221 = sphi 0, %s220
      %s235 = sphi 0, %s221
      %s239 = sphi 0, %s239
      %s241 = sphi 0, %s239
      %s242 = sphi 0, %s241
      %s256 = sphi 0, %s242
      %s260 = sphi 0, %s260
      %s262 = sphi 0, %s260
      %s263 = sphi 0, %s262
      %s277 = sphi 0, %s263
      %s281 = sphi 0, %s281
      %s283 = sphi 0, %s281
      %s284 = sphi 0, %s283
      %s298 = sphi 0, %s284
      %s302 = sphi 0, %s302
      %s304 = sphi 0, %s302
      %s305 = sphi 0, %s304
      %s319 = sphi 0, %s305
      %s323 = sphi 0, %s323
      %s325 = sphi 0, %s323
      %s326 = sphi 0, %s325
      %s340 = sphi 0, %s326
      %s344 = sphi 0, %s344
      %s346 = sphi 0, %s344
      %s347 = sphi 0, %s346
      %s361 = sphi 0, %s347
      %s365 = sphi 0, %s365
      %s367 = sphi 0, %s365
      %s368 = sphi 0, %s367
      %s382 = sphi 0, %s368
      %s386 = sphi 0, %s386
      %s388 = sphi 0, %s386
      %s389 = sphi 0, %s388
      %s403 = sphi 0, %s389
      %s407 = sphi 0, %s407
      %s409 = sphi 0, %s407
      %s410 = sphi 0, %s409
      %s424 = sphi 0, %s410
      %s428 = sphi 0, %s428
      %s430 = sphi 0, %s428
      %s431 = sphi 0, %s430
      %s445 = sphi 0, %s431
      %s449 = sphi 0, %s449
      %s451 = sphi 0, %s449
      %s452 = sphi 0, %s451
      %s466 = sphi 0, %s452
      %s470 = sphi 0, %s470
      %s472 = sphi 0, %s470
      %s473 = sphi 0, %s472
      %s487 = sphi 0, %s473
      %s491 = sphi 0, %s491
      %s493 = sphi 0, %s491
      %s494 = sphi 0, %s493
      %s508 = sphi 0, %s494
      %s512 = sphi 0, %s512
      %s514 = sphi 0, %s512
      %s515 = sphi 0, %s514
      %s529 = sphi 0, %s515
      %s533 = sphi 0, %s533
      %s535 = sphi 0, %s533
      %s536 = sphi 0, %s535
      %s550 = sphi 0, %s536
      %s554 = sphi 0, %s554
      %s556 = sphi 0, %s554
      %s557 = sphi 0, %s556
      %s571 = sphi 0, %s557
      %s575 = sphi 0, %s575
      %s577 = sphi 0, %s575
      %s578 = sphi 0, %s577
      %s592 = sphi 0, %s578
      %s598 = sphi 0, %s600
      %s601 = sphi 0, %s598
      %s602 = sphi 0, %s601
      %s618 = sphi 0, %s602
    $region4: #{tpu_custom_call.1} parent=1 // loop_header_branch
      %40 = sbr.rel (%p38) target = $region8
    $region5: #{tpu_custom_call.1} parent=1 // loop_body
      %s42 = ssub.s32 %s37, 1
      %s43 = ssub.s32 %s37, 2
      %s44 = sadd.s32 %s37, 1
      %s45 = ssub.s32 %s37, %s44
      %p46 = scmp.eq.s32.totalorder %s45, 0
      %s48 = sadd.s32 %s47, 1
      %s49 = scalar_select %p46, %s47, %s48
      %p52 = pneg %p46
      %p53 = scmp.eq.s32.totalorder %s37, 1
      %p54 = por %p52, %p53
      %p55 = scmp.ne.s32.totalorder %s47, %s50
      %p56 = scmp.eq.s32.totalorder %s37, 0
      %p57 = por %p55, %p56
      %p58 = scmp.ne.s32.totalorder %s47, %s50
      %p59 = scmp.eq.s32.totalorder %s42, 1
      %p60 = por %p58, %p59
      %p61 = scmp.ne.s32.totalorder %s50, %s51
      %p62 = scmp.eq.s32.totalorder %s42, 0
      %p63 = por %p61, %p62
      %p64 = scmp.ne.s32.totalorder %s50, %s51
      %p65 = scmp.eq.s32.totalorder %s43, 1
      %p66 = por %p64, %p65
      %p68 = scmp.ne.s32.totalorder %s51, %s67
      %p69 = scmp.eq.s32.totalorder %s43, 0
      %p70 = por %p68, %p69
      %s72 = sadd.s32 %s71, 1
      %p75 = scmp.eq.s32.totalorder %s37, 1
      %p76 = scmp.ne.s32.totalorder %s71, %s73
      %p77 = scmp.eq.s32.totalorder %s37, 0
      %p78 = por %p76, %p77
      %p79 = scmp.ne.s32.totalorder %s71, %s73
      %p80 = scmp.eq.s32.totalorder %s42, 1
      %p81 = por %p79, %p80
      %p82 = scmp.ne.s32.totalorder %s73, %s74
      %p83 = scmp.eq.s32.totalorder %s42, 0
      %p84 = por %p82, %p83
      %p85 = scmp.ne.s32.totalorder %s73, %s74
      %p86 = scmp.eq.s32.totalorder %s43, 1
      %p87 = por %p85, %p86
      %p89 = scmp.ne.s32.totalorder %s74, %s88
      %p90 = scmp.eq.s32.totalorder %s43, 0
      %p91 = por %p89, %p90
      %s93 = sadd.s32 %s92, 1
      %p96 = scmp.eq.s32.totalorder %s37, 1
      %p97 = scmp.ne.s32.totalorder %s92, %s94
      %p98 = scmp.eq.s32.totalorder %s37, 0
      %p99 = por %p97, %p98
      %p100 = scmp.ne.s32.totalorder %s92, %s94
      %p101 = scmp.eq.s32.totalorder %s42, 1
      %p102 = por %p100, %p101
      %p103 = scmp.ne.s32.totalorder %s94, %s95
      %p104 = scmp.eq.s32.totalorder %s42, 0
      %p105 = por %p103, %p104
      %p106 = scmp.ne.s32.totalorder %s94, %s95
      %p107 = scmp.eq.s32.totalorder %s43, 1
      %p108 = por %p106, %p107
      %p110 = scmp.ne.s32.totalorder %s95, %s109
      %p111 = scmp.eq.s32.totalorder %s43, 0
      %p112 = por %p110, %p111
      %s114 = sadd.s32 %s113, 1
      %p117 = scmp.eq.s32.totalorder %s37, 1
      %p118 = scmp.ne.s32.totalorder %s113, %s115
      %p119 = scmp.eq.s32.totalorder %s37, 0
      %p120 = por %p118, %p119
      %p121 = scmp.ne.s32.totalorder %s113, %s115
      %p122 = scmp.eq.s32.totalorder %s42, 1
      %p123 = por %p121, %p122
      %p124 = scmp.ne.s32.totalorder %s115, %s116
      %p125 = scmp.eq.s32.totalorder %s42, 0
      %p126 = por %p124, %p125
      %p127 = scmp.ne.s32.totalorder %s115, %s116
      %p128 = scmp.eq.s32.totalorder %s43, 1
      %p129 = por %p127, %p128
      %p131 = scmp.ne.s32.totalorder %s116, %s130
      %p132 = scmp.eq.s32.totalorder %s43, 0
      %p133 = por %p131, %p132
      %s135 = sadd.s32 %s134, 1
      %p138 = scmp.eq.s32.totalorder %s37, 1
      %p139 = scmp.ne.s32.totalorder %s134, %s136
      %p140 = scmp.eq.s32.totalorder %s37, 0
      %p141 = por %p139, %p140
      %p142 = scmp.ne.s32.totalorder %s134, %s136
      %p143 = scmp.eq.s32.totalorder %s42, 1
      %p144 = por %p142, %p143
      %p145 = scmp.ne.s32.totalorder %s136, %s137
      %p146 = scmp.eq.s32.totalorder %s42, 0
      %p147 = por %p145, %p146
      %p148 = scmp.ne.s32.totalorder %s136, %s137
      %p149 = scmp.eq.s32.totalorder %s43, 1
      %p150 = por %p148, %p149
      %p152 = scmp.ne.s32.totalorder %s137, %s151
      %p153 = scmp.eq.s32.totalorder %s43, 0
      %p154 = por %p152, %p153
      %s156 = sadd.s32 %s155, 1
      %p159 = scmp.eq.s32.totalorder %s37, 1
      %p160 = scmp.ne.s32.totalorder %s155, %s157
      %p161 = scmp.eq.s32.totalorder %s37, 0
      %p162 = por %p160, %p161
      %p163 = scmp.ne.s32.totalorder %s155, %s157
      %p164 = scmp.eq.s32.totalorder %s42, 1
      %p165 = por %p163, %p164
      %p166 = scmp.ne.s32.totalorder %s157, %s158
      %p167 = scmp.eq.s32.totalorder %s42, 0
      %p168 = por %p166, %p167
      %p169 = scmp.ne.s32.totalorder %s157, %s158
      %p170 = scmp.eq.s32.totalorder %s43, 1
      %p171 = por %p169, %p170
      %p173 = scmp.ne.s32.totalorder %s158, %s172
      %p174 = scmp.eq.s32.totalorder %s43, 0
      %p175 = por %p173, %p174
      %s177 = sadd.s32 %s176, 1
      %p180 = scmp.eq.s32.totalorder %s37, 1
      %p181 = scmp.ne.s32.totalorder %s176, %s178
      %p182 = scmp.eq.s32.totalorder %s37, 0
      %p183 = por %p181, %p182
      %p184 = scmp.ne.s32.totalorder %s176, %s178
      %p185 = scmp.eq.s32.totalorder %s42, 1
      %p186 = por %p184, %p185
      %p187 = scmp.ne.s32.totalorder %s178, %s179
      %p188 = scmp.eq.s32.totalorder %s42, 0
      %p189 = por %p187, %p188
      %p190 = scmp.ne.s32.totalorder %s178, %s179
      %p191 = scmp.eq.s32.totalorder %s43, 1
      %p192 = por %p190, %p191
      %p194 = scmp.ne.s32.totalorder %s179, %s193
      %p195 = scmp.eq.s32.totalorder %s43, 0
      %p196 = por %p194, %p195
      %s198 = sadd.s32 %s197, 1
      %p201 = scmp.eq.s32.totalorder %s37, 1
      %p202 = scmp.ne.s32.totalorder %s197, %s199
      %p203 = scmp.eq.s32.totalorder %s37, 0
      %p204 = por %p202, %p203
      %p205 = scmp.ne.s32.totalorder %s197, %s199
      %p206 = scmp.eq.s32.totalorder %s42, 1
      %p207 = por %p205, %p206
      %p208 = scmp.ne.s32.totalorder %s199, %s200
      %p209 = scmp.eq.s32.totalorder %s42, 0
      %p210 = por %p208, %p209
      %p211 = scmp.ne.s32.totalorder %s199, %s200
      %p212 = scmp.eq.s32.totalorder %s43, 1
      %p213 = por %p211, %p212
      %p215 = scmp.ne.s32.totalorder %s200, %s214
      %p216 = scmp.eq.s32.totalorder %s43, 0
      %p217 = por %p215, %p216
      %s219 = sadd.s32 %s218, 1
      %p222 = scmp.eq.s32.totalorder %s37, 1
      %p223 = scmp.ne.s32.totalorder %s218, %s220
      %p224 = scmp.eq.s32.totalorder %s37, 0
      %p225 = por %p223, %p224
      %p226 = scmp.ne.s32.totalorder %s218, %s220
      %p227 = scmp.eq.s32.totalorder %s42, 1
      %p228 = por %p226, %p227
      %p229 = scmp.ne.s32.totalorder %s220, %s221
      %p230 = scmp.eq.s32.totalorder %s42, 0
      %p231 = por %p229, %p230
      %p232 = scmp.ne.s32.totalorder %s220, %s221
      %p233 = scmp.eq.s32.totalorder %s43, 1
      %p234 = por %p232, %p233
      %p236 = scmp.ne.s32.totalorder %s221, %s235
      %p237 = scmp.eq.s32.totalorder %s43, 0
      %p238 = por %p236, %p237
      %s240 = sadd.s32 %s239, 1
      %p243 = scmp.eq.s32.totalorder %s37, 1
      %p244 = scmp.ne.s32.totalorder %s239, %s241
      %p245 = scmp.eq.s32.totalorder %s37, 0
      %p246 = por %p244, %p245
      %p247 = scmp.ne.s32.totalorder %s239, %s241
      %p248 = scmp.eq.s32.totalorder %s42, 1
      %p249 = por %p247, %p248
      %p250 = scmp.ne.s32.totalorder %s241, %s242
      %p251 = scmp.eq.s32.totalorder %s42, 0
      %p252 = por %p250, %p251
      %p253 = scmp.ne.s32.totalorder %s241, %s242
      %p254 = scmp.eq.s32.totalorder %s43, 1
      %p255 = por %p253, %p254
      %p257 = scmp.ne.s32.totalorder %s242, %s256
      %p258 = scmp.eq.s32.totalorder %s43, 0
      %p259 = por %p257, %p258
      %s261 = sadd.s32 %s260, 1
      %p264 = scmp.eq.s32.totalorder %s37, 1
      %p265 = scmp.ne.s32.totalorder %s260, %s262
      %p266 = scmp.eq.s32.totalorder %s37, 0
      %p267 = por %p265, %p266
      %p268 = scmp.ne.s32.totalorder %s260, %s262
      %p269 = scmp.eq.s32.totalorder %s42, 1
      %p270 = por %p268, %p269
      %p271 = scmp.ne.s32.totalorder %s262, %s263
      %p272 = scmp.eq.s32.totalorder %s42, 0
      %p273 = por %p271, %p272
      %p274 = scmp.ne.s32.totalorder %s262, %s263
      %p275 = scmp.eq.s32.totalorder %s43, 1
      %p276 = por %p274, %p275
      %p278 = scmp.ne.s32.totalorder %s263, %s277
      %p279 = scmp.eq.s32.totalorder %s43, 0
      %p280 = por %p278, %p279
      %s282 = sadd.s32 %s281, 1
      %p285 = scmp.eq.s32.totalorder %s37, 1
      %p286 = scmp.ne.s32.totalorder %s281, %s283
      %p287 = scmp.eq.s32.totalorder %s37, 0
      %p288 = por %p286, %p287
      %p289 = scmp.ne.s32.totalorder %s281, %s283
      %p290 = scmp.eq.s32.totalorder %s42, 1
      %p291 = por %p289, %p290
      %p292 = scmp.ne.s32.totalorder %s283, %s284
      %p293 = scmp.eq.s32.totalorder %s42, 0
      %p294 = por %p292, %p293
      %p295 = scmp.ne.s32.totalorder %s283, %s284
      %p296 = scmp.eq.s32.totalorder %s43, 1
      %p297 = por %p295, %p296
      %p299 = scmp.ne.s32.totalorder %s284, %s298
      %p300 = scmp.eq.s32.totalorder %s43, 0
      %p301 = por %p299, %p300
      %s303 = sadd.s32 %s302, 1
      %p306 = scmp.eq.s32.totalorder %s37, 1
      %p307 = scmp.ne.s32.totalorder %s302, %s304
      %p308 = scmp.eq.s32.totalorder %s37, 0
      %p309 = por %p307, %p308
      %p310 = scmp.ne.s32.totalorder %s302, %s304
      %p311 = scmp.eq.s32.totalorder %s42, 1
      %p312 = por %p310, %p311
      %p313 = scmp.ne.s32.totalorder %s304, %s305
      %p314 = scmp.eq.s32.totalorder %s42, 0
      %p315 = por %p313, %p314
      %p316 = scmp.ne.s32.totalorder %s304, %s305
      %p317 = scmp.eq.s32.totalorder %s43, 1
      %p318 = por %p316, %p317
      %p320 = scmp.ne.s32.totalorder %s305, %s319
      %p321 = scmp.eq.s32.totalorder %s43, 0
      %p322 = por %p320, %p321
      %s324 = sadd.s32 %s323, 1
      %p327 = scmp.eq.s32.totalorder %s37, 1
      %p328 = scmp.ne.s32.totalorder %s323, %s325
      %p329 = scmp.eq.s32.totalorder %s37, 0
      %p330 = por %p328, %p329
      %p331 = scmp.ne.s32.totalorder %s323, %s325
      %p332 = scmp.eq.s32.totalorder %s42, 1
      %p333 = por %p331, %p332
      %p334 = scmp.ne.s32.totalorder %s325, %s326
      %p335 = scmp.eq.s32.totalorder %s42, 0
      %p336 = por %p334, %p335
      %p337 = scmp.ne.s32.totalorder %s325, %s326
      %p338 = scmp.eq.s32.totalorder %s43, 1
      %p339 = por %p337, %p338
      %p341 = scmp.ne.s32.totalorder %s326, %s340
      %p342 = scmp.eq.s32.totalorder %s43, 0
      %p343 = por %p341, %p342
      %s345 = sadd.s32 %s344, 1
      %p348 = scmp.eq.s32.totalorder %s37, 1
      %p349 = scmp.ne.s32.totalorder %s344, %s346
      %p350 = scmp.eq.s32.totalorder %s37, 0
      %p351 = por %p349, %p350
      %p352 = scmp.ne.s32.totalorder %s344, %s346
      %p353 = scmp.eq.s32.totalorder %s42, 1
      %p354 = por %p352, %p353
      %p355 = scmp.ne.s32.totalorder %s346, %s347
      %p356 = scmp.eq.s32.totalorder %s42, 0
      %p357 = por %p355, %p356
      %p358 = scmp.ne.s32.totalorder %s346, %s347
      %p359 = scmp.eq.s32.totalorder %s43, 1
      %p360 = por %p358, %p359
      %p362 = scmp.ne.s32.totalorder %s347, %s361
      %p363 = scmp.eq.s32.totalorder %s43, 0
      %p364 = por %p362, %p363
      %s366 = sadd.s32 %s365, 1
      %p369 = scmp.eq.s32.totalorder %s37, 1
      %p370 = scmp.ne.s32.totalorder %s365, %s367
      %p371 = scmp.eq.s32.totalorder %s37, 0
      %p372 = por %p370, %p371
      %p373 = scmp.ne.s32.totalorder %s365, %s367
      %p374 = scmp.eq.s32.totalorder %s42, 1
      %p375 = por %p373, %p374
      %p376 = scmp.ne.s32.totalorder %s367, %s368
      %p377 = scmp.eq.s32.totalorder %s42, 0
      %p378 = por %p376, %p377
      %p379 = scmp.ne.s32.totalorder %s367, %s368
      %p380 = scmp.eq.s32.totalorder %s43, 1
      %p381 = por %p379, %p380
      %p383 = scmp.ne.s32.totalorder %s368, %s382
      %p384 = scmp.eq.s32.totalorder %s43, 0
      %p385 = por %p383, %p384
      %s387 = sadd.s32 %s386, 1
      %p390 = scmp.eq.s32.totalorder %s37, 1
      %p391 = scmp.ne.s32.totalorder %s386, %s388
      %p392 = scmp.eq.s32.totalorder %s37, 0
      %p393 = por %p391, %p392
      %p394 = scmp.ne.s32.totalorder %s386, %s388
      %p395 = scmp.eq.s32.totalorder %s42, 1
      %p396 = por %p394, %p395
      %p397 = scmp.ne.s32.totalorder %s388, %s389
      %p398 = scmp.eq.s32.totalorder %s42, 0
      %p399 = por %p397, %p398
      %p400 = scmp.ne.s32.totalorder %s388, %s389
      %p401 = scmp.eq.s32.totalorder %s43, 1
      %p402 = por %p400, %p401
      %p404 = scmp.ne.s32.totalorder %s389, %s403
      %p405 = scmp.eq.s32.totalorder %s43, 0
      %p406 = por %p404, %p405
      %s408 = sadd.s32 %s407, 1
      %p411 = scmp.eq.s32.totalorder %s37, 1
      %p412 = scmp.ne.s32.totalorder %s407, %s409
      %p413 = scmp.eq.s32.totalorder %s37, 0
      %p414 = por %p412, %p413
      %p415 = scmp.ne.s32.totalorder %s407, %s409
      %p416 = scmp.eq.s32.totalorder %s42, 1
      %p417 = por %p415, %p416
      %p418 = scmp.ne.s32.totalorder %s409, %s410
      %p419 = scmp.eq.s32.totalorder %s42, 0
      %p420 = por %p418, %p419
      %p421 = scmp.ne.s32.totalorder %s409, %s410
      %p422 = scmp.eq.s32.totalorder %s43, 1
      %p423 = por %p421, %p422
      %p425 = scmp.ne.s32.totalorder %s410, %s424
      %p426 = scmp.eq.s32.totalorder %s43, 0
      %p427 = por %p425, %p426
      %s429 = sadd.s32 %s428, 1
      %p432 = scmp.eq.s32.totalorder %s37, 1
      %p433 = scmp.ne.s32.totalorder %s428, %s430
      %p434 = scmp.eq.s32.totalorder %s37, 0
      %p435 = por %p433, %p434
      %p436 = scmp.ne.s32.totalorder %s428, %s430
      %p437 = scmp.eq.s32.totalorder %s42, 1
      %p438 = por %p436, %p437
      %p439 = scmp.ne.s32.totalorder %s430, %s431
      %p440 = scmp.eq.s32.totalorder %s42, 0
      %p441 = por %p439, %p440
      %p442 = scmp.ne.s32.totalorder %s430, %s431
      %p443 = scmp.eq.s32.totalorder %s43, 1
      %p444 = por %p442, %p443
      %p446 = scmp.ne.s32.totalorder %s431, %s445
      %p447 = scmp.eq.s32.totalorder %s43, 0
      %p448 = por %p446, %p447
      %s450 = sadd.s32 %s449, 1
      %p453 = scmp.eq.s32.totalorder %s37, 1
      %p454 = scmp.ne.s32.totalorder %s449, %s451
      %p455 = scmp.eq.s32.totalorder %s37, 0
      %p456 = por %p454, %p455
      %p457 = scmp.ne.s32.totalorder %s449, %s451
      %p458 = scmp.eq.s32.totalorder %s42, 1
      %p459 = por %p457, %p458
      %p460 = scmp.ne.s32.totalorder %s451, %s452
      %p461 = scmp.eq.s32.totalorder %s42, 0
      %p462 = por %p460, %p461
      %p463 = scmp.ne.s32.totalorder %s451, %s452
      %p464 = scmp.eq.s32.totalorder %s43, 1
      %p465 = por %p463, %p464
      %p467 = scmp.ne.s32.totalorder %s452, %s466
      %p468 = scmp.eq.s32.totalorder %s43, 0
      %p469 = por %p467, %p468
      %s471 = sadd.s32 %s470, 1
      %p474 = scmp.eq.s32.totalorder %s37, 1
      %p475 = scmp.ne.s32.totalorder %s470, %s472
      %p476 = scmp.eq.s32.totalorder %s37, 0
      %p477 = por %p475, %p476
      %p478 = scmp.ne.s32.totalorder %s470, %s472
      %p479 = scmp.eq.s32.totalorder %s42, 1
      %p480 = por %p478, %p479
      %p481 = scmp.ne.s32.totalorder %s472, %s473
      %p482 = scmp.eq.s32.totalorder %s42, 0
      %p483 = por %p481, %p482
      %p484 = scmp.ne.s32.totalorder %s472, %s473
      %p485 = scmp.eq.s32.totalorder %s43, 1
      %p486 = por %p484, %p485
      %p488 = scmp.ne.s32.totalorder %s473, %s487
      %p489 = scmp.eq.s32.totalorder %s43, 0
      %p490 = por %p488, %p489
      %s492 = sadd.s32 %s491, 1
      %p495 = scmp.eq.s32.totalorder %s37, 1
      %p496 = scmp.ne.s32.totalorder %s491, %s493
      %p497 = scmp.eq.s32.totalorder %s37, 0
      %p498 = por %p496, %p497
      %p499 = scmp.ne.s32.totalorder %s491, %s493
      %p500 = scmp.eq.s32.totalorder %s42, 1
      %p501 = por %p499, %p500
      %p502 = scmp.ne.s32.totalorder %s493, %s494
      %p503 = scmp.eq.s32.totalorder %s42, 0
      %p504 = por %p502, %p503
      %p505 = scmp.ne.s32.totalorder %s493, %s494
      %p506 = scmp.eq.s32.totalorder %s43, 1
      %p507 = por %p505, %p506
      %p509 = scmp.ne.s32.totalorder %s494, %s508
      %p510 = scmp.eq.s32.totalorder %s43, 0
      %p511 = por %p509, %p510
      %s513 = sadd.s32 %s512, 1
      %p516 = scmp.eq.s32.totalorder %s37, 1
      %p517 = scmp.ne.s32.totalorder %s512, %s514
      %p518 = scmp.eq.s32.totalorder %s37, 0
      %p519 = por %p517, %p518
      %p520 = scmp.ne.s32.totalorder %s512, %s514
      %p521 = scmp.eq.s32.totalorder %s42, 1
      %p522 = por %p520, %p521
      %p523 = scmp.ne.s32.totalorder %s514, %s515
      %p524 = scmp.eq.s32.totalorder %s42, 0
      %p525 = por %p523, %p524
      %p526 = scmp.ne.s32.totalorder %s514, %s515
      %p527 = scmp.eq.s32.totalorder %s43, 1
      %p528 = por %p526, %p527
      %p530 = scmp.ne.s32.totalorder %s515, %s529
      %p531 = scmp.eq.s32.totalorder %s43, 0
      %p532 = por %p530, %p531
      %s534 = sadd.s32 %s533, 1
      %p537 = scmp.eq.s32.totalorder %s37, 1
      %p538 = scmp.ne.s32.totalorder %s533, %s535
      %p539 = scmp.eq.s32.totalorder %s37, 0
      %p540 = por %p538, %p539
      %p541 = scmp.ne.s32.totalorder %s533, %s535
      %p542 = scmp.eq.s32.totalorder %s42, 1
      %p543 = por %p541, %p542
      %p544 = scmp.ne.s32.totalorder %s535, %s536
      %p545 = scmp.eq.s32.totalorder %s42, 0
      %p546 = por %p544, %p545
      %p547 = scmp.ne.s32.totalorder %s535, %s536
      %p548 = scmp.eq.s32.totalorder %s43, 1
      %p549 = por %p547, %p548
      %p551 = scmp.ne.s32.totalorder %s536, %s550
      %p552 = scmp.eq.s32.totalorder %s43, 0
      %p553 = por %p551, %p552
      %s555 = sadd.s32 %s554, 1
      %p558 = scmp.eq.s32.totalorder %s37, 1
      %p559 = scmp.ne.s32.totalorder %s554, %s556
      %p560 = scmp.eq.s32.totalorder %s37, 0
      %p561 = por %p559, %p560
      %p562 = scmp.ne.s32.totalorder %s554, %s556
      %p563 = scmp.eq.s32.totalorder %s42, 1
      %p564 = por %p562, %p563
      %p565 = scmp.ne.s32.totalorder %s556, %s557
      %p566 = scmp.eq.s32.totalorder %s42, 0
      %p567 = por %p565, %p566
      %p568 = scmp.ne.s32.totalorder %s556, %s557
      %p569 = scmp.eq.s32.totalorder %s43, 1
      %p570 = por %p568, %p569
      %p572 = scmp.ne.s32.totalorder %s557, %s571
      %p573 = scmp.eq.s32.totalorder %s43, 0
      %p574 = por %p572, %p573
      %s576 = sadd.s32 %s575, 1
      %p579 = scmp.eq.s32.totalorder %s37, 1
      %p580 = scmp.ne.s32.totalorder %s575, %s577
      %p581 = scmp.eq.s32.totalorder %s37, 0
      %p582 = por %p580, %p581
      %p583 = scmp.ne.s32.totalorder %s575, %s577
      %p584 = scmp.eq.s32.totalorder %s42, 1
      %p585 = por %p583, %p584
      %p586 = scmp.ne.s32.totalorder %s577, %s578
      %p587 = scmp.eq.s32.totalorder %s42, 0
      %p588 = por %p586, %p587
      %p589 = scmp.ne.s32.totalorder %s577, %s578
      %p590 = scmp.eq.s32.totalorder %s43, 1
      %p591 = por %p589, %p590
      %p593 = scmp.ne.s32.totalorder %s578, %s592
      %p594 = scmp.eq.s32.totalorder %s43, 0
      %p595 = por %p593, %p594
      %s596 = ssub.s32 %s37, %s44
      %p597 = scmp.eq.s32.totalorder %s596, 0
      %s599 = sadd.s32 %s598, 1
      %s600 = scalar_select %p597, %s598, %s599
      %p603 = pneg %p597
      %p604 = scmp.eq.s32.totalorder %s37, 1
      %p605 = por %p603, %p604
      %p606 = scmp.ne.s32.totalorder %s598, %s601
      %p607 = scmp.eq.s32.totalorder %s37, 0
      %p608 = por %p606, %p607
      %p609 = scmp.ne.s32.totalorder %s598, %s601
      %p610 = scmp.eq.s32.totalorder %s42, 1
      %p611 = por %p609, %p610
      %p612 = scmp.ne.s32.totalorder %s601, %s602
      %p613 = scmp.eq.s32.totalorder %s42, 0
      %p614 = por %p612, %p613
      %p615 = scmp.ne.s32.totalorder %s601, %s602
      %p616 = scmp.eq.s32.totalorder %s43, 1
      %p617 = por %p615, %p616
      %p619 = scmp.ne.s32.totalorder %s602, %s618
      %p620 = scmp.eq.s32.totalorder %s43, 0
      %p621 = por %p619, %p620
      %p622 = scmp.le.s32.totalorder 1, %s37
      %p623 = scmp.lt.s32.totalorder %s37, 3
      %p624 = pnand %p622, %p623
      %p625 = pneg %p624
      // Predicated region
      $region9: #{tpu_custom_call.1} parent=5 // pred_check
        _
      $region10: #{tpu_custom_call.1} parent=5 // pred_check_branch
        %627 = sbr.rel (%p624) target = $region12
      $region11: #{tpu_custom_call.1} parent=5 // pred_region
        %s628 = ssub.s32 %s37, 1
        // Predicated region
        $region13: #{tpu_custom_call.1} parent=11 // pred_check
          %p629 = pneg %p84
        $region14: #{tpu_custom_call.1} parent=11 // pred_check_branch
          %631 = sbr.rel (%p629) target = $region16
        $region15: #{tpu_custom_call.1} parent=11 // pred_region
          _
        $region16: #{tpu_custom_call.1} parent=11 // pred_fallthru
          _
        // Predicated region
        $region17: #{tpu_custom_call.1} parent=11 // pred_check
          %p632 = pneg %p105
        $region18: #{tpu_custom_call.1} parent=11 // pred_check_branch
          %634 = sbr.rel (%p632) target = $region20
        $region19: #{tpu_custom_call.1} parent=11 // pred_region
          _
        $region20: #{tpu_custom_call.1} parent=11 // pred_fallthru
          _
        // Predicated region
        $region21: #{tpu_custom_call.1} parent=11 // pred_check
          %p635 = pneg %p126
        $region22: #{tpu_custom_call.1} parent=11 // pred_check_branch
          %637 = sbr.rel (%p635) target = $region24
        $region23: #{tpu_custom_call.1} parent=11 // pred_region
          _
        $region24: #{tpu_custom_call.1} parent=11 // pred_fallthru
          _
        // Predicated region
        $region25: #{tpu_custom_call.1} parent=11 // pred_check
          %p638 = pneg %p147
        $region26: #{tpu_custom_call.1} parent=11 // pred_check_branch
          %640 = sbr.rel (%p638) target = $region28
        $region27: #{tpu_custom_call.1} parent=11 // pred_region
          _
        $region28: #{tpu_custom_call.1} parent=11 // pred_fallthru
          _
        // Predicated region
        $region29: #{tpu_custom_call.1} parent=11 // pred_check
          %p641 = pneg %p168
        $region30: #{tpu_custom_call.1} parent=11 // pred_check_branch
          %643 = sbr.rel (%p641) target = $region32
        $region31: #{tpu_custom_call.1} parent=11 // pred_region
          _
        $region32: #{tpu_custom_call.1} parent=11 // pred_fallthru
          _
        // Predicated region
        $region33: #{tpu_custom_call.1} parent=11 // pred_check
          %p644 = pneg %p189
        $region34: #{tpu_custom_call.1} parent=11 // pred_check_branch
          %646 = sbr.rel (%p644) target = $region36
        $region35: #{tpu_custom_call.1} parent=11 // pred_region
          _
        $region36: #{tpu_custom_call.1} parent=11 // pred_fallthru
          _
        // Predicated region
        $region37: #{tpu_custom_call.1} parent=11 // pred_check
          %p647 = pneg %p210
        $region38: #{tpu_custom_call.1} parent=11 // pred_check_branch
          %649 = sbr.rel (%p647) target = $region40
        $region39: #{tpu_custom_call.1} parent=11 // pred_region
          _
        $region40: #{tpu_custom_call.1} parent=11 // pred_fallthru
          _
        // Predicated region
        $region41: #{tpu_custom_call.1} parent=11 // pred_check
          %p650 = pneg %p231
        $region42: #{tpu_custom_call.1} parent=11 // pred_check_branch
          %652 = sbr.rel (%p650) target = $region44
        $region43: #{tpu_custom_call.1} parent=11 // pred_region
          _
        $region44: #{tpu_custom_call.1} parent=11 // pred_fallthru
          _
        // Predicated region
        $region45: #{tpu_custom_call.1} parent=11 // pred_check
          %p653 = pneg %p252
        $region46: #{tpu_custom_call.1} parent=11 // pred_check_branch
          %655 = sbr.rel (%p653) target = $region48
        $region47: #{tpu_custom_call.1} parent=11 // pred_region
          _
        $region48: #{tpu_custom_call.1} parent=11 // pred_fallthru
          _
        // Predicated region
        $region49: #{tpu_custom_call.1} parent=11 // pred_check
          %p656 = pneg %p273
        $region50: #{tpu_custom_call.1} parent=11 // pred_check_branch
          %658 = sbr.rel (%p656) target = $region52
        $region51: #{tpu_custom_call.1} parent=11 // pred_region
          _
        $region52: #{tpu_custom_call.1} parent=11 // pred_fallthru
          _
        // Predicated region
        $region53: #{tpu_custom_call.1} parent=11 // pred_check
          %p659 = pneg %p294
        $region54: #{tpu_custom_call.1} parent=11 // pred_check_branch
          %661 = sbr.rel (%p659) target = $region56
        $region55: #{tpu_custom_call.1} parent=11 // pred_region
          _
        $region56: #{tpu_custom_call.1} parent=11 // pred_fallthru
          _
        // Predicated region
        $region57: #{tpu_custom_call.1} parent=11 // pred_check
          %p662 = pneg %p315
        $region58: #{tpu_custom_call.1} parent=11 // pred_check_branch
          %664 = sbr.rel (%p662) target = $region60
        $region59: #{tpu_custom_call.1} parent=11 // pred_region
          _
        $region60: #{tpu_custom_call.1} parent=11 // pred_fallthru
          _
        // Predicated region
        $region61: #{tpu_custom_call.1} parent=11 // pred_check
          %p665 = pneg %p336
        $region62: #{tpu_custom_call.1} parent=11 // pred_check_branch
          %667 = sbr.rel (%p665) target = $region64
        $region63: #{tpu_custom_call.1} parent=11 // pred_region
          _
        $region64: #{tpu_custom_call.1} parent=11 // pred_fallthru
          _
        // Predicated region
        $region65: #{tpu_custom_call.1} parent=11 // pred_check
          %p668 = pneg %p357
        $region66: #{tpu_custom_call.1} parent=11 // pred_check_branch
          %670 = sbr.rel (%p668) target = $region68
        $region67: #{tpu_custom_call.1} parent=11 // pred_region
          _
        $region68: #{tpu_custom_call.1} parent=11 // pred_fallthru
          _
        // Predicated region
        $region69: #{tpu_custom_call.1} parent=11 // pred_check
          %p671 = pneg %p378
        $region70: #{tpu_custom_call.1} parent=11 // pred_check_branch
          %673 = sbr.rel (%p671) target = $region72
        $region71: #{tpu_custom_call.1} parent=11 // pred_region
          _
        $region72: #{tpu_custom_call.1} parent=11 // pred_fallthru
          _
        // Predicated region
        $region73: #{tpu_custom_call.1} parent=11 // pred_check
          %p674 = pneg %p399
        $region74: #{tpu_custom_call.1} parent=11 // pred_check_branch
          %676 = sbr.rel (%p674) target = $region76
        $region75: #{tpu_custom_call.1} parent=11 // pred_region
          _
        $region76: #{tpu_custom_call.1} parent=11 // pred_fallthru
          _
        // Predicated region
        $region77: #{tpu_custom_call.1} parent=11 // pred_check
          %p677 = pneg %p420
        $region78: #{tpu_custom_call.1} parent=11 // pred_check_branch
          %679 = sbr.rel (%p677) target = $region80
        $region79: #{tpu_custom_call.1} parent=11 // pred_region
          _
        $region80: #{tpu_custom_call.1} parent=11 // pred_fallthru
          _
        // Predicated region
        $region81: #{tpu_custom_call.1} parent=11 // pred_check
          %p680 = pneg %p441
        $region82: #{tpu_custom_call.1} parent=11 // pred_check_branch
          %682 = sbr.rel (%p680) target = $region84
        $region83: #{tpu_custom_call.1} parent=11 // pred_region
          _
        $region84: #{tpu_custom_call.1} parent=11 // pred_fallthru
          _
        // Predicated region
        $region85: #{tpu_custom_call.1} parent=11 // pred_check
          %p683 = pneg %p462
        $region86: #{tpu_custom_call.1} parent=11 // pred_check_branch
          %685 = sbr.rel (%p683) target = $region88
        $region87: #{tpu_custom_call.1} parent=11 // pred_region
          _
        $region88: #{tpu_custom_call.1} parent=11 // pred_fallthru
          _
        // Predicated region
        $region89: #{tpu_custom_call.1} parent=11 // pred_check
          %p686 = pneg %p483
        $region90: #{tpu_custom_call.1} parent=11 // pred_check_branch
          %688 = sbr.rel (%p686) target = $region92
        $region91: #{tpu_custom_call.1} parent=11 // pred_region
          _
        $region92: #{tpu_custom_call.1} parent=11 // pred_fallthru
          _
        // Predicated region
        $region93: #{tpu_custom_call.1} parent=11 // pred_check
          %p689 = pneg %p504
        $region94: #{tpu_custom_call.1} parent=11 // pred_check_branch
          %691 = sbr.rel (%p689) target = $region96
        $region95: #{tpu_custom_call.1} parent=11 // pred_region
          _
        $region96: #{tpu_custom_call.1} parent=11 // pred_fallthru
          _
        // Predicated region
        $region97: #{tpu_custom_call.1} parent=11 // pred_check
          %p692 = pneg %p525
        $region98: #{tpu_custom_call.1} parent=11 // pred_check_branch
          %694 = sbr.rel (%p692) target = $region100
        $region99: #{tpu_custom_call.1} parent=11 // pred_region
          _
        $region100: #{tpu_custom_call.1} parent=11 // pred_fallthru
          _
        // Predicated region
        $region101: #{tpu_custom_call.1} parent=11 // pred_check
          %p695 = pneg %p546
        $region102: #{tpu_custom_call.1} parent=11 // pred_check_branch
          %697 = sbr.rel (%p695) target = $region104
        $region103: #{tpu_custom_call.1} parent=11 // pred_region
          _
        $region104: #{tpu_custom_call.1} parent=11 // pred_fallthru
          _
        // Predicated region
        $region105: #{tpu_custom_call.1} parent=11 // pred_check
          %p698 = pneg %p567
        $region106: #{tpu_custom_call.1} parent=11 // pred_check_branch
          %700 = sbr.rel (%p698) target = $region108
        $region107: #{tpu_custom_call.1} parent=11 // pred_region
          _
        $region108: #{tpu_custom_call.1} parent=11 // pred_fallthru
          _
        // Predicated region
        $region109: #{tpu_custom_call.1} parent=11 // pred_check
          %p701 = pneg %p588
        $region110: #{tpu_custom_call.1} parent=11 // pred_check_branch
          %703 = sbr.rel (%p701) target = $region112
        $region111: #{tpu_custom_call.1} parent=11 // pred_region
          _
        $region112: #{tpu_custom_call.1} parent=11 // pred_fallthru
          _
      $region12: #{tpu_custom_call.1} parent=5 // pred_fallthru
        _
      %p704 = scmp.lt.s32.totalorder %s37, 2
      // Predicated region
      $region113: #{tpu_custom_call.1} parent=5 // pred_check
        %p705 = pneg %p704
      $region114: #{tpu_custom_call.1} parent=5 // pred_check_branch
        %707 = sbr.rel (%p705) target = $region116
      $region115: #{tpu_custom_call.1} parent=5 // pred_region
        // Predicated region
        $region117: #{tpu_custom_call.1} parent=115 // pred_check
          %p708 = pneg %p57
        $region118: #{tpu_custom_call.1} parent=115 // pred_check_branch
          %710 = sbr.rel (%p708) target = $region120
        $region119: #{tpu_custom_call.1} parent=115 // pred_region
          %p711 = scmp.lt.s32.totalorder %s37, 1
          %s712 = scalar_select %p711, %s37, 1
          %s713 = scalar_lea.vmem %s0, %s712
        $region120: #{tpu_custom_call.1} parent=115 // pred_fallthru
          _
      $region116: #{tpu_custom_call.1} parent=5 // pred_fallthru
        _
      %p714 = scmp.le.s32.totalorder 1, %s37
      %p715 = scmp.lt.s32.totalorder %s37, 3
      %p716 = pnand %p714, %p715
      %p717 = pneg %p716
      // Predicated region
      $region121: #{tpu_custom_call.1} parent=5 // pred_check
        _
      $region122: #{tpu_custom_call.1} parent=5 // pred_check_branch
        %719 = sbr.rel (%p716) target = $region124
      $region123: #{tpu_custom_call.1} parent=5 // pred_region
        %s720 = ssub.s32 %s37, 1
        %p721 = scmp.lt.s32.totalorder %s42, 1
        %s722 = scalar_select %p721, %s42, 1
        %s723 = scalar_lea.vmem %s0, %s722
        %p724 = pneg %p63
        %p725 = pneg %p60
        %p726 = pneg %p84
        %p727 = pneg %p81
        %p728 = pneg %p105
        %p729 = pneg %p102
        %p730 = pneg %p126
        %p731 = pneg %p123
        %p732 = pneg %p147
        %p733 = pneg %p144
        %p734 = pneg %p168
        %p735 = pneg %p165
        %p736 = pneg %p189
        %p737 = pneg %p186
        %p738 = pneg %p210
        %p739 = pneg %p207
        %p740 = pneg %p231
        %p741 = pneg %p228
        %p742 = pneg %p252
        %p743 = pneg %p249
        %p744 = pneg %p273
        %p745 = pneg %p270
        %p746 = pneg %p294
        %p747 = pneg %p291
        %p748 = pneg %p315
        %p749 = pneg %p312
        %p750 = pneg %p336
        %p751 = pneg %p333
        %p752 = pneg %p357
        %p753 = pneg %p354
        %p754 = pneg %p378
        %p755 = pneg %p375
        %p756 = pneg %p399
        %p757 = pneg %p396
        %p758 = pneg %p420
        %p759 = pneg %p417
        %p760 = pneg %p441
        %p761 = pneg %p438
        %p762 = pneg %p462
        %p763 = pneg %p459
        %p764 = pneg %p483
        %p765 = pneg %p480
        %p766 = pneg %p504
        %p767 = pneg %p501
        %p768 = pneg %p525
        %p769 = pneg %p522
        %p770 = pneg %p546
        %p771 = pneg %p543
        %p772 = pneg %p567
        %p773 = pneg %p564
        %p774 = pneg %p588
        %p775 = pneg %p585
        %p776 = pneg %p614
        %p777 = pneg %p611
        %s778 = sand.u32 %s601, 1
        %s779 = scalar_lea.sflag [#allocation4], %s778
        %s780 = sand.u32 %s601, 1
        %s781 = scalar_lea.vmem [#allocation3], %s780
        %p782 = scmp.lt.s32.totalorder %s42, 1
        %s783 = scalar_select %p782, %s42, 1
        %s784 = scalar_lea.vmem %s0, %s783
        %v786 = vld [vmem:[%s784] sm:$0x1]
        %v787 = vld [vmem:[%s1] sm:$0xff]
        %v788 = vld [vmem:[%s1 + $0x8] sm:$0xff]
        %v789 = vld [vmem:[%s1 + $0x10] sm:$0xff]
        %v790 = vld [vmem:[%s1 + $0x18] sm:$0xff]
        %v791 = vld [vmem:[%s1 + $0x20] sm:$0xff]
        %v792 = vld [vmem:[%s1 + $0x28] sm:$0xff]
        %v793 = vld [vmem:[%s1 + $0x30] sm:$0xff]
        %v794 = vld [vmem:[%s1 + $0x38] sm:$0xff]
        %796 = vset.pattern.permute.xlu0 0
        %797 = vperm.xlu0 %796, %v787
        %v798 = vpop.permute.xlu0 %797
        %801 = vset.pattern.permute.xlu0 0
        %802 = vperm.xlu0 %801, %v788
        %v803 = vpop.permute.xlu0 %802
        %806 = vset.pattern.permute.xlu0 0
        %807 = vperm.xlu0 %806, %v789
        %v808 = vpop.permute.xlu0 %807
        %811 = vset.pattern.permute.xlu0 0
        %812 = vperm.xlu0 %811, %v790
        %v813 = vpop.permute.xlu0 %812
        %816 = vset.pattern.permute.xlu0 0
        %817 = vperm.xlu0 %816, %v791
        %v818 = vpop.permute.xlu0 %817
        %821 = vset.pattern.permute.xlu0 0
        %822 = vperm.xlu0 %821, %v792
        %v823 = vpop.permute.xlu0 %822
        %826 = vset.pattern.permute.xlu0 0
        %827 = vperm.xlu0 %826, %v793
        %v828 = vpop.permute.xlu0 %827
        %831 = vset.pattern.permute.xlu0 0
        %832 = vperm.xlu0 %831, %v794
        %v833 = vpop.permute.xlu0 %832
        %v836 = vperm.slane %v786, 0
        %v838 = vmul.f32 %v798, %v836
        %v839 = vmul.f32 %v803, %v836
        %v840 = vmul.f32 %v808, %v836
        %v841 = vmul.f32 %v813, %v836
        %v842 = vmul.f32 %v818, %v836
        %v843 = vmul.f32 %v823, %v836
        %v844 = vmul.f32 %v828, %v836
        %v845 = vmul.f32 %v833, %v836
        %v846 = vld [vmem:[%s2] sm:$0xff]
        %v847 = vld [vmem:[%s2 + $0x8] sm:$0xff]
        %v848 = vld [vmem:[%s2 + $0x10] sm:$0xff]
        %v849 = vld [vmem:[%s2 + $0x18] sm:$0xff]
        %v850 = vld [vmem:[%s2 + $0x20] sm:$0xff]
        %v851 = vld [vmem:[%s2 + $0x28] sm:$0xff]
        %v852 = vld [vmem:[%s2 + $0x30] sm:$0xff]
        %v853 = vld [vmem:[%s2 + $0x38] sm:$0xff]
        %855 = vset.pattern.permute.xlu0 0
        %856 = vperm.xlu0 %855, %v846
        %v857 = vpop.permute.xlu0 %856
        %860 = vset.pattern.permute.xlu0 0
        %861 = vperm.xlu0 %860, %v847
        %v862 = vpop.permute.xlu0 %861
        %865 = vset.pattern.permute.xlu0 0
        %866 = vperm.xlu0 %865, %v848
        %v867 = vpop.permute.xlu0 %866
        %870 = vset.pattern.permute.xlu0 0
        %871 = vperm.xlu0 %870, %v849
        %v872 = vpop.permute.xlu0 %871
        %875 = vset.pattern.permute.xlu0 0
        %876 = vperm.xlu0 %875, %v850
        %v877 = vpop.permute.xlu0 %876
        %880 = vset.pattern.permute.xlu0 0
        %881 = vperm.xlu0 %880, %v851
        %v882 = vpop.permute.xlu0 %881
        %885 = vset.pattern.permute.xlu0 0
        %886 = vperm.xlu0 %885, %v852
        %v887 = vpop.permute.xlu0 %886
        %890 = vset.pattern.permute.xlu0 0
        %891 = vperm.xlu0 %890, %v853
        %v892 = vpop.permute.xlu0 %891
        %v894 = vadd.f32 %v838, %v857
        %v895 = vadd.f32 %v839, %v862
        %v896 = vadd.f32 %v840, %v867
        %v897 = vadd.f32 %v841, %v872
        %v898 = vadd.f32 %v842, %v877
        %v899 = vadd.f32 %v843, %v882
        %v900 = vadd.f32 %v844, %v887
        %v901 = vadd.f32 %v845, %v892
        %v902 = vmax.f32 %v894, 0.0
        %v903 = vmax.f32 %v895, 0.0
        %v904 = vmax.f32 %v896, 0.0
        %v905 = vmax.f32 %v897, 0.0
        %v906 = vmax.f32 %v898, 0.0
        %v907 = vmax.f32 %v899, 0.0
        %v908 = vmax.f32 %v900, 0.0
        %v909 = vmax.f32 %v901, 0.0
        %v910 = vld [vmem:[%s3] sm:$0xf]
        %v911 = vld [vmem:[%s3 + $0x4] sm:$0xf]
        %v912 = vld [vmem:[%s3 + $0x8] sm:$0xf]
        %v913 = vld [vmem:[%s3 + $0xc] sm:$0xf]
        %v914 = vld [vmem:[%s3 + $0x10] sm:$0xf]
        %v915 = vld [vmem:[%s3 + $0x14] sm:$0xf]
        %v916 = vld [vmem:[%s3 + $0x18] sm:$0xf]
        %v917 = vld [vmem:[%s3 + $0x1c] sm:$0xf]
        %v918 = vpack.c.bf16 %v903, %v902
        %v919 = vpack.c.bf16 %v905, %v904
        %v920 = vpack.c.bf16 %v907, %v906
        %v921 = vpack.c.bf16 %v909, %v908
        %v922 = vld [vmem:[%s4] sm:$0xff]
        %v923 = vld [vmem:[%s4 + $0x8] sm:$0xff]
        %v924 = vld [vmem:[%s4 + $0x10] sm:$0xff]
        %v925 = vld [vmem:[%s4 + $0x18] sm:$0xff]
        %v926 = vld [vmem:[%s4 + $0x20] sm:$0xff]
        %v927 = vld [vmem:[%s4 + $0x28] sm:$0xff]
        %v928 = vld [vmem:[%s4 + $0x30] sm:$0xff]
        %v929 = vld [vmem:[%s4 + $0x38] sm:$0xff]
        %931 = vset.pattern.permute.xlu0 0
        %932 = vperm.xlu0 %931, %v922
        %v933 = vpop.permute.xlu0 %932
        %936 = vset.pattern.permute.xlu0 0
        %937 = vperm.xlu0 %936, %v923
        %v938 = vpop.permute.xlu0 %937
        %941 = vset.pattern.permute.xlu0 0
        %942 = vperm.xlu0 %941, %v924
        %v943 = vpop.permute.xlu0 %942
        %946 = vset.pattern.permute.xlu0 0
        %947 = vperm.xlu0 %946, %v925
        %v948 = vpop.permute.xlu0 %947
        %951 = vset.pattern.permute.xlu0 0
        %952 = vperm.xlu0 %951, %v926
        %v953 = vpop.permute.xlu0 %952
        %956 = vset.pattern.permute.xlu0 0
        %957 = vperm.xlu0 %956, %v927
        %v958 = vpop.permute.xlu0 %957
        %961 = vset.pattern.permute.xlu0 0
        %962 = vperm.xlu0 %961, %v928
        %v963 = vpop.permute.xlu0 %962
        %966 = vset.pattern.permute.xlu0 0
        %967 = vperm.xlu0 %966, %v929
        %v968 = vpop.permute.xlu0 %967
        %v978 = vunpack.c.l.b16 %v910
        %v979 = vunpack.c.l.b16 %v911
        %v980 = vunpack.c.l.b16 %v912
        %v981 = vunpack.c.l.b16 %v913
        %v982 = vunpack.c.l.b16 %v914
        %v983 = vunpack.c.l.b16 %v915
        %v984 = vunpack.c.l.b16 %v916
        %v985 = vunpack.c.l.b16 %v917
        %v986 = vpack.c.b16 %v979, %v978
        %v987 = vpack.c.b16 %v981, %v980
        %v988 = vpack.c.b16 %v983, %v982
        %v989 = vpack.c.b16 %v985, %v984
        %vm990 = vcmask 523264
        %v992 = vsel %vm990, %v986, 0
        %v995 = vsel %vm990, %v987, 0
        %v998 = vsel %vm990, %v988, 0
        %v1001 = vsel %vm990, %v989, 0
        %1003 = vmatpush.bf16.msra.mxu0 0
        %1004 = vmatpush.bf16.msra.mxu0 0
        %1005 = vmatpush.bf16.msra.mxu0 0
        %1006 = vmatpush.bf16.msra.mxu0 0
        %1007 = vmatpush.bf16.msra.mxu0 %v921
        %1008 = vmatpush.bf16.msra.mxu0 %v920
        %1009 = vmatpush.bf16.msra.mxu0 %v919
        %1010 = vmatpush.bf16.msra.mxu0 %v918
        %1011 = vmatmul.bf16.gmra.mxu0 %v992
        %v1012 = vpop.f32.mrf.mxu0
        %v1013 = vadd.f32 %v933, %v1012
        %v1014 = vpop.f32.mrf.mxu0
        %v1015 = vadd.f32 %v938, %v1014
        %1016 = vmatmul.bf16.gmra.mxu0 %v995
        %v1017 = vpop.f32.mrf.mxu0
        %v1018 = vadd.f32 %v943, %v1017
        %v1019 = vpop.f32.mrf.mxu0
        %v1020 = vadd.f32 %v948, %v1019
        %1021 = vmatmul.bf16.gmra.mxu0 %v998
        %v1022 = vpop.f32.mrf.mxu0
        %v1023 = vadd.f32 %v953, %v1022
        %v1024 = vpop.f32.mrf.mxu0
        %v1025 = vadd.f32 %v958, %v1024
        %1026 = vmatmul.bf16.gmra.mxu0 %v1001
        %v1027 = vpop.f32.mrf.mxu0
        %v1028 = vadd.f32 %v963, %v1027
        %v1029 = vpop.f32.mrf.mxu0
        %v1030 = vadd.f32 %v968, %v1029
        %1031 = vdwg.mxu0
        %v1032 = vmax.f32 %v1013, 0.0
        %v1033 = vmax.f32 %v1015, 0.0
        %v1034 = vmax.f32 %v1018, 0.0
        %v1035 = vmax.f32 %v1020, 0.0
        %v1036 = vmax.f32 %v1023, 0.0
        %v1037 = vmax.f32 %v1025, 0.0
        %v1038 = vmax.f32 %v1028, 0.0
        %v1039 = vmax.f32 %v1030, 0.0
        %v1040 = vld [vmem:[%s5] sm:$0xff]
        %v1041 = vld [vmem:[%s5 + $0x8] sm:$0xff]
        %v1042 = vld [vmem:[%s5 + $0x10] sm:$0xff]
        %v1043 = vld [vmem:[%s5 + $0x18] sm:$0xff]
        %v1044 = vld [vmem:[%s5 + $0x20] sm:$0xff]
        %v1045 = vld [vmem:[%s5 + $0x28] sm:$0xff]
        %v1046 = vld [vmem:[%s5 + $0x30] sm:$0xff]
        %v1047 = vld [vmem:[%s5 + $0x38] sm:$0xff]
        %1049 = vset.pattern.permute.xlu0 0
        %1050 = vperm.xlu0 %1049, %v1040
        %v1051 = vpop.permute.xlu0 %1050
        %1054 = vset.pattern.permute.xlu0 0
        %1055 = vperm.xlu0 %1054, %v1041
        %v1056 = vpop.permute.xlu0 %1055
        %1059 = vset.pattern.permute.xlu0 0
        %1060 = vperm.xlu0 %1059, %v1042
        %v1061 = vpop.permute.xlu0 %1060
        %1064 = vset.pattern.permute.xlu0 0
        %1065 = vperm.xlu0 %1064, %v1043
        %v1066 = vpop.permute.xlu0 %1065
        %1069 = vset.pattern.permute.xlu0 0
        %1070 = vperm.xlu0 %1069, %v1044
        %v1071 = vpop.permute.xlu0 %1070
        %1074 = vset.pattern.permute.xlu0 0
        %1075 = vperm.xlu0 %1074, %v1045
        %v1076 = vpop.permute.xlu0 %1075
        %1079 = vset.pattern.permute.xlu0 0
        %1080 = vperm.xlu0 %1079, %v1046
        %v1081 = vpop.permute.xlu0 %1080
        %1084 = vset.pattern.permute.xlu0 0
        %1085 = vperm.xlu0 %1084, %v1047
        %v1086 = vpop.permute.xlu0 %1085
        %v1088 = vmul.f32 %v1032, %v1051
        %v1089 = vmul.f32 %v1033, %v1056
        %v1090 = vmul.f32 %v1034, %v1061
        %v1091 = vmul.f32 %v1035, %v1066
        %v1092 = vmul.f32 %v1036, %v1071
        %v1093 = vmul.f32 %v1037, %v1076
        %v1094 = vmul.f32 %v1038, %v1081
        %v1095 = vmul.f32 %v1039, %v1086
        %v1096 = vld [vmem:[%s6] sm:$0xff]
        %v1097 = vld [vmem:[%s6 + $0x8] sm:$0xff]
        %v1098 = vld [vmem:[%s6 + $0x10] sm:$0xff]
        %v1099 = vld [vmem:[%s6 + $0x18] sm:$0xff]
        %v1100 = vld [vmem:[%s6 + $0x20] sm:$0xff]
        %v1101 = vld [vmem:[%s6 + $0x28] sm:$0xff]
        %v1102 = vld [vmem:[%s6 + $0x30] sm:$0xff]
        %v1103 = vld [vmem:[%s6 + $0x38] sm:$0xff]
        %1105 = vset.pattern.permute.xlu0 0
        %1106 = vperm.xlu0 %1105, %v1096
        %v1107 = vpop.permute.xlu0 %1106
        %1110 = vset.pattern.permute.xlu0 0
        %1111 = vperm.xlu0 %1110, %v1097
        %v1112 = vpop.permute.xlu0 %1111
        %1115 = vset.pattern.permute.xlu0 0
        %1116 = vperm.xlu0 %1115, %v1098
        %v1117 = vpop.permute.xlu0 %1116
        %1120 = vset.pattern.permute.xlu0 0
        %1121 = vperm.xlu0 %1120, %v1099
        %v1122 = vpop.permute.xlu0 %1121
        %1125 = vset.pattern.permute.xlu0 0
        %1126 = vperm.xlu0 %1125, %v1100
        %v1127 = vpop.permute.xlu0 %1126
        %1130 = vset.pattern.permute.xlu0 0
        %1131 = vperm.xlu0 %1130, %v1101
        %v1132 = vpop.permute.xlu0 %1131
        %1135 = vset.pattern.permute.xlu0 0
        %1136 = vperm.xlu0 %1135, %v1102
        %v1137 = vpop.permute.xlu0 %1136
        %1140 = vset.pattern.permute.xlu0 0
        %1141 = vperm.xlu0 %1140, %v1103
        %v1142 = vpop.permute.xlu0 %1141
        %v1144 = vadd.f32 %v1088, %v1107
        %v1145 = vadd.f32 %v1089, %v1112
        %v1146 = vadd.f32 %v1090, %v1117
        %v1147 = vadd.f32 %v1091, %v1122
        %v1148 = vadd.f32 %v1092, %v1127
        %v1149 = vadd.f32 %v1093, %v1132
        %v1150 = vadd.f32 %v1094, %v1137
        %v1151 = vadd.f32 %v1095, %v1142
        %v1152 = vmax.f32 %v1144, 0.0
        %v1153 = vmax.f32 %v1145, 0.0
        %v1154 = vmax.f32 %v1146, 0.0
        %v1155 = vmax.f32 %v1147, 0.0
        %v1156 = vmax.f32 %v1148, 0.0
        %v1157 = vmax.f32 %v1149, 0.0
        %v1158 = vmax.f32 %v1150, 0.0
        %v1159 = vmax.f32 %v1151, 0.0
        %v1160 = vld [vmem:[%s7] sm:$0xf]
        %v1161 = vld [vmem:[%s7 + $0x4] sm:$0xf]
        %v1162 = vld [vmem:[%s7 + $0x8] sm:$0xf]
        %v1163 = vld [vmem:[%s7 + $0xc] sm:$0xf]
        %v1164 = vpack.c.bf16 %v1153, %v1152
        %v1165 = vpack.c.bf16 %v1155, %v1154
        %v1166 = vpack.c.bf16 %v1157, %v1156
        %v1167 = vpack.c.bf16 %v1159, %v1158
        %v1168 = vld [vmem:[%s8] sm:$0xff]
        %v1169 = vld [vmem:[%s8 + $0x8] sm:$0xff]
        %v1170 = vld [vmem:[%s8 + $0x10] sm:$0xff]
        %v1171 = vld [vmem:[%s8 + $0x18] sm:$0xff]
        %1173 = vset.pattern.permute.xlu0 0
        %1174 = vperm.xlu0 %1173, %v1168
        %v1175 = vpop.permute.xlu0 %1174
        %1178 = vset.pattern.permute.xlu0 0
        %1179 = vperm.xlu0 %1178, %v1169
        %v1180 = vpop.permute.xlu0 %1179
        %1183 = vset.pattern.permute.xlu0 0
        %1184 = vperm.xlu0 %1183, %v1170
        %v1185 = vpop.permute.xlu0 %1184
        %1188 = vset.pattern.permute.xlu0 0
        %1189 = vperm.xlu0 %1188, %v1171
        %v1190 = vpop.permute.xlu0 %1189
        %v1196 = vunpack.c.l.b16 %v1160
        %v1197 = vunpack.c.l.b16 %v1161
        %v1198 = vunpack.c.l.b16 %v1162
        %v1199 = vunpack.c.l.b16 %v1163
        %v1200 = vpack.c.b16 %v1197, %v1196
        %v1201 = vpack.c.b16 %v1199, %v1198
        %v1203 = vsel %vm990, %v1200, 0
        %v1206 = vsel %vm990, %v1201, 0
        %1208 = vmatpush.bf16.msra.mxu0 0
        %1209 = vmatpush.bf16.msra.mxu0 0
        %1210 = vmatpush.bf16.msra.mxu0 0
        %1211 = vmatpush.bf16.msra.mxu0 0
        %1212 = vmatpush.bf16.msra.mxu0 %v1167
        %1213 = vmatpush.bf16.msra.mxu0 %v1166
        %1214 = vmatpush.bf16.msra.mxu0 %v1165
        %1215 = vmatpush.bf16.msra.mxu0 %v1164
        %1216 = vmatmul.bf16.gmra.mxu0 %v1203
        %v1217 = vpop.f32.mrf.mxu0
        %v1218 = vadd.f32 %v1175, %v1217
        %v1219 = vpop.f32.mrf.mxu0
        %v1220 = vadd.f32 %v1180, %v1219
        %1221 = vmatmul.bf16.gmra.mxu0 %v1206
        %v1222 = vpop.f32.mrf.mxu0
        %v1223 = vadd.f32 %v1185, %v1222
        %v1224 = vpop.f32.mrf.mxu0
        %v1225 = vadd.f32 %v1190, %v1224
        %1226 = vdwg.mxu0
        %v1227 = vmax.f32 %v1218, 0.0
        %v1228 = vmax.f32 %v1220, 0.0
        %v1229 = vmax.f32 %v1223, 0.0
        %v1230 = vmax.f32 %v1225, 0.0
        %v1231 = vld [vmem:[%s9] sm:$0xf]
        %v1232 = vld [vmem:[%s9 + $0x4] sm:$0xf]
        %v1233 = vld [vmem:[%s9 + $0x8] sm:$0xf]
        %v1234 = vld [vmem:[%s9 + $0xc] sm:$0xf]
        %v1235 = vld [vmem:[%s9 + $0x10] sm:$0xf]
        %v1236 = vld [vmem:[%s9 + $0x14] sm:$0xf]
        %v1237 = vld [vmem:[%s9 + $0x18] sm:$0xf]
        %v1238 = vld [vmem:[%s9 + $0x1c] sm:$0xf]
        %v1239 = vpack.c.bf16 %v1228, %v1227
        %v1240 = vpack.c.bf16 %v1230, %v1229
        %v1241 = vld [vmem:[%s10] sm:$0xff]
        %v1242 = vld [vmem:[%s10 + $0x8] sm:$0xff]
        %v1243 = vld [vmem:[%s10 + $0x10] sm:$0xff]
        %v1244 = vld [vmem:[%s10 + $0x18] sm:$0xff]
        %v1245 = vld [vmem:[%s10 + $0x20] sm:$0xff]
        %v1246 = vld [vmem:[%s10 + $0x28] sm:$0xff]
        %v1247 = vld [vmem:[%s10 + $0x30] sm:$0xff]
        %v1248 = vld [vmem:[%s10 + $0x38] sm:$0xff]
        %1250 = vset.pattern.permute.xlu0 0
        %1251 = vperm.xlu0 %1250, %v1241
        %v1252 = vpop.permute.xlu0 %1251
        %1255 = vset.pattern.permute.xlu0 0
        %1256 = vperm.xlu0 %1255, %v1242
        %v1257 = vpop.permute.xlu0 %1256
        %1260 = vset.pattern.permute.xlu0 0
        %1261 = vperm.xlu0 %1260, %v1243
        %v1262 = vpop.permute.xlu0 %1261
        %1265 = vset.pattern.permute.xlu0 0
        %1266 = vperm.xlu0 %1265, %v1244
        %v1267 = vpop.permute.xlu0 %1266
        %1270 = vset.pattern.permute.xlu0 0
        %1271 = vperm.xlu0 %1270, %v1245
        %v1272 = vpop.permute.xlu0 %1271
        %1275 = vset.pattern.permute.xlu0 0
        %1276 = vperm.xlu0 %1275, %v1246
        %v1277 = vpop.permute.xlu0 %1276
        %1280 = vset.pattern.permute.xlu0 0
        %1281 = vperm.xlu0 %1280, %v1247
        %v1282 = vpop.permute.xlu0 %1281
        %1285 = vset.pattern.permute.xlu0 0
        %1286 = vperm.xlu0 %1285, %v1248
        %v1287 = vpop.permute.xlu0 %1286
        %v1297 = vunpack.c.l.b16 %v1231
        %v1298 = vunpack.c.l.b16 %v1232
        %v1299 = vunpack.c.l.b16 %v1233
        %v1300 = vunpack.c.l.b16 %v1234
        %v1301 = vunpack.c.l.b16 %v1235
        %v1302 = vunpack.c.l.b16 %v1236
        %v1303 = vunpack.c.l.b16 %v1237
        %v1304 = vunpack.c.l.b16 %v1238
        %v1305 = vpack.c.b16 %v1298, %v1297
        %v1306 = vpack.c.b16 %v1300, %v1299
        %v1307 = vpack.c.b16 %v1302, %v1301
        %v1308 = vpack.c.b16 %v1304, %v1303
        %vm1309 = vcmask 261120
        %v1311 = vsel %vm1309, %v1305, 0
        %v1314 = vsel %vm1309, %v1306, 0
        %v1317 = vsel %vm1309, %v1307, 0
        %v1320 = vsel %vm1309, %v1308, 0
        %1322 = vmatpush.bf16.msra.mxu0 0
        %1323 = vmatpush.bf16.msra.mxu0 0
        %1324 = vmatpush.bf16.msra.mxu0 0
        %1325 = vmatpush.bf16.msra.mxu0 0
        %1326 = vmatpush.bf16.msra.mxu0 0
        %1327 = vmatpush.bf16.msra.mxu0 0
        %1328 = vmatpush.bf16.msra.mxu0 %v1240
        %1329 = vmatpush.bf16.msra.mxu0 %v1239
        %1330 = vmatmul.bf16.gmra.mxu0 %v1311
        %v1331 = vpop.f32.mrf.mxu0
        %v1332 = vadd.f32 %v1252, %v1331
        %v1333 = vpop.f32.mrf.mxu0
        %v1334 = vadd.f32 %v1257, %v1333
        %1335 = vmatmul.bf16.gmra.mxu0 %v1314
        %v1336 = vpop.f32.mrf.mxu0
        %v1337 = vadd.f32 %v1262, %v1336
        %v1338 = vpop.f32.mrf.mxu0
        %v1339 = vadd.f32 %v1267, %v1338
        %1340 = vmatmul.bf16.gmra.mxu0 %v1317
        %v1341 = vpop.f32.mrf.mxu0
        %v1342 = vadd.f32 %v1272, %v1341
        %v1343 = vpop.f32.mrf.mxu0
        %v1344 = vadd.f32 %v1277, %v1343
        %1345 = vmatmul.bf16.gmra.mxu0 %v1320
        %v1346 = vpop.f32.mrf.mxu0
        %v1347 = vadd.f32 %v1282, %v1346
        %v1348 = vpop.f32.mrf.mxu0
        %v1349 = vadd.f32 %v1287, %v1348
        %1350 = vdwg.mxu0
        %v1351 = vld [vmem:[%s15] sm:$0xf]
        %v1352 = vld [vmem:[%s15 + $0x4] sm:$0xf]
        %v1353 = vld [vmem:[%s15 + $0x8] sm:$0xf]
        %v1354 = vld [vmem:[%s15 + $0xc] sm:$0xf]
        %v1355 = vld [vmem:[%s15 + $0x10] sm:$0xf]
        %v1356 = vld [vmem:[%s15 + $0x14] sm:$0xf]
        %v1357 = vld [vmem:[%s15 + $0x18] sm:$0xf]
        %v1358 = vld [vmem:[%s15 + $0x1c] sm:$0xf]
        %v1359 = vpack.c.bf16 %v1334, %v1332
        %v1360 = vpack.c.bf16 %v1339, %v1337
        %v1361 = vpack.c.bf16 %v1344, %v1342
        %v1362 = vpack.c.bf16 %v1349, %v1347
        %v1371 = vunpack.c.l.b16 %v1351
        %v1372 = vunpack.c.l.b16 %v1352
        %v1373 = vunpack.c.l.b16 %v1353
        %v1374 = vunpack.c.l.b16 %v1354
        %v1375 = vunpack.c.l.b16 %v1355
        %v1376 = vunpack.c.l.b16 %v1356
        %v1377 = vunpack.c.l.b16 %v1357
        %v1378 = vunpack.c.l.b16 %v1358
        %v1379 = vpack.c.b16 %v1372, %v1371
        %v1380 = vpack.c.b16 %v1374, %v1373
        %v1381 = vpack.c.b16 %v1376, %v1375
        %v1382 = vpack.c.b16 %v1378, %v1377
        %v1384 = vsel %vm990, %v1379, 0
        %v1387 = vsel %vm990, %v1380, 0
        %v1390 = vsel %vm990, %v1381, 0
        %v1393 = vsel %vm990, %v1382, 0
        %1395 = vmatpush.bf16.msra.mxu0 0
        %1396 = vmatpush.bf16.msra.mxu0 0
        %1397 = vmatpush.bf16.msra.mxu0 0
        %1398 = vmatpush.bf16.msra.mxu0 0
        %1399 = vmatpush.bf16.msra.mxu0 %v1362
        %1400 = vmatpush.bf16.msra.mxu0 %v1361
        %1401 = vmatpush.bf16.msra.mxu0 %v1360
        %1402 = vmatpush.bf16.msra.mxu0 %v1359
        %1403 = vmatmul.bf16.gmra.mxu0 %v1384
        %v1404 = vpop.f32.mrf.mxu0
        %v1405 = vadd.f32 0.0, %v1404
        %v1406 = vpop.f32.mrf.mxu0
        %v1407 = vadd.f32 0.0, %v1406
        %1408 = vmatmul.bf16.gmra.mxu0 %v1387
        %v1409 = vpop.f32.mrf.mxu0
        %v1410 = vadd.f32 0.0, %v1409
        %v1411 = vpop.f32.mrf.mxu0
        %v1412 = vadd.f32 0.0, %v1411
        %1413 = vmatmul.bf16.gmra.mxu0 %v1390
        %v1414 = vpop.f32.mrf.mxu0
        %v1415 = vadd.f32 0.0, %v1414
        %v1416 = vpop.f32.mrf.mxu0
        %v1417 = vadd.f32 0.0, %v1416
        %1418 = vmatmul.bf16.gmra.mxu0 %v1393
        %v1419 = vpop.f32.mrf.mxu0
        %v1420 = vadd.f32 0.0, %v1419
        %v1421 = vpop.f32.mrf.mxu0
        %v1422 = vadd.f32 0.0, %v1421
        %1423 = vdwg.mxu0
        %1424 = vadd.xlane.f32.xlu0 %v1332
        %v1425 = vpop.xlane.xlu0 %1424
        %1426 = vadd.xlane.f32.xlu0 %v1334
        %v1427 = vpop.xlane.xlu0 %1426
        %1428 = vadd.xlane.f32.xlu0 %v1337
        %v1429 = vpop.xlane.xlu0 %1428
        %1430 = vadd.xlane.f32.xlu0 %v1339
        %v1431 = vpop.xlane.xlu0 %1430
        %1432 = vadd.xlane.f32.xlu0 %v1342
        %v1433 = vpop.xlane.xlu0 %1432
        %1434 = vadd.xlane.f32.xlu0 %v1344
        %v1435 = vpop.xlane.xlu0 %1434
        %1436 = vadd.xlane.f32.xlu0 %v1347
        %v1437 = vpop.xlane.xlu0 %1436
        %1438 = vadd.xlane.f32.xlu0 %v1349
        %v1439 = vpop.xlane.xlu0 %1438
        %v1440 = vmul.f32 %v1425, 0.0078125
        %v1441 = vmul.f32 %v1427, 0.0078125
        %v1442 = vmul.f32 %v1429, 0.0078125
        %v1443 = vmul.f32 %v1431, 0.0078125
        %v1444 = vmul.f32 %v1433, 0.0078125
        %v1445 = vmul.f32 %v1435, 0.0078125
        %v1446 = vmul.f32 %v1437, 0.0078125
        %v1447 = vmul.f32 %v1439, 0.0078125
        %1448 = vadd.xlane.f32.xlu0 %v1405
        %v1449 = vpop.xlane.xlu0 %1448
        %1450 = vadd.xlane.f32.xlu0 %v1407
        %v1451 = vpop.xlane.xlu0 %1450
        %1452 = vadd.xlane.f32.xlu0 %v1410
        %v1453 = vpop.xlane.xlu0 %1452
        %1454 = vadd.xlane.f32.xlu0 %v1412
        %v1455 = vpop.xlane.xlu0 %1454
        %1456 = vadd.xlane.f32.xlu0 %v1415
        %v1457 = vpop.xlane.xlu0 %1456
        %1458 = vadd.xlane.f32.xlu0 %v1417
        %v1459 = vpop.xlane.xlu0 %1458
        %1460 = vadd.xlane.f32.xlu0 %v1420
        %v1461 = vpop.xlane.xlu0 %1460
        %1462 = vadd.xlane.f32.xlu0 %v1422
        %v1463 = vpop.xlane.xlu0 %1462
        %v1464 = vmul.f32 %v1449, 0.0078125
        %v1465 = vmul.f32 %v1451, 0.0078125
        %v1466 = vmul.f32 %v1453, 0.0078125
        %v1467 = vmul.f32 %v1455, 0.0078125
        %v1468 = vmul.f32 %v1457, 0.0078125
        %v1469 = vmul.f32 %v1459, 0.0078125
        %v1470 = vmul.f32 %v1461, 0.0078125
        %v1471 = vmul.f32 %v1463, 0.0078125
        %v1472 = vld [vmem:[%s11] sm:$0xff]
        %v1473 = vld [vmem:[%s11 + $0x8] sm:$0xff]
        %v1474 = vld [vmem:[%s11 + $0x10] sm:$0xff]
        %v1475 = vld [vmem:[%s11 + $0x18] sm:$0xff]
        %v1476 = vld [vmem:[%s11 + $0x20] sm:$0xff]
        %v1477 = vld [vmem:[%s11 + $0x28] sm:$0xff]
        %v1478 = vld [vmem:[%s11 + $0x30] sm:$0xff]
        %v1479 = vld [vmem:[%s11 + $0x38] sm:$0xff]
        %v1480 = vld [vmem:[%s12] sm:$0xff]
        %v1481 = vld [vmem:[%s12 + $0x8] sm:$0xff]
        %v1482 = vld [vmem:[%s12 + $0x10] sm:$0xff]
        %v1483 = vld [vmem:[%s12 + $0x18] sm:$0xff]
        %v1484 = vld [vmem:[%s12 + $0x20] sm:$0xff]
        %v1485 = vld [vmem:[%s12 + $0x28] sm:$0xff]
        %v1486 = vld [vmem:[%s12 + $0x30] sm:$0xff]
        %v1487 = vld [vmem:[%s12 + $0x38] sm:$0xff]
        %v1489 = vsel %vm990, %v1472, 0
        %v1492 = vsel %vm990, %v1473, 0
        %v1495 = vsel %vm990, %v1474, 0
        %v1498 = vsel %vm990, %v1475, 0
        %v1501 = vsel %vm990, %v1476, 0
        %v1504 = vsel %vm990, %v1477, 0
        %v1507 = vsel %vm990, %v1478, 0
        %v1510 = vsel %vm990, %v1479, 0
        %1512 = vmatpush.msra.mxu0 0.0
        %1513 = vmatpush.msra.mxu0 0.0
        %1514 = vmatpush.msra.mxu0 0.0
        %1515 = vmatpush.msra.mxu0 0.0
        %1516 = vmatpush.msra.mxu0 0.0
        %1517 = vmatpush.msra.mxu0 0.0
        %1518 = vmatpush.msra.mxu0 0.0
        %1519 = vmatpush.msra.mxu0 0.0
        %1520 = vmatpush.msra.mxu0 %v1447
        %1521 = vmatpush.msra.mxu0 %v1446
        %1522 = vmatpush.msra.mxu0 %v1445
        %1523 = vmatpush.msra.mxu0 %v1444
        %1524 = vmatpush.msra.mxu0 %v1443
        %1525 = vmatpush.msra.mxu0 %v1442
        %1526 = vmatpush.msra.mxu0 %v1441
        %1527 = vmatpush.msra.mxu0 %v1440
        %1528 = vmatmul.f32.gmra.mxu0 %v1489
        %v1529 = vpop.f32.mrf.mxu0
        %v1530 = vadd.f32 %v1480, %v1529
        %1531 = vmatmul.f32.gmra.mxu0 %v1492
        %v1532 = vpop.f32.mrf.mxu0
        %v1533 = vadd.f32 %v1481, %v1532
        %1534 = vmatmul.f32.gmra.mxu0 %v1495
        %v1535 = vpop.f32.mrf.mxu0
        %v1536 = vadd.f32 %v1482, %v1535
        %1537 = vmatmul.f32.gmra.mxu0 %v1498
        %v1538 = vpop.f32.mrf.mxu0
        %v1539 = vadd.f32 %v1483, %v1538
        %1540 = vmatmul.f32.gmra.mxu0 %v1501
        %v1541 = vpop.f32.mrf.mxu0
        %v1542 = vadd.f32 %v1484, %v1541
        %1543 = vmatmul.f32.gmra.mxu0 %v1504
        %v1544 = vpop.f32.mrf.mxu0
        %v1545 = vadd.f32 %v1485, %v1544
        %1546 = vmatmul.f32.gmra.mxu0 %v1507
        %v1547 = vpop.f32.mrf.mxu0
        %v1548 = vadd.f32 %v1486, %v1547
        %1549 = vmatmul.f32.gmra.mxu0 %v1510
        %v1550 = vpop.f32.mrf.mxu0
        %v1551 = vadd.f32 %v1487, %v1550
        %1552 = vdwg.mxu0
        %v1553 = vmax.f32 %v1530, 0.0
        %v1554 = vmax.f32 %v1533, 0.0
        %v1555 = vmax.f32 %v1536, 0.0
        %v1556 = vmax.f32 %v1539, 0.0
        %v1557 = vmax.f32 %v1542, 0.0
        %v1558 = vmax.f32 %v1545, 0.0
        %v1559 = vmax.f32 %v1548, 0.0
        %v1560 = vmax.f32 %v1551, 0.0
        %v1561 = vld [vmem:[%s13] sm:$0xff]
        %v1562 = vld [vmem:[%s13 + $0x8] sm:$0xff]
        %v1563 = vld [vmem:[%s13 + $0x10] sm:$0xff]
        %v1564 = vld [vmem:[%s13 + $0x18] sm:$0xff]
        %v1565 = vld [vmem:[%s13 + $0x20] sm:$0xff]
        %v1566 = vld [vmem:[%s13 + $0x28] sm:$0xff]
        %v1567 = vld [vmem:[%s13 + $0x30] sm:$0xff]
        %v1568 = vld [vmem:[%s13 + $0x38] sm:$0xff]
        %v1569 = vld [vmem:[%s14] sm:$0xff]
        %v1570 = vld [vmem:[%s14 + $0x8] sm:$0xff]
        %v1571 = vld [vmem:[%s14 + $0x10] sm:$0xff]
        %v1572 = vld [vmem:[%s14 + $0x18] sm:$0xff]
        %v1573 = vld [vmem:[%s14 + $0x20] sm:$0xff]
        %v1574 = vld [vmem:[%s14 + $0x28] sm:$0xff]
        %v1575 = vld [vmem:[%s14 + $0x30] sm:$0xff]
        %v1576 = vld [vmem:[%s14 + $0x38] sm:$0xff]
        %v1578 = vsel %vm990, %v1561, 0
        %v1581 = vsel %vm990, %v1562, 0
        %v1584 = vsel %vm990, %v1563, 0
        %v1587 = vsel %vm990, %v1564, 0
        %v1590 = vsel %vm990, %v1565, 0
        %v1593 = vsel %vm990, %v1566, 0
        %v1596 = vsel %vm990, %v1567, 0
        %v1599 = vsel %vm990, %v1568, 0
        %1601 = vmatpush.msra.mxu0 0.0
        %1602 = vmatpush.msra.mxu0 0.0
        %1603 = vmatpush.msra.mxu0 0.0
        %1604 = vmatpush.msra.mxu0 0.0
        %1605 = vmatpush.msra.mxu0 0.0
        %1606 = vmatpush.msra.mxu0 0.0
        %1607 = vmatpush.msra.mxu0 0.0
        %1608 = vmatpush.msra.mxu0 0.0
        %1609 = vmatpush.msra.mxu0 %v1560
        %1610 = vmatpush.msra.mxu0 %v1559
        %1611 = vmatpush.msra.mxu0 %v1558
        %1612 = vmatpush.msra.mxu0 %v1557
        %1613 = vmatpush.msra.mxu0 %v1556
        %1614 = vmatpush.msra.mxu0 %v1555
        %1615 = vmatpush.msra.mxu0 %v1554
        %1616 = vmatpush.msra.mxu0 %v1553
        %1617 = vmatmul.f32.gmra.mxu0 %v1578
        %v1618 = vpop.f32.mrf.mxu0
        %v1619 = vadd.f32 %v1569, %v1618
        %1620 = vmatmul.f32.gmra.mxu0 %v1581
        %v1621 = vpop.f32.mrf.mxu0
        %v1622 = vadd.f32 %v1570, %v1621
        %1623 = vmatmul.f32.gmra.mxu0 %v1584
        %v1624 = vpop.f32.mrf.mxu0
        %v1625 = vadd.f32 %v1571, %v1624
        %1626 = vmatmul.f32.gmra.mxu0 %v1587
        %v1627 = vpop.f32.mrf.mxu0
        %v1628 = vadd.f32 %v1572, %v1627
        %1629 = vmatmul.f32.gmra.mxu0 %v1590
        %v1630 = vpop.f32.mrf.mxu0
        %v1631 = vadd.f32 %v1573, %v1630
        %1632 = vmatmul.f32.gmra.mxu0 %v1593
        %v1633 = vpop.f32.mrf.mxu0
        %v1634 = vadd.f32 %v1574, %v1633
        %1635 = vmatmul.f32.gmra.mxu0 %v1596
        %v1636 = vpop.f32.mrf.mxu0
        %v1637 = vadd.f32 %v1575, %v1636
        %1638 = vmatmul.f32.gmra.mxu0 %v1599
        %v1639 = vpop.f32.mrf.mxu0
        %v1640 = vadd.f32 %v1576, %v1639
        %1641 = vdwg.mxu0
        %v1642 = vadd.f32 %v1032, %v1405
        %v1643 = vadd.f32 %v1033, %v1407
        %v1644 = vadd.f32 %v1034, %v1410
        %v1645 = vadd.f32 %v1035, %v1412
        %v1646 = vadd.f32 %v1036, %v1415
        %v1647 = vadd.f32 %v1037, %v1417
        %v1648 = vadd.f32 %v1038, %v1420
        %v1649 = vadd.f32 %v1039, %v1422
        %v1650 = vld [vmem:[%s16] sm:$0xff]
        %v1651 = vld [vmem:[%s16 + $0x8] sm:$0xff]
        %v1652 = vld [vmem:[%s16 + $0x10] sm:$0xff]
        %v1653 = vld [vmem:[%s16 + $0x18] sm:$0xff]
        %v1654 = vld [vmem:[%s16 + $0x20] sm:$0xff]
        %v1655 = vld [vmem:[%s16 + $0x28] sm:$0xff]
        %v1656 = vld [vmem:[%s16 + $0x30] sm:$0xff]
        %v1657 = vld [vmem:[%s16 + $0x38] sm:$0xff]
        %v1658 = vld [vmem:[%s17] sm:$0xff]
        %v1659 = vld [vmem:[%s17 + $0x8] sm:$0xff]
        %v1660 = vld [vmem:[%s17 + $0x10] sm:$0xff]
        %v1661 = vld [vmem:[%s17 + $0x18] sm:$0xff]
        %v1662 = vld [vmem:[%s17 + $0x20] sm:$0xff]
        %v1663 = vld [vmem:[%s17 + $0x28] sm:$0xff]
        %v1664 = vld [vmem:[%s17 + $0x30] sm:$0xff]
        %v1665 = vld [vmem:[%s17 + $0x38] sm:$0xff]
        %v1667 = vsel %vm990, %v1650, 0
        %v1670 = vsel %vm990, %v1651, 0
        %v1673 = vsel %vm990, %v1652, 0
        %v1676 = vsel %vm990, %v1653, 0
        %v1679 = vsel %vm990, %v1654, 0
        %v1682 = vsel %vm990, %v1655, 0
        %v1685 = vsel %vm990, %v1656, 0
        %v1688 = vsel %vm990, %v1657, 0
        %1690 = vmatpush.msra.mxu0 0.0
        %1691 = vmatpush.msra.mxu0 0.0
        %1692 = vmatpush.msra.mxu0 0.0
        %1693 = vmatpush.msra.mxu0 0.0
        %1694 = vmatpush.msra.mxu0 0.0
        %1695 = vmatpush.msra.mxu0 0.0
        %1696 = vmatpush.msra.mxu0 0.0
        %1697 = vmatpush.msra.mxu0 0.0
        %1698 = vmatpush.msra.mxu0 %v1640
        %1699 = vmatpush.msra.mxu0 %v1637
        %1700 = vmatpush.msra.mxu0 %v1634
        %1701 = vmatpush.msra.mxu0 %v1631
        %1702 = vmatpush.msra.mxu0 %v1628
        %1703 = vmatpush.msra.mxu0 %v1625
        %1704 = vmatpush.msra.mxu0 %v1622
        %1705 = vmatpush.msra.mxu0 %v1619
        %1706 = vmatmul.f32.gmra.mxu0 %v1667
        %v1707 = vpop.f32.mrf.mxu0
        %v1708 = vadd.f32 %v1658, %v1707
        %1709 = vmatmul.f32.gmra.mxu0 %v1670
        %v1710 = vpop.f32.mrf.mxu0
        %v1711 = vadd.f32 %v1659, %v1710
        %1712 = vmatmul.f32.gmra.mxu0 %v1673
        %v1713 = vpop.f32.mrf.mxu0
        %v1714 = vadd.f32 %v1660, %v1713
        %1715 = vmatmul.f32.gmra.mxu0 %v1676
        %v1716 = vpop.f32.mrf.mxu0
        %v1717 = vadd.f32 %v1661, %v1716
        %1718 = vmatmul.f32.gmra.mxu0 %v1679
        %v1719 = vpop.f32.mrf.mxu0
        %v1720 = vadd.f32 %v1662, %v1719
        %1721 = vmatmul.f32.gmra.mxu0 %v1682
        %v1722 = vpop.f32.mrf.mxu0
        %v1723 = vadd.f32 %v1663, %v1722
        %1724 = vmatmul.f32.gmra.mxu0 %v1685
        %v1725 = vpop.f32.mrf.mxu0
        %v1726 = vadd.f32 %v1664, %v1725
        %1727 = vmatmul.f32.gmra.mxu0 %v1688
        %v1728 = vpop.f32.mrf.mxu0
        %v1729 = vadd.f32 %v1665, %v1728
        %1730 = vdwg.mxu0
        %v1731 = vsub.f32 %v1708, %v1464
        %v1732 = vsub.f32 %v1711, %v1465
        %v1733 = vsub.f32 %v1714, %v1466
        %v1734 = vsub.f32 %v1717, %v1467
        %v1735 = vsub.f32 %v1720, %v1468
        %v1736 = vsub.f32 %v1723, %v1469
        %v1737 = vsub.f32 %v1726, %v1470
        %v1738 = vsub.f32 %v1729, %v1471
        %1740 = vset.pattern.permute.xlu0 0
        %1741 = vperm.xlu0 %1740, %v1731
        %v1742 = vpop.permute.xlu0 %1741
        %1745 = vset.pattern.permute.xlu0 0
        %1746 = vperm.xlu0 %1745, %v1732
        %v1747 = vpop.permute.xlu0 %1746
        %1750 = vset.pattern.permute.xlu0 0
        %1751 = vperm.xlu0 %1750, %v1733
        %v1752 = vpop.permute.xlu0 %1751
        %1755 = vset.pattern.permute.xlu0 0
        %1756 = vperm.xlu0 %1755, %v1734
        %v1757 = vpop.permute.xlu0 %1756
        %1760 = vset.pattern.permute.xlu0 0
        %1761 = vperm.xlu0 %1760, %v1735
        %v1762 = vpop.permute.xlu0 %1761
        %1765 = vset.pattern.permute.xlu0 0
        %1766 = vperm.xlu0 %1765, %v1736
        %v1767 = vpop.permute.xlu0 %1766
        %1770 = vset.pattern.permute.xlu0 0
        %1771 = vperm.xlu0 %1770, %v1737
        %v1772 = vpop.permute.xlu0 %1771
        %1775 = vset.pattern.permute.xlu0 0
        %1776 = vperm.xlu0 %1775, %v1738
        %v1777 = vpop.permute.xlu0 %1776
        %v1779 = vadd.f32 %v1642, %v1742
        %v1780 = vadd.f32 %v1643, %v1747
        %v1781 = vadd.f32 %v1644, %v1752
        %v1782 = vadd.f32 %v1645, %v1757
        %v1783 = vadd.f32 %v1646, %v1762
        %v1784 = vadd.f32 %v1647, %v1767
        %v1785 = vadd.f32 %v1648, %v1772
        %v1786 = vadd.f32 %v1649, %v1777
        %s1787 = scalar_lea.vmem %s5, 64
        %v1788 = vld [vmem:[%s1787] sm:$0xff]
        %v1789 = vld [vmem:[%s1787 + $0x8] sm:$0xff]
        %v1790 = vld [vmem:[%s1787 + $0x10] sm:$0xff]
        %v1791 = vld [vmem:[%s1787 + $0x18] sm:$0xff]
        %v1792 = vld [vmem:[%s1787 + $0x20] sm:$0xff]
        %v1793 = vld [vmem:[%s1787 + $0x28] sm:$0xff]
        %v1794 = vld [vmem:[%s1787 + $0x30] sm:$0xff]
        %v1795 = vld [vmem:[%s1787 + $0x38] sm:$0xff]
        %1797 = vset.pattern.permute.xlu0 0
        %1798 = vperm.xlu0 %1797, %v1788
        %v1799 = vpop.permute.xlu0 %1798
        %1802 = vset.pattern.permute.xlu0 0
        %1803 = vperm.xlu0 %1802, %v1789
        %v1804 = vpop.permute.xlu0 %1803
        %1807 = vset.pattern.permute.xlu0 0
        %1808 = vperm.xlu0 %1807, %v1790
        %v1809 = vpop.permute.xlu0 %1808
        %1812 = vset.pattern.permute.xlu0 0
        %1813 = vperm.xlu0 %1812, %v1791
        %v1814 = vpop.permute.xlu0 %1813
        %1817 = vset.pattern.permute.xlu0 0
        %1818 = vperm.xlu0 %1817, %v1792
        %v1819 = vpop.permute.xlu0 %1818
        %1822 = vset.pattern.permute.xlu0 0
        %1823 = vperm.xlu0 %1822, %v1793
        %v1824 = vpop.permute.xlu0 %1823
        %1827 = vset.pattern.permute.xlu0 0
        %1828 = vperm.xlu0 %1827, %v1794
        %v1829 = vpop.permute.xlu0 %1828
        %1832 = vset.pattern.permute.xlu0 0
        %1833 = vperm.xlu0 %1832, %v1795
        %v1834 = vpop.permute.xlu0 %1833
        %v1836 = vmul.f32 %v1779, %v1799
        %v1837 = vmul.f32 %v1780, %v1804
        %v1838 = vmul.f32 %v1781, %v1809
        %v1839 = vmul.f32 %v1782, %v1814
        %v1840 = vmul.f32 %v1783, %v1819
        %v1841 = vmul.f32 %v1784, %v1824
        %v1842 = vmul.f32 %v1785, %v1829
        %v1843 = vmul.f32 %v1786, %v1834
        %s1844 = scalar_lea.vmem %s6, 64
        %v1845 = vld [vmem:[%s1844] sm:$0xff]
        %v1846 = vld [vmem:[%s1844 + $0x8] sm:$0xff]
        %v1847 = vld [vmem:[%s1844 + $0x10] sm:$0xff]
        %v1848 = vld [vmem:[%s1844 + $0x18] sm:$0xff]
        %v1849 = vld [vmem:[%s1844 + $0x20] sm:$0xff]
        %v1850 = vld [vmem:[%s1844 + $0x28] sm:$0xff]
        %v1851 = vld [vmem:[%s1844 + $0x30] sm:$0xff]
        %v1852 = vld [vmem:[%s1844 + $0x38] sm:$0xff]
        %1854 = vset.pattern.permute.xlu0 0
        %1855 = vperm.xlu0 %1854, %v1845
        %v1856 = vpop.permute.xlu0 %1855
        %1859 = vset.pattern.permute.xlu0 0
        %1860 = vperm.xlu0 %1859, %v1846
        %v1861 = vpop.permute.xlu0 %1860
        %1864 = vset.pattern.permute.xlu0 0
        %1865 = vperm.xlu0 %1864, %v1847
        %v1866 = vpop.permute.xlu0 %1865
        %1869 = vset.pattern.permute.xlu0 0
        %1870 = vperm.xlu0 %1869, %v1848
        %v1871 = vpop.permute.xlu0 %1870
        %1874 = vset.pattern.permute.xlu0 0
        %1875 = vperm.xlu0 %1874, %v1849
        %v1876 = vpop.permute.xlu0 %1875
        %1879 = vset.pattern.permute.xlu0 0
        %1880 = vperm.xlu0 %1879, %v1850
        %v1881 = vpop.permute.xlu0 %1880
        %1884 = vset.pattern.permute.xlu0 0
        %1885 = vperm.xlu0 %1884, %v1851
        %v1886 = vpop.permute.xlu0 %1885
        %1889 = vset.pattern.permute.xlu0 0
        %1890 = vperm.xlu0 %1889, %v1852
        %v1891 = vpop.permute.xlu0 %1890
        %v1893 = vadd.f32 %v1836, %v1856
        %v1894 = vadd.f32 %v1837, %v1861
        %v1895 = vadd.f32 %v1838, %v1866
        %v1896 = vadd.f32 %v1839, %v1871
        %v1897 = vadd.f32 %v1840, %v1876
        %v1898 = vadd.f32 %v1841, %v1881
        %v1899 = vadd.f32 %v1842, %v1886
        %v1900 = vadd.f32 %v1843, %v1891
        %v1901 = vmax.f32 %v1893, 0.0
        %v1902 = vmax.f32 %v1894, 0.0
        %v1903 = vmax.f32 %v1895, 0.0
        %v1904 = vmax.f32 %v1896, 0.0
        %v1905 = vmax.f32 %v1897, 0.0
        %v1906 = vmax.f32 %v1898, 0.0
        %v1907 = vmax.f32 %v1899, 0.0
        %v1908 = vmax.f32 %v1900, 0.0
        %s1909 = scalar_lea.vmem %s7, 16
        %v1910 = vld [vmem:[%s1909] sm:$0xf]
        %v1911 = vld [vmem:[%s1909 + $0x4] sm:$0xf]
        %v1912 = vld [vmem:[%s1909 + $0x8] sm:$0xf]
        %v1913 = vld [vmem:[%s1909 + $0xc] sm:$0xf]
        %v1914 = vpack.c.bf16 %v1902, %v1901
        %v1915 = vpack.c.bf16 %v1904, %v1903
        %v1916 = vpack.c.bf16 %v1906, %v1905
        %v1917 = vpack.c.bf16 %v1908, %v1907
        %s1918 = scalar_lea.vmem %s8, 32
        %v1919 = vld [vmem:[%s1918] sm:$0xff]
        %v1920 = vld [vmem:[%s1918 + $0x8] sm:$0xff]
        %v1921 = vld [vmem:[%s1918 + $0x10] sm:$0xff]
        %v1922 = vld [vmem:[%s1918 + $0x18] sm:$0xff]
        %1924 = vset.pattern.permute.xlu0 0
        %1925 = vperm.xlu0 %1924, %v1919
        %v1926 = vpop.permute.xlu0 %1925
        %1929 = vset.pattern.permute.xlu0 0
        %1930 = vperm.xlu0 %1929, %v1920
        %v1931 = vpop.permute.xlu0 %1930
        %1934 = vset.pattern.permute.xlu0 0
        %1935 = vperm.xlu0 %1934, %v1921
        %v1936 = vpop.permute.xlu0 %1935
        %1939 = vset.pattern.permute.xlu0 0
        %1940 = vperm.xlu0 %1939, %v1922
        %v1941 = vpop.permute.xlu0 %1940
        %v1947 = vunpack.c.l.b16 %v1910
        %v1948 = vunpack.c.l.b16 %v1911
        %v1949 = vunpack.c.l.b16 %v1912
        %v1950 = vunpack.c.l.b16 %v1913
        %v1951 = vpack.c.b16 %v1948, %v1947
        %v1952 = vpack.c.b16 %v1950, %v1949
        %v1954 = vsel %vm990, %v1951, 0
        %v1957 = vsel %vm990, %v1952, 0
        %1959 = vmatpush.bf16.msra.mxu0 0
        %1960 = vmatpush.bf16.msra.mxu0 0
        %1961 = vmatpush.bf16.msra.mxu0 0
        %1962 = vmatpush.bf16.msra.mxu0 0
        %1963 = vmatpush.bf16.msra.mxu0 %v1917
        %1964 = vmatpush.bf16.msra.mxu0 %v1916
        %1965 = vmatpush.bf16.msra.mxu0 %v1915
        %1966 = vmatpush.bf16.msra.mxu0 %v1914
        %1967 = vmatmul.bf16.gmra.mxu0 %v1954
        %v1968 = vpop.f32.mrf.mxu0
        %v1969 = vadd.f32 %v1926, %v1968
        %v1970 = vpop.f32.mrf.mxu0
        %v1971 = vadd.f32 %v1931, %v1970
        %1972 = vmatmul.bf16.gmra.mxu0 %v1957
        %v1973 = vpop.f32.mrf.mxu0
        %v1974 = vadd.f32 %v1936, %v1973
        %v1975 = vpop.f32.mrf.mxu0
        %v1976 = vadd.f32 %v1941, %v1975
        %1977 = vdwg.mxu0
        %v1978 = vmax.f32 %v1969, 0.0
        %v1979 = vmax.f32 %v1971, 0.0
        %v1980 = vmax.f32 %v1974, 0.0
        %v1981 = vmax.f32 %v1976, 0.0
        %s1982 = scalar_lea.vmem %s9, 32
        %v1983 = vld [vmem:[%s1982] sm:$0xf]
        %v1984 = vld [vmem:[%s1982 + $0x4] sm:$0xf]
        %v1985 = vld [vmem:[%s1982 + $0x8] sm:$0xf]
        %v1986 = vld [vmem:[%s1982 + $0xc] sm:$0xf]
        %v1987 = vld [vmem:[%s1982 + $0x10] sm:$0xf]
        %v1988 = vld [vmem:[%s1982 + $0x14] sm:$0xf]
        %v1989 = vld [vmem:[%s1982 + $0x18] sm:$0xf]
        %v1990 = vld [vmem:[%s1982 + $0x1c] sm:$0xf]
        %v1991 = vpack.c.bf16 %v1979, %v1978
        %v1992 = vpack.c.bf16 %v1981, %v1980
        %s1993 = scalar_lea.vmem %s10, 64
        %v1994 = vld [vmem:[%s1993] sm:$0xff]
        %v1995 = vld [vmem:[%s1993 + $0x8] sm:$0xff]
        %v1996 = vld [vmem:[%s1993 + $0x10] sm:$0xff]
        %v1997 = vld [vmem:[%s1993 + $0x18] sm:$0xff]
        %v1998 = vld [vmem:[%s1993 + $0x20] sm:$0xff]
        %v1999 = vld [vmem:[%s1993 + $0x28] sm:$0xff]
        %v2000 = vld [vmem:[%s1993 + $0x30] sm:$0xff]
        %v2001 = vld [vmem:[%s1993 + $0x38] sm:$0xff]
        %2003 = vset.pattern.permute.xlu0 0
        %2004 = vperm.xlu0 %2003, %v1994
        %v2005 = vpop.permute.xlu0 %2004
        %2008 = vset.pattern.permute.xlu0 0
        %2009 = vperm.xlu0 %2008, %v1995
        %v2010 = vpop.permute.xlu0 %2009
        %2013 = vset.pattern.permute.xlu0 0
        %2014 = vperm.xlu0 %2013, %v1996
        %v2015 = vpop.permute.xlu0 %2014
        %2018 = vset.pattern.permute.xlu0 0
        %2019 = vperm.xlu0 %2018, %v1997
        %v2020 = vpop.permute.xlu0 %2019
        %2023 = vset.pattern.permute.xlu0 0
        %2024 = vperm.xlu0 %2023, %v1998
        %v2025 = vpop.permute.xlu0 %2024
        %2028 = vset.pattern.permute.xlu0 0
        %2029 = vperm.xlu0 %2028, %v1999
        %v2030 = vpop.permute.xlu0 %2029
        %2033 = vset.pattern.permute.xlu0 0
        %2034 = vperm.xlu0 %2033, %v2000
        %v2035 = vpop.permute.xlu0 %2034
        %2038 = vset.pattern.permute.xlu0 0
        %2039 = vperm.xlu0 %2038, %v2001
        %v2040 = vpop.permute.xlu0 %2039
        %v2050 = vunpack.c.l.b16 %v1983
        %v2051 = vunpack.c.l.b16 %v1984
        %v2052 = vunpack.c.l.b16 %v1985
        %v2053 = vunpack.c.l.b16 %v1986
        %v2054 = vunpack.c.l.b16 %v1987
        %v2055 = vunpack.c.l.b16 %v1988
        %v2056 = vunpack.c.l.b16 %v1989
        %v2057 = vunpack.c.l.b16 %v1990
        %v2058 = vpack.c.b16 %v2051, %v2050
        %v2059 = vpack.c.b16 %v2053, %v2052
        %v2060 = vpack.c.b16 %v2055, %v2054
        %v2061 = vpack.c.b16 %v2057, %v2056
        %v2063 = vsel %vm1309, %v2058, 0
        %v2066 = vsel %vm1309, %v2059, 0
        %v2069 = vsel %vm1309, %v2060, 0
        %v2072 = vsel %vm1309, %v2061, 0
        %2074 = vmatpush.bf16.msra.mxu0 0
        %2075 = vmatpush.bf16.msra.mxu0 0
        %2076 = vmatpush.bf16.msra.mxu0 0
        %2077 = vmatpush.bf16.msra.mxu0 0
        %2078 = vmatpush.bf16.msra.mxu0 0
        %2079 = vmatpush.bf16.msra.mxu0 0
        %2080 = vmatpush.bf16.msra.mxu0 %v1992
        %2081 = vmatpush.bf16.msra.mxu0 %v1991
        %2082 = vmatmul.bf16.gmra.mxu0 %v2063
        %v2083 = vpop.f32.mrf.mxu0
        %v2084 = vadd.f32 %v2005, %v2083
        %v2085 = vpop.f32.mrf.mxu0
        %v2086 = vadd.f32 %v2010, %v2085
        %2087 = vmatmul.bf16.gmra.mxu0 %v2066
        %v2088 = vpop.f32.mrf.mxu0
        %v2089 = vadd.f32 %v2015, %v2088
        %v2090 = vpop.f32.mrf.mxu0
        %v2091 = vadd.f32 %v2020, %v2090
        %2092 = vmatmul.bf16.gmra.mxu0 %v2069
        %v2093 = vpop.f32.mrf.mxu0
        %v2094 = vadd.f32 %v2025, %v2093
        %v2095 = vpop.f32.mrf.mxu0
        %v2096 = vadd.f32 %v2030, %v2095
        %2097 = vmatmul.bf16.gmra.mxu0 %v2072
        %v2098 = vpop.f32.mrf.mxu0
        %v2099 = vadd.f32 %v2035, %v2098
        %v2100 = vpop.f32.mrf.mxu0
        %v2101 = vadd.f32 %v2040, %v2100
        %2102 = vdwg.mxu0
        %s2103 = scalar_lea.vmem %s15, 32
        %v2104 = vld [vmem:[%s2103] sm:$0xf]
        %v2105 = vld [vmem:[%s2103 + $0x4] sm:$0xf]
        %v2106 = vld [vmem:[%s2103 + $0x8] sm:$0xf]
        %v2107 = vld [vmem:[%s2103 + $0xc] sm:$0xf]
        %v2108 = vld [vmem:[%s2103 + $0x10] sm:$0xf]
        %v2109 = vld [vmem:[%s2103 + $0x14] sm:$0xf]
        %v2110 = vld [vmem:[%s2103 + $0x18] sm:$0xf]
        %v2111 = vld [vmem:[%s2103 + $0x1c] sm:$0xf]
        %v2112 = vpack.c.bf16 %v2086, %v2084
        %v2113 = vpack.c.bf16 %v2091, %v2089
        %v2114 = vpack.c.bf16 %v2096, %v2094
        %v2115 = vpack.c.bf16 %v2101, %v2099
        %v2124 = vunpack.c.l.b16 %v2104
        %v2125 = vunpack.c.l.b16 %v2105
        %v2126 = vunpack.c.l.b16 %v2106
        %v2127 = vunpack.c.l.b16 %v2107
        %v2128 = vunpack.c.l.b16 %v2108
        %v2129 = vunpack.c.l.b16 %v2109
        %v2130 = vunpack.c.l.b16 %v2110
        %v2131 = vunpack.c.l.b16 %v2111
        %v2132 = vpack.c.b16 %v2125, %v2124
        %v2133 = vpack.c.b16 %v2127, %v2126
        %v2134 = vpack.c.b16 %v2129, %v2128
        %v2135 = vpack.c.b16 %v2131, %v2130
        %v2137 = vsel %vm990, %v2132, 0
        %v2140 = vsel %vm990, %v2133, 0
        %v2143 = vsel %vm990, %v2134, 0
        %v2146 = vsel %vm990, %v2135, 0
        %2148 = vmatpush.bf16.msra.mxu0 0
        %2149 = vmatpush.bf16.msra.mxu0 0
        %2150 = vmatpush.bf16.msra.mxu0 0
        %2151 = vmatpush.bf16.msra.mxu0 0
        %2152 = vmatpush.bf16.msra.mxu0 %v2115
        %2153 = vmatpush.bf16.msra.mxu0 %v2114
        %2154 = vmatpush.bf16.msra.mxu0 %v2113
        %2155 = vmatpush.bf16.msra.mxu0 %v2112
        %2156 = vmatmul.bf16.gmra.mxu0 %v2137
        %v2157 = vpop.f32.mrf.mxu0
        %v2158 = vadd.f32 0.0, %v2157
        %v2159 = vpop.f32.mrf.mxu0
        %v2160 = vadd.f32 0.0, %v2159
        %2161 = vmatmul.bf16.gmra.mxu0 %v2140
        %v2162 = vpop.f32.mrf.mxu0
        %v2163 = vadd.f32 0.0, %v2162
        %v2164 = vpop.f32.mrf.mxu0
        %v2165 = vadd.f32 0.0, %v2164
        %2166 = vmatmul.bf16.gmra.mxu0 %v2143
        %v2167 = vpop.f32.mrf.mxu0
        %v2168 = vadd.f32 0.0, %v2167
        %v2169 = vpop.f32.mrf.mxu0
        %v2170 = vadd.f32 0.0, %v2169
        %2171 = vmatmul.bf16.gmra.mxu0 %v2146
        %v2172 = vpop.f32.mrf.mxu0
        %v2173 = vadd.f32 0.0, %v2172
        %v2174 = vpop.f32.mrf.mxu0
        %v2175 = vadd.f32 0.0, %v2174
        %2176 = vdwg.mxu0
        %2177 = vadd.xlane.f32.xlu0 %v2084
        %v2178 = vpop.xlane.xlu0 %2177
        %2179 = vadd.xlane.f32.xlu0 %v2086
        %v2180 = vpop.xlane.xlu0 %2179
        %2181 = vadd.xlane.f32.xlu0 %v2089
        %v2182 = vpop.xlane.xlu0 %2181
        %2183 = vadd.xlane.f32.xlu0 %v2091
        %v2184 = vpop.xlane.xlu0 %2183
        %2185 = vadd.xlane.f32.xlu0 %v2094
        %v2186 = vpop.xlane.xlu0 %2185
        %2187 = vadd.xlane.f32.xlu0 %v2096
        %v2188 = vpop.xlane.xlu0 %2187
        %2189 = vadd.xlane.f32.xlu0 %v2099
        %v2190 = vpop.xlane.xlu0 %2189
        %2191 = vadd.xlane.f32.xlu0 %v2101
        %v2192 = vpop.xlane.xlu0 %2191
        %v2193 = vmul.f32 %v2178, 0.0078125
        %v2194 = vmul.f32 %v2180, 0.0078125
        %v2195 = vmul.f32 %v2182, 0.0078125
        %v2196 = vmul.f32 %v2184, 0.0078125
        %v2197 = vmul.f32 %v2186, 0.0078125
        %v2198 = vmul.f32 %v2188, 0.0078125
        %v2199 = vmul.f32 %v2190, 0.0078125
        %v2200 = vmul.f32 %v2192, 0.0078125
        %2201 = vadd.xlane.f32.xlu0 %v2158
        %v2202 = vpop.xlane.xlu0 %2201
        %2203 = vadd.xlane.f32.xlu0 %v2160
        %v2204 = vpop.xlane.xlu0 %2203
        %2205 = vadd.xlane.f32.xlu0 %v2163
        %v2206 = vpop.xlane.xlu0 %2205
        %2207 = vadd.xlane.f32.xlu0 %v2165
        %v2208 = vpop.xlane.xlu0 %2207
        %2209 = vadd.xlane.f32.xlu0 %v2168
        %v2210 = vpop.xlane.xlu0 %2209
        %2211 = vadd.xlane.f32.xlu0 %v2170
        %v2212 = vpop.xlane.xlu0 %2211
        %2213 = vadd.xlane.f32.xlu0 %v2173
        %v2214 = vpop.xlane.xlu0 %2213
        %2215 = vadd.xlane.f32.xlu0 %v2175
        %v2216 = vpop.xlane.xlu0 %2215
        %v2217 = vmul.f32 %v2202, 0.0078125
        %v2218 = vmul.f32 %v2204, 0.0078125
        %v2219 = vmul.f32 %v2206, 0.0078125
        %v2220 = vmul.f32 %v2208, 0.0078125
        %v2221 = vmul.f32 %v2210, 0.0078125
        %v2222 = vmul.f32 %v2212, 0.0078125
        %v2223 = vmul.f32 %v2214, 0.0078125
        %v2224 = vmul.f32 %v2216, 0.0078125
        %s2225 = scalar_lea.vmem %s11, 64
        %v2226 = vld [vmem:[%s2225] sm:$0xff]
        %v2227 = vld [vmem:[%s2225 + $0x8] sm:$0xff]
        %v2228 = vld [vmem:[%s2225 + $0x10] sm:$0xff]
        %v2229 = vld [vmem:[%s2225 + $0x18] sm:$0xff]
        %v2230 = vld [vmem:[%s2225 + $0x20] sm:$0xff]
        %v2231 = vld [vmem:[%s2225 + $0x28] sm:$0xff]
        %v2232 = vld [vmem:[%s2225 + $0x30] sm:$0xff]
        %v2233 = vld [vmem:[%s2225 + $0x38] sm:$0xff]
        %s2234 = scalar_lea.vmem %s12, 64
        %v2235 = vld [vmem:[%s2234] sm:$0xff]
        %v2236 = vld [vmem:[%s2234 + $0x8] sm:$0xff]
        %v2237 = vld [vmem:[%s2234 + $0x10] sm:$0xff]
        %v2238 = vld [vmem:[%s2234 + $0x18] sm:$0xff]
        %v2239 = vld [vmem:[%s2234 + $0x20] sm:$0xff]
        %v2240 = vld [vmem:[%s2234 + $0x28] sm:$0xff]
        %v2241 = vld [vmem:[%s2234 + $0x30] sm:$0xff]
        %v2242 = vld [vmem:[%s2234 + $0x38] sm:$0xff]
        %v2244 = vsel %vm990, %v2226, 0
        %v2247 = vsel %vm990, %v2227, 0
        %v2250 = vsel %vm990, %v2228, 0
        %v2253 = vsel %vm990, %v2229, 0
        %v2256 = vsel %vm990, %v2230, 0
        %v2259 = vsel %vm990, %v2231, 0
        %v2262 = vsel %vm990, %v2232, 0
        %v2265 = vsel %vm990, %v2233, 0
        %2267 = vmatpush.msra.mxu0 0.0
        %2268 = vmatpush.msra.mxu0 0.0
        %2269 = vmatpush.msra.mxu0 0.0
        %2270 = vmatpush.msra.mxu0 0.0
        %2271 = vmatpush.msra.mxu0 0.0
        %2272 = vmatpush.msra.mxu0 0.0
        %2273 = vmatpush.msra.mxu0 0.0
        %2274 = vmatpush.msra.mxu0 0.0
        %2275 = vmatpush.msra.mxu0 %v2200
        %2276 = vmatpush.msra.mxu0 %v2199
        %2277 = vmatpush.msra.mxu0 %v2198
        %2278 = vmatpush.msra.mxu0 %v2197
        %2279 = vmatpush.msra.mxu0 %v2196
        %2280 = vmatpush.msra.mxu0 %v2195
        %2281 = vmatpush.msra.mxu0 %v2194
        %2282 = vmatpush.msra.mxu0 %v2193
        %2283 = vmatmul.f32.gmra.mxu0 %v2244
        %v2284 = vpop.f32.mrf.mxu0
        %v2285 = vadd.f32 %v2235, %v2284
        %2286 = vmatmul.f32.gmra.mxu0 %v2247
        %v2287 = vpop.f32.mrf.mxu0
        %v2288 = vadd.f32 %v2236, %v2287
        %2289 = vmatmul.f32.gmra.mxu0 %v2250
        %v2290 = vpop.f32.mrf.mxu0
        %v2291 = vadd.f32 %v2237, %v2290
        %2292 = vmatmul.f32.gmra.mxu0 %v2253
        %v2293 = vpop.f32.mrf.mxu0
        %v2294 = vadd.f32 %v2238, %v2293
        %2295 = vmatmul.f32.gmra.mxu0 %v2256
        %v2296 = vpop.f32.mrf.mxu0
        %v2297 = vadd.f32 %v2239, %v2296
        %2298 = vmatmul.f32.gmra.mxu0 %v2259
        %v2299 = vpop.f32.mrf.mxu0
        %v2300 = vadd.f32 %v2240, %v2299
        %2301 = vmatmul.f32.gmra.mxu0 %v2262
        %v2302 = vpop.f32.mrf.mxu0
        %v2303 = vadd.f32 %v2241, %v2302
        %2304 = vmatmul.f32.gmra.mxu0 %v2265
        %v2305 = vpop.f32.mrf.mxu0
        %v2306 = vadd.f32 %v2242, %v2305
        %2307 = vdwg.mxu0
        %v2308 = vmax.f32 %v2285, 0.0
        %v2309 = vmax.f32 %v2288, 0.0
        %v2310 = vmax.f32 %v2291, 0.0
        %v2311 = vmax.f32 %v2294, 0.0
        %v2312 = vmax.f32 %v2297, 0.0
        %v2313 = vmax.f32 %v2300, 0.0
        %v2314 = vmax.f32 %v2303, 0.0
        %v2315 = vmax.f32 %v2306, 0.0
        %s2316 = scalar_lea.vmem %s13, 64
        %v2317 = vld [vmem:[%s2316] sm:$0xff]
        %v2318 = vld [vmem:[%s2316 + $0x8] sm:$0xff]
        %v2319 = vld [vmem:[%s2316 + $0x10] sm:$0xff]
        %v2320 = vld [vmem:[%s2316 + $0x18] sm:$0xff]
        %v2321 = vld [vmem:[%s2316 + $0x20] sm:$0xff]
        %v2322 = vld [vmem:[%s2316 + $0x28] sm:$0xff]
        %v2323 = vld [vmem:[%s2316 + $0x30] sm:$0xff]
        %v2324 = vld [vmem:[%s2316 + $0x38] sm:$0xff]
        %s2325 = scalar_lea.vmem %s14, 64
        %v2326 = vld [vmem:[%s2325] sm:$0xff]
        %v2327 = vld [vmem:[%s2325 + $0x8] sm:$0xff]
        %v2328 = vld [vmem:[%s2325 + $0x10] sm:$0xff]
        %v2329 = vld [vmem:[%s2325 + $0x18] sm:$0xff]
        %v2330 = vld [vmem:[%s2325 + $0x20] sm:$0xff]
        %v2331 = vld [vmem:[%s2325 + $0x28] sm:$0xff]
        %v2332 = vld [vmem:[%s2325 + $0x30] sm:$0xff]
        %v2333 = vld [vmem:[%s2325 + $0x38] sm:$0xff]
        %v2335 = vsel %vm990, %v2317, 0
        %v2338 = vsel %vm990, %v2318, 0
        %v2341 = vsel %vm990, %v2319, 0
        %v2344 = vsel %vm990, %v2320, 0
        %v2347 = vsel %vm990, %v2321, 0
        %v2350 = vsel %vm990, %v2322, 0
        %v2353 = vsel %vm990, %v2323, 0
        %v2356 = vsel %vm990, %v2324, 0
        %2358 = vmatpush.msra.mxu0 0.0
        %2359 = vmatpush.msra.mxu0 0.0
        %2360 = vmatpush.msra.mxu0 0.0
        %2361 = vmatpush.msra.mxu0 0.0
        %2362 = vmatpush.msra.mxu0 0.0
        %2363 = vmatpush.msra.mxu0 0.0
        %2364 = vmatpush.msra.mxu0 0.0
        %2365 = vmatpush.msra.mxu0 0.0
        %2366 = vmatpush.msra.mxu0 %v2315
        %2367 = vmatpush.msra.mxu0 %v2314
        %2368 = vmatpush.msra.mxu0 %v2313
        %2369 = vmatpush.msra.mxu0 %v2312
        %2370 = vmatpush.msra.mxu0 %v2311
        %2371 = vmatpush.msra.mxu0 %v2310
        %2372 = vmatpush.msra.mxu0 %v2309
        %2373 = vmatpush.msra.mxu0 %v2308
        %2374 = vmatmul.f32.gmra.mxu0 %v2335
        %v2375 = vpop.f32.mrf.mxu0
        %v2376 = vadd.f32 %v2326, %v2375
        %2377 = vmatmul.f32.gmra.mxu0 %v2338
        %v2378 = vpop.f32.mrf.mxu0
        %v2379 = vadd.f32 %v2327, %v2378
        %2380 = vmatmul.f32.gmra.mxu0 %v2341
        %v2381 = vpop.f32.mrf.mxu0
        %v2382 = vadd.f32 %v2328, %v2381
        %2383 = vmatmul.f32.gmra.mxu0 %v2344
        %v2384 = vpop.f32.mrf.mxu0
        %v2385 = vadd.f32 %v2329, %v2384
        %2386 = vmatmul.f32.gmra.mxu0 %v2347
        %v2387 = vpop.f32.mrf.mxu0
        %v2388 = vadd.f32 %v2330, %v2387
        %2389 = vmatmul.f32.gmra.mxu0 %v2350
        %v2390 = vpop.f32.mrf.mxu0
        %v2391 = vadd.f32 %v2331, %v2390
        %2392 = vmatmul.f32.gmra.mxu0 %v2353
        %v2393 = vpop.f32.mrf.mxu0
        %v2394 = vadd.f32 %v2332, %v2393
        %2395 = vmatmul.f32.gmra.mxu0 %v2356
        %v2396 = vpop.f32.mrf.mxu0
        %v2397 = vadd.f32 %v2333, %v2396
        %2398 = vdwg.mxu0
        %v2399 = vadd.f32 %v1779, %v2158
        %v2400 = vadd.f32 %v1780, %v2160
        %v2401 = vadd.f32 %v1781, %v2163
        %v2402 = vadd.f32 %v1782, %v2165
        %v2403 = vadd.f32 %v1783, %v2168
        %v2404 = vadd.f32 %v1784, %v2170
        %v2405 = vadd.f32 %v1785, %v2173
        %v2406 = vadd.f32 %v1786, %v2175
        %s2407 = scalar_lea.vmem %s16, 64
        %v2408 = vld [vmem:[%s2407] sm:$0xff]
        %v2409 = vld [vmem:[%s2407 + $0x8] sm:$0xff]
        %v2410 = vld [vmem:[%s2407 + $0x10] sm:$0xff]
        %v2411 = vld [vmem:[%s2407 + $0x18] sm:$0xff]
        %v2412 = vld [vmem:[%s2407 + $0x20] sm:$0xff]
        %v2413 = vld [vmem:[%s2407 + $0x28] sm:$0xff]
        %v2414 = vld [vmem:[%s2407 + $0x30] sm:$0xff]
        %v2415 = vld [vmem:[%s2407 + $0x38] sm:$0xff]
        %s2416 = scalar_lea.vmem %s17, 64
        %v2417 = vld [vmem:[%s2416] sm:$0xff]
        %v2418 = vld [vmem:[%s2416 + $0x8] sm:$0xff]
        %v2419 = vld [vmem:[%s2416 + $0x10] sm:$0xff]
        %v2420 = vld [vmem:[%s2416 + $0x18] sm:$0xff]
        %v2421 = vld [vmem:[%s2416 + $0x20] sm:$0xff]
        %v2422 = vld [vmem:[%s2416 + $0x28] sm:$0xff]
        %v2423 = vld [vmem:[%s2416 + $0x30] sm:$0xff]
        %v2424 = vld [vmem:[%s2416 + $0x38] sm:$0xff]
        %v2426 = vsel %vm990, %v2408, 0
        %v2429 = vsel %vm990, %v2409, 0
        %v2432 = vsel %vm990, %v2410, 0
        %v2435 = vsel %vm990, %v2411, 0
        %v2438 = vsel %vm990, %v2412, 0
        %v2441 = vsel %vm990, %v2413, 0
        %v2444 = vsel %vm990, %v2414, 0
        %v2447 = vsel %vm990, %v2415, 0
        %2449 = vmatpush.msra.mxu0 0.0
        %2450 = vmatpush.msra.mxu0 0.0
        %2451 = vmatpush.msra.mxu0 0.0
        %2452 = vmatpush.msra.mxu0 0.0
        %2453 = vmatpush.msra.mxu0 0.0
        %2454 = vmatpush.msra.mxu0 0.0
        %2455 = vmatpush.msra.mxu0 0.0
        %2456 = vmatpush.msra.mxu0 0.0
        %2457 = vmatpush.msra.mxu0 %v2397
        %2458 = vmatpush.msra.mxu0 %v2394
        %2459 = vmatpush.msra.mxu0 %v2391
        %2460 = vmatpush.msra.mxu0 %v2388
        %2461 = vmatpush.msra.mxu0 %v2385
        %2462 = vmatpush.msra.mxu0 %v2382
        %2463 = vmatpush.msra.mxu0 %v2379
        %2464 = vmatpush.msra.mxu0 %v2376
        %2465 = vmatmul.f32.gmra.mxu0 %v2426
        %v2466 = vpop.f32.mrf.mxu0
        %v2467 = vadd.f32 %v2417, %v2466
        %2468 = vmatmul.f32.gmra.mxu0 %v2429
        %v2469 = vpop.f32.mrf.mxu0
        %v2470 = vadd.f32 %v2418, %v2469
        %2471 = vmatmul.f32.gmra.mxu0 %v2432
        %v2472 = vpop.f32.mrf.mxu0
        %v2473 = vadd.f32 %v2419, %v2472
        %2474 = vmatmul.f32.gmra.mxu0 %v2435
        %v2475 = vpop.f32.mrf.mxu0
        %v2476 = vadd.f32 %v2420, %v2475
        %2477 = vmatmul.f32.gmra.mxu0 %v2438
        %v2478 = vpop.f32.mrf.mxu0
        %v2479 = vadd.f32 %v2421, %v2478
        %2480 = vmatmul.f32.gmra.mxu0 %v2441
        %v2481 = vpop.f32.mrf.mxu0
        %v2482 = vadd.f32 %v2422, %v2481
        %2483 = vmatmul.f32.gmra.mxu0 %v2444
        %v2484 = vpop.f32.mrf.mxu0
        %v2485 = vadd.f32 %v2423, %v2484
        %2486 = vmatmul.f32.gmra.mxu0 %v2447
        %v2487 = vpop.f32.mrf.mxu0
        %v2488 = vadd.f32 %v2424, %v2487
        %2489 = vdwg.mxu0
        %v2490 = vsub.f32 %v2467, %v2217
        %v2491 = vsub.f32 %v2470, %v2218
        %v2492 = vsub.f32 %v2473, %v2219
        %v2493 = vsub.f32 %v2476, %v2220
        %v2494 = vsub.f32 %v2479, %v2221
        %v2495 = vsub.f32 %v2482, %v2222
        %v2496 = vsub.f32 %v2485, %v2223
        %v2497 = vsub.f32 %v2488, %v2224
        %2499 = vset.pattern.permute.xlu0 0
        %2500 = vperm.xlu0 %2499, %v2490
        %v2501 = vpop.permute.xlu0 %2500
        %2504 = vset.pattern.permute.xlu0 0
        %2505 = vperm.xlu0 %2504, %v2491
        %v2506 = vpop.permute.xlu0 %2505
        %2509 = vset.pattern.permute.xlu0 0
        %2510 = vperm.xlu0 %2509, %v2492
        %v2511 = vpop.permute.xlu0 %2510
        %2514 = vset.pattern.permute.xlu0 0
        %2515 = vperm.xlu0 %2514, %v2493
        %v2516 = vpop.permute.xlu0 %2515
        %2519 = vset.pattern.permute.xlu0 0
        %2520 = vperm.xlu0 %2519, %v2494
        %v2521 = vpop.permute.xlu0 %2520
        %2524 = vset.pattern.permute.xlu0 0
        %2525 = vperm.xlu0 %2524, %v2495
        %v2526 = vpop.permute.xlu0 %2525
        %2529 = vset.pattern.permute.xlu0 0
        %2530 = vperm.xlu0 %2529, %v2496
        %v2531 = vpop.permute.xlu0 %2530
        %2534 = vset.pattern.permute.xlu0 0
        %2535 = vperm.xlu0 %2534, %v2497
        %v2536 = vpop.permute.xlu0 %2535
        %v2538 = vadd.f32 %v2399, %v2501
        %v2539 = vadd.f32 %v2400, %v2506
        %v2540 = vadd.f32 %v2401, %v2511
        %v2541 = vadd.f32 %v2402, %v2516
        %v2542 = vadd.f32 %v2403, %v2521
        %v2543 = vadd.f32 %v2404, %v2526
        %v2544 = vadd.f32 %v2405, %v2531
        %v2545 = vadd.f32 %v2406, %v2536
        %s2546 = scalar_lea.vmem %s5, 128
        %v2547 = vld [vmem:[%s2546] sm:$0xff]
        %v2548 = vld [vmem:[%s2546 + $0x8] sm:$0xff]
        %v2549 = vld [vmem:[%s2546 + $0x10] sm:$0xff]
        %v2550 = vld [vmem:[%s2546 + $0x18] sm:$0xff]
        %v2551 = vld [vmem:[%s2546 + $0x20] sm:$0xff]
        %v2552 = vld [vmem:[%s2546 + $0x28] sm:$0xff]
        %v2553 = vld [vmem:[%s2546 + $0x30] sm:$0xff]
        %v2554 = vld [vmem:[%s2546 + $0x38] sm:$0xff]
        %2556 = vset.pattern.permute.xlu0 0
        %2557 = vperm.xlu0 %2556, %v2547
        %v2558 = vpop.permute.xlu0 %2557
        %2561 = vset.pattern.permute.xlu0 0
        %2562 = vperm.xlu0 %2561, %v2548
        %v2563 = vpop.permute.xlu0 %2562
        %2566 = vset.pattern.permute.xlu0 0
        %2567 = vperm.xlu0 %2566, %v2549
        %v2568 = vpop.permute.xlu0 %2567
        %2571 = vset.pattern.permute.xlu0 0
        %2572 = vperm.xlu0 %2571, %v2550
        %v2573 = vpop.permute.xlu0 %2572
        %2576 = vset.pattern.permute.xlu0 0
        %2577 = vperm.xlu0 %2576, %v2551
        %v2578 = vpop.permute.xlu0 %2577
        %2581 = vset.pattern.permute.xlu0 0
        %2582 = vperm.xlu0 %2581, %v2552
        %v2583 = vpop.permute.xlu0 %2582
        %2586 = vset.pattern.permute.xlu0 0
        %2587 = vperm.xlu0 %2586, %v2553
        %v2588 = vpop.permute.xlu0 %2587
        %2591 = vset.pattern.permute.xlu0 0
        %2592 = vperm.xlu0 %2591, %v2554
        %v2593 = vpop.permute.xlu0 %2592
        %v2595 = vmul.f32 %v2538, %v2558
        %v2596 = vmul.f32 %v2539, %v2563
        %v2597 = vmul.f32 %v2540, %v2568
        %v2598 = vmul.f32 %v2541, %v2573
        %v2599 = vmul.f32 %v2542, %v2578
        %v2600 = vmul.f32 %v2543, %v2583
        %v2601 = vmul.f32 %v2544, %v2588
        %v2602 = vmul.f32 %v2545, %v2593
        %s2603 = scalar_lea.vmem %s6, 128
        %v2604 = vld [vmem:[%s2603] sm:$0xff]
        %v2605 = vld [vmem:[%s2603 + $0x8] sm:$0xff]
        %v2606 = vld [vmem:[%s2603 + $0x10] sm:$0xff]
        %v2607 = vld [vmem:[%s2603 + $0x18] sm:$0xff]
        %v2608 = vld [vmem:[%s2603 + $0x20] sm:$0xff]
        %v2609 = vld [vmem:[%s2603 + $0x28] sm:$0xff]
        %v2610 = vld [vmem:[%s2603 + $0x30] sm:$0xff]
        %v2611 = vld [vmem:[%s2603 + $0x38] sm:$0xff]
        %2613 = vset.pattern.permute.xlu0 0
        %2614 = vperm.xlu0 %2613, %v2604
        %v2615 = vpop.permute.xlu0 %2614
        %2618 = vset.pattern.permute.xlu0 0
        %2619 = vperm.xlu0 %2618, %v2605
        %v2620 = vpop.permute.xlu0 %2619
        %2623 = vset.pattern.permute.xlu0 0
        %2624 = vperm.xlu0 %2623, %v2606
        %v2625 = vpop.permute.xlu0 %2624
        %2628 = vset.pattern.permute.xlu0 0
        %2629 = vperm.xlu0 %2628, %v2607
        %v2630 = vpop.permute.xlu0 %2629
        %2633 = vset.pattern.permute.xlu0 0
        %2634 = vperm.xlu0 %2633, %v2608
        %v2635 = vpop.permute.xlu0 %2634
        %2638 = vset.pattern.permute.xlu0 0
        %2639 = vperm.xlu0 %2638, %v2609
        %v2640 = vpop.permute.xlu0 %2639
        %2643 = vset.pattern.permute.xlu0 0
        %2644 = vperm.xlu0 %2643, %v2610
        %v2645 = vpop.permute.xlu0 %2644
        %2648 = vset.pattern.permute.xlu0 0
        %2649 = vperm.xlu0 %2648, %v2611
        %v2650 = vpop.permute.xlu0 %2649
        %v2652 = vadd.f32 %v2595, %v2615
        %v2653 = vadd.f32 %v2596, %v2620
        %v2654 = vadd.f32 %v2597, %v2625
        %v2655 = vadd.f32 %v2598, %v2630
        %v2656 = vadd.f32 %v2599, %v2635
        %v2657 = vadd.f32 %v2600, %v2640
        %v2658 = vadd.f32 %v2601, %v2645
        %v2659 = vadd.f32 %v2602, %v2650
        %v2660 = vmax.f32 %v2652, 0.0
        %v2661 = vmax.f32 %v2653, 0.0
        %v2662 = vmax.f32 %v2654, 0.0
        %v2663 = vmax.f32 %v2655, 0.0
        %v2664 = vmax.f32 %v2656, 0.0
        %v2665 = vmax.f32 %v2657, 0.0
        %v2666 = vmax.f32 %v2658, 0.0
        %v2667 = vmax.f32 %v2659, 0.0
        %s2668 = scalar_lea.vmem %s7, 32
        %v2669 = vld [vmem:[%s2668] sm:$0xf]
        %v2670 = vld [vmem:[%s2668 + $0x4] sm:$0xf]
        %v2671 = vld [vmem:[%s2668 + $0x8] sm:$0xf]
        %v2672 = vld [vmem:[%s2668 + $0xc] sm:$0xf]
        %v2673 = vpack.c.bf16 %v2661, %v2660
        %v2674 = vpack.c.bf16 %v2663, %v2662
        %v2675 = vpack.c.bf16 %v2665, %v2664
        %v2676 = vpack.c.bf16 %v2667, %v2666
        %s2677 = scalar_lea.vmem %s8, 64
        %v2678 = vld [vmem:[%s2677] sm:$0xff]
        %v2679 = vld [vmem:[%s2677 + $0x8] sm:$0xff]
        %v2680 = vld [vmem:[%s2677 + $0x10] sm:$0xff]
        %v2681 = vld [vmem:[%s2677 + $0x18] sm:$0xff]
        %2683 = vset.pattern.permute.xlu0 0
        %2684 = vperm.xlu0 %2683, %v2678
        %v2685 = vpop.permute.xlu0 %2684
        %2688 = vset.pattern.permute.xlu0 0
        %2689 = vperm.xlu0 %2688, %v2679
        %v2690 = vpop.permute.xlu0 %2689
        %2693 = vset.pattern.permute.xlu0 0
        %2694 = vperm.xlu0 %2693, %v2680
        %v2695 = vpop.permute.xlu0 %2694
        %2698 = vset.pattern.permute.xlu0 0
        %2699 = vperm.xlu0 %2698, %v2681
        %v2700 = vpop.permute.xlu0 %2699
        %v2706 = vunpack.c.l.b16 %v2669
        %v2707 = vunpack.c.l.b16 %v2670
        %v2708 = vunpack.c.l.b16 %v2671
        %v2709 = vunpack.c.l.b16 %v2672
        %v2710 = vpack.c.b16 %v2707, %v2706
        %v2711 = vpack.c.b16 %v2709, %v2708
        %v2713 = vsel %vm990, %v2710, 0
        %v2716 = vsel %vm990, %v2711, 0
        %2718 = vmatpush.bf16.msra.mxu0 0
        %2719 = vmatpush.bf16.msra.mxu0 0
        %2720 = vmatpush.bf16.msra.mxu0 0
        %2721 = vmatpush.bf16.msra.mxu0 0
        %2722 = vmatpush.bf16.msra.mxu0 %v2676
        %2723 = vmatpush.bf16.msra.mxu0 %v2675
        %2724 = vmatpush.bf16.msra.mxu0 %v2674
        %2725 = vmatpush.bf16.msra.mxu0 %v2673
        %2726 = vmatmul.bf16.gmra.mxu0 %v2713
        %v2727 = vpop.f32.mrf.mxu0
        %v2728 = vadd.f32 %v2685, %v2727
        %v2729 = vpop.f32.mrf.mxu0
        %v2730 = vadd.f32 %v2690, %v2729
        %2731 = vmatmul.bf16.gmra.mxu0 %v2716
        %v2732 = vpop.f32.mrf.mxu0
        %v2733 = vadd.f32 %v2695, %v2732
        %v2734 = vpop.f32.mrf.mxu0
        %v2735 = vadd.f32 %v2700, %v2734
        %2736 = vdwg.mxu0
        %v2737 = vmax.f32 %v2728, 0.0
        %v2738 = vmax.f32 %v2730, 0.0
        %v2739 = vmax.f32 %v2733, 0.0
        %v2740 = vmax.f32 %v2735, 0.0
        %s2741 = scalar_lea.vmem %s9, 64
        %v2742 = vld [vmem:[%s2741] sm:$0xf]
        %v2743 = vld [vmem:[%s2741 + $0x4] sm:$0xf]
        %v2744 = vld [vmem:[%s2741 + $0x8] sm:$0xf]
        %v2745 = vld [vmem:[%s2741 + $0xc] sm:$0xf]
        %v2746 = vld [vmem:[%s2741 + $0x10] sm:$0xf]
        %v2747 = vld [vmem:[%s2741 + $0x14] sm:$0xf]
        %v2748 = vld [vmem:[%s2741 + $0x18] sm:$0xf]
        %v2749 = vld [vmem:[%s2741 + $0x1c] sm:$0xf]
        %v2750 = vpack.c.bf16 %v2738, %v2737
        %v2751 = vpack.c.bf16 %v2740, %v2739
        %s2752 = scalar_lea.vmem %s10, 128
        %v2753 = vld [vmem:[%s2752] sm:$0xff]
        %v2754 = vld [vmem:[%s2752 + $0x8] sm:$0xff]
        %v2755 = vld [vmem:[%s2752 + $0x10] sm:$0xff]
        %v2756 = vld [vmem:[%s2752 + $0x18] sm:$0xff]
        %v2757 = vld [vmem:[%s2752 + $0x20] sm:$0xff]
        %v2758 = vld [vmem:[%s2752 + $0x28] sm:$0xff]
        %v2759 = vld [vmem:[%s2752 + $0x30] sm:$0xff]
        %v2760 = vld [vmem:[%s2752 + $0x38] sm:$0xff]
        %2762 = vset.pattern.permute.xlu0 0
        %2763 = vperm.xlu0 %2762, %v2753
        %v2764 = vpop.permute.xlu0 %2763
        %2767 = vset.pattern.permute.xlu0 0
        %2768 = vperm.xlu0 %2767, %v2754
        %v2769 = vpop.permute.xlu0 %2768
        %2772 = vset.pattern.permute.xlu0 0
        %2773 = vperm.xlu0 %2772, %v2755
        %v2774 = vpop.permute.xlu0 %2773
        %2777 = vset.pattern.permute.xlu0 0
        %2778 = vperm.xlu0 %2777, %v2756
        %v2779 = vpop.permute.xlu0 %2778
        %2782 = vset.pattern.permute.xlu0 0
        %2783 = vperm.xlu0 %2782, %v2757
        %v2784 = vpop.permute.xlu0 %2783
        %2787 = vset.pattern.permute.xlu0 0
        %2788 = vperm.xlu0 %2787, %v2758
        %v2789 = vpop.permute.xlu0 %2788
        %2792 = vset.pattern.permute.xlu0 0
        %2793 = vperm.xlu0 %2792, %v2759
        %v2794 = vpop.permute.xlu0 %2793
        %2797 = vset.pattern.permute.xlu0 0
        %2798 = vperm.xlu0 %2797, %v2760
        %v2799 = vpop.permute.xlu0 %2798
        %v2809 = vunpack.c.l.b16 %v2742
        %v2810 = vunpack.c.l.b16 %v2743
        %v2811 = vunpack.c.l.b16 %v2744
        %v2812 = vunpack.c.l.b16 %v2745
        %v2813 = vunpack.c.l.b16 %v2746
        %v2814 = vunpack.c.l.b16 %v2747
        %v2815 = vunpack.c.l.b16 %v2748
        %v2816 = vunpack.c.l.b16 %v2749
        %v2817 = vpack.c.b16 %v2810, %v2809
        %v2818 = vpack.c.b16 %v2812, %v2811
        %v2819 = vpack.c.b16 %v2814, %v2813
        %v2820 = vpack.c.b16 %v2816, %v2815
        %v2822 = vsel %vm1309, %v2817, 0
        %v2825 = vsel %vm1309, %v2818, 0
        %v2828 = vsel %vm1309, %v2819, 0
        %v2831 = vsel %vm1309, %v2820, 0
        %2833 = vmatpush.bf16.msra.mxu0 0
        %2834 = vmatpush.bf16.msra.mxu0 0
        %2835 = vmatpush.bf16.msra.mxu0 0
        %2836 = vmatpush.bf16.msra.mxu0 0
        %2837 = vmatpush.bf16.msra.mxu0 0
        %2838 = vmatpush.bf16.msra.mxu0 0
        %2839 = vmatpush.bf16.msra.mxu0 %v2751
        %2840 = vmatpush.bf16.msra.mxu0 %v2750
        %2841 = vmatmul.bf16.gmra.mxu0 %v2822
        %v2842 = vpop.f32.mrf.mxu0
        %v2843 = vadd.f32 %v2764, %v2842
        %v2844 = vpop.f32.mrf.mxu0
        %v2845 = vadd.f32 %v2769, %v2844
        %2846 = vmatmul.bf16.gmra.mxu0 %v2825
        %v2847 = vpop.f32.mrf.mxu0
        %v2848 = vadd.f32 %v2774, %v2847
        %v2849 = vpop.f32.mrf.mxu0
        %v2850 = vadd.f32 %v2779, %v2849
        %2851 = vmatmul.bf16.gmra.mxu0 %v2828
        %v2852 = vpop.f32.mrf.mxu0
        %v2853 = vadd.f32 %v2784, %v2852
        %v2854 = vpop.f32.mrf.mxu0
        %v2855 = vadd.f32 %v2789, %v2854
        %2856 = vmatmul.bf16.gmra.mxu0 %v2831
        %v2857 = vpop.f32.mrf.mxu0
        %v2858 = vadd.f32 %v2794, %v2857
        %v2859 = vpop.f32.mrf.mxu0
        %v2860 = vadd.f32 %v2799, %v2859
        %2861 = vdwg.mxu0
        %s2862 = scalar_lea.vmem %s15, 64
        %v2863 = vld [vmem:[%s2862] sm:$0xf]
        %v2864 = vld [vmem:[%s2862 + $0x4] sm:$0xf]
        %v2865 = vld [vmem:[%s2862 + $0x8] sm:$0xf]
        %v2866 = vld [vmem:[%s2862 + $0xc] sm:$0xf]
        %v2867 = vld [vmem:[%s2862 + $0x10] sm:$0xf]
        %v2868 = vld [vmem:[%s2862 + $0x14] sm:$0xf]
        %v2869 = vld [vmem:[%s2862 + $0x18] sm:$0xf]
        %v2870 = vld [vmem:[%s2862 + $0x1c] sm:$0xf]
        %v2871 = vpack.c.bf16 %v2845, %v2843
        %v2872 = vpack.c.bf16 %v2850, %v2848
        %v2873 = vpack.c.bf16 %v2855, %v2853
        %v2874 = vpack.c.bf16 %v2860, %v2858
        %v2883 = vunpack.c.l.b16 %v2863
        %v2884 = vunpack.c.l.b16 %v2864
        %v2885 = vunpack.c.l.b16 %v2865
        %v2886 = vunpack.c.l.b16 %v2866
        %v2887 = vunpack.c.l.b16 %v2867
        %v2888 = vunpack.c.l.b16 %v2868
        %v2889 = vunpack.c.l.b16 %v2869
        %v2890 = vunpack.c.l.b16 %v2870
        %v2891 = vpack.c.b16 %v2884, %v2883
        %v2892 = vpack.c.b16 %v2886, %v2885
        %v2893 = vpack.c.b16 %v2888, %v2887
        %v2894 = vpack.c.b16 %v2890, %v2889
        %v2896 = vsel %vm990, %v2891, 0
        %v2899 = vsel %vm990, %v2892, 0
        %v2902 = vsel %vm990, %v2893, 0
        %v2905 = vsel %vm990, %v2894, 0
        %2907 = vmatpush.bf16.msra.mxu0 0
        %2908 = vmatpush.bf16.msra.mxu0 0
        %2909 = vmatpush.bf16.msra.mxu0 0
        %2910 = vmatpush.bf16.msra.mxu0 0
        %2911 = vmatpush.bf16.msra.mxu0 %v2874
        %2912 = vmatpush.bf16.msra.mxu0 %v2873
        %2913 = vmatpush.bf16.msra.mxu0 %v2872
        %2914 = vmatpush.bf16.msra.mxu0 %v2871
        %2915 = vmatmul.bf16.gmra.mxu0 %v2896
        %v2916 = vpop.f32.mrf.mxu0
        %v2917 = vadd.f32 0.0, %v2916
        %v2918 = vpop.f32.mrf.mxu0
        %v2919 = vadd.f32 0.0, %v2918
        %2920 = vmatmul.bf16.gmra.mxu0 %v2899
        %v2921 = vpop.f32.mrf.mxu0
        %v2922 = vadd.f32 0.0, %v2921
        %v2923 = vpop.f32.mrf.mxu0
        %v2924 = vadd.f32 0.0, %v2923
        %2925 = vmatmul.bf16.gmra.mxu0 %v2902
        %v2926 = vpop.f32.mrf.mxu0
        %v2927 = vadd.f32 0.0, %v2926
        %v2928 = vpop.f32.mrf.mxu0
        %v2929 = vadd.f32 0.0, %v2928
        %2930 = vmatmul.bf16.gmra.mxu0 %v2905
        %v2931 = vpop.f32.mrf.mxu0
        %v2932 = vadd.f32 0.0, %v2931
        %v2933 = vpop.f32.mrf.mxu0
        %v2934 = vadd.f32 0.0, %v2933
        %2935 = vdwg.mxu0
        %2936 = vadd.xlane.f32.xlu0 %v2843
        %v2937 = vpop.xlane.xlu0 %2936
        %2938 = vadd.xlane.f32.xlu0 %v2845
        %v2939 = vpop.xlane.xlu0 %2938
        %2940 = vadd.xlane.f32.xlu0 %v2848
        %v2941 = vpop.xlane.xlu0 %2940
        %2942 = vadd.xlane.f32.xlu0 %v2850
        %v2943 = vpop.xlane.xlu0 %2942
        %2944 = vadd.xlane.f32.xlu0 %v2853
        %v2945 = vpop.xlane.xlu0 %2944
        %2946 = vadd.xlane.f32.xlu0 %v2855
        %v2947 = vpop.xlane.xlu0 %2946
        %2948 = vadd.xlane.f32.xlu0 %v2858
        %v2949 = vpop.xlane.xlu0 %2948
        %2950 = vadd.xlane.f32.xlu0 %v2860
        %v2951 = vpop.xlane.xlu0 %2950
        %v2952 = vmul.f32 %v2937, 0.0078125
        %v2953 = vmul.f32 %v2939, 0.0078125
        %v2954 = vmul.f32 %v2941, 0.0078125
        %v2955 = vmul.f32 %v2943, 0.0078125
        %v2956 = vmul.f32 %v2945, 0.0078125
        %v2957 = vmul.f32 %v2947, 0.0078125
        %v2958 = vmul.f32 %v2949, 0.0078125
        %v2959 = vmul.f32 %v2951, 0.0078125
        %2960 = vadd.xlane.f32.xlu0 %v2917
        %v2961 = vpop.xlane.xlu0 %2960
        %2962 = vadd.xlane.f32.xlu0 %v2919
        %v2963 = vpop.xlane.xlu0 %2962
        %2964 = vadd.xlane.f32.xlu0 %v2922
        %v2965 = vpop.xlane.xlu0 %2964
        %2966 = vadd.xlane.f32.xlu0 %v2924
        %v2967 = vpop.xlane.xlu0 %2966
        %2968 = vadd.xlane.f32.xlu0 %v2927
        %v2969 = vpop.xlane.xlu0 %2968
        %2970 = vadd.xlane.f32.xlu0 %v2929
        %v2971 = vpop.xlane.xlu0 %2970
        %2972 = vadd.xlane.f32.xlu0 %v2932
        %v2973 = vpop.xlane.xlu0 %2972
        %2974 = vadd.xlane.f32.xlu0 %v2934
        %v2975 = vpop.xlane.xlu0 %2974
        %v2976 = vmul.f32 %v2961, 0.0078125
        %v2977 = vmul.f32 %v2963, 0.0078125
        %v2978 = vmul.f32 %v2965, 0.0078125
        %v2979 = vmul.f32 %v2967, 0.0078125
        %v2980 = vmul.f32 %v2969, 0.0078125
        %v2981 = vmul.f32 %v2971, 0.0078125
        %v2982 = vmul.f32 %v2973, 0.0078125
        %v2983 = vmul.f32 %v2975, 0.0078125
        %s2984 = scalar_lea.vmem %s11, 128
        %v2985 = vld [vmem:[%s2984] sm:$0xff]
        %v2986 = vld [vmem:[%s2984 + $0x8] sm:$0xff]
        %v2987 = vld [vmem:[%s2984 + $0x10] sm:$0xff]
        %v2988 = vld [vmem:[%s2984 + $0x18] sm:$0xff]
        %v2989 = vld [vmem:[%s2984 + $0x20] sm:$0xff]
        %v2990 = vld [vmem:[%s2984 + $0x28] sm:$0xff]
        %v2991 = vld [vmem:[%s2984 + $0x30] sm:$0xff]
        %v2992 = vld [vmem:[%s2984 + $0x38] sm:$0xff]
        %s2993 = scalar_lea.vmem %s12, 128
        %v2994 = vld [vmem:[%s2993] sm:$0xff]
        %v2995 = vld [vmem:[%s2993 + $0x8] sm:$0xff]
        %v2996 = vld [vmem:[%s2993 + $0x10] sm:$0xff]
        %v2997 = vld [vmem:[%s2993 + $0x18] sm:$0xff]
        %v2998 = vld [vmem:[%s2993 + $0x20] sm:$0xff]
        %v2999 = vld [vmem:[%s2993 + $0x28] sm:$0xff]
        %v3000 = vld [vmem:[%s2993 + $0x30] sm:$0xff]
        %v3001 = vld [vmem:[%s2993 + $0x38] sm:$0xff]
        %v3003 = vsel %vm990, %v2985, 0
        %v3006 = vsel %vm990, %v2986, 0
        %v3009 = vsel %vm990, %v2987, 0
        %v3012 = vsel %vm990, %v2988, 0
        %v3015 = vsel %vm990, %v2989, 0
        %v3018 = vsel %vm990, %v2990, 0
        %v3021 = vsel %vm990, %v2991, 0
        %v3024 = vsel %vm990, %v2992, 0
        %3026 = vmatpush.msra.mxu0 0.0
        %3027 = vmatpush.msra.mxu0 0.0
        %3028 = vmatpush.msra.mxu0 0.0
        %3029 = vmatpush.msra.mxu0 0.0
        %3030 = vmatpush.msra.mxu0 0.0
        %3031 = vmatpush.msra.mxu0 0.0
        %3032 = vmatpush.msra.mxu0 0.0
        %3033 = vmatpush.msra.mxu0 0.0
        %3034 = vmatpush.msra.mxu0 %v2959
        %3035 = vmatpush.msra.mxu0 %v2958
        %3036 = vmatpush.msra.mxu0 %v2957
        %3037 = vmatpush.msra.mxu0 %v2956
        %3038 = vmatpush.msra.mxu0 %v2955
        %3039 = vmatpush.msra.mxu0 %v2954
        %3040 = vmatpush.msra.mxu0 %v2953
        %3041 = vmatpush.msra.mxu0 %v2952
        %3042 = vmatmul.f32.gmra.mxu0 %v3003
        %v3043 = vpop.f32.mrf.mxu0
        %v3044 = vadd.f32 %v2994, %v3043
        %3045 = vmatmul.f32.gmra.mxu0 %v3006
        %v3046 = vpop.f32.mrf.mxu0
        %v3047 = vadd.f32 %v2995, %v3046
        %3048 = vmatmul.f32.gmra.mxu0 %v3009
        %v3049 = vpop.f32.mrf.mxu0
        %v3050 = vadd.f32 %v2996, %v3049
        %3051 = vmatmul.f32.gmra.mxu0 %v3012
        %v3052 = vpop.f32.mrf.mxu0
        %v3053 = vadd.f32 %v2997, %v3052
        %3054 = vmatmul.f32.gmra.mxu0 %v3015
        %v3055 = vpop.f32.mrf.mxu0
        %v3056 = vadd.f32 %v2998, %v3055
        %3057 = vmatmul.f32.gmra.mxu0 %v3018
        %v3058 = vpop.f32.mrf.mxu0
        %v3059 = vadd.f32 %v2999, %v3058
        %3060 = vmatmul.f32.gmra.mxu0 %v3021
        %v3061 = vpop.f32.mrf.mxu0
        %v3062 = vadd.f32 %v3000, %v3061
        %3063 = vmatmul.f32.gmra.mxu0 %v3024
        %v3064 = vpop.f32.mrf.mxu0
        %v3065 = vadd.f32 %v3001, %v3064
        %3066 = vdwg.mxu0
        %v3067 = vmax.f32 %v3044, 0.0
        %v3068 = vmax.f32 %v3047, 0.0
        %v3069 = vmax.f32 %v3050, 0.0
        %v3070 = vmax.f32 %v3053, 0.0
        %v3071 = vmax.f32 %v3056, 0.0
        %v3072 = vmax.f32 %v3059, 0.0
        %v3073 = vmax.f32 %v3062, 0.0
        %v3074 = vmax.f32 %v3065, 0.0
        %s3075 = scalar_lea.vmem %s13, 128
        %v3076 = vld [vmem:[%s3075] sm:$0xff]
        %v3077 = vld [vmem:[%s3075 + $0x8] sm:$0xff]
        %v3078 = vld [vmem:[%s3075 + $0x10] sm:$0xff]
        %v3079 = vld [vmem:[%s3075 + $0x18] sm:$0xff]
        %v3080 = vld [vmem:[%s3075 + $0x20] sm:$0xff]
        %v3081 = vld [vmem:[%s3075 + $0x28] sm:$0xff]
        %v3082 = vld [vmem:[%s3075 + $0x30] sm:$0xff]
        %v3083 = vld [vmem:[%s3075 + $0x38] sm:$0xff]
        %s3084 = scalar_lea.vmem %s14, 128
        %v3085 = vld [vmem:[%s3084] sm:$0xff]
        %v3086 = vld [vmem:[%s3084 + $0x8] sm:$0xff]
        %v3087 = vld [vmem:[%s3084 + $0x10] sm:$0xff]
        %v3088 = vld [vmem:[%s3084 + $0x18] sm:$0xff]
        %v3089 = vld [vmem:[%s3084 + $0x20] sm:$0xff]
        %v3090 = vld [vmem:[%s3084 + $0x28] sm:$0xff]
        %v3091 = vld [vmem:[%s3084 + $0x30] sm:$0xff]
        %v3092 = vld [vmem:[%s3084 + $0x38] sm:$0xff]
        %v3094 = vsel %vm990, %v3076, 0
        %v3097 = vsel %vm990, %v3077, 0
        %v3100 = vsel %vm990, %v3078, 0
        %v3103 = vsel %vm990, %v3079, 0
        %v3106 = vsel %vm990, %v3080, 0
        %v3109 = vsel %vm990, %v3081, 0
        %v3112 = vsel %vm990, %v3082, 0
        %v3115 = vsel %vm990, %v3083, 0
        %3117 = vmatpush.msra.mxu0 0.0
        %3118 = vmatpush.msra.mxu0 0.0
        %3119 = vmatpush.msra.mxu0 0.0
        %3120 = vmatpush.msra.mxu0 0.0
        %3121 = vmatpush.msra.mxu0 0.0
        %3122 = vmatpush.msra.mxu0 0.0
        %3123 = vmatpush.msra.mxu0 0.0
        %3124 = vmatpush.msra.mxu0 0.0
        %3125 = vmatpush.msra.mxu0 %v3074
        %3126 = vmatpush.msra.mxu0 %v3073
        %3127 = vmatpush.msra.mxu0 %v3072
        %3128 = vmatpush.msra.mxu0 %v3071
        %3129 = vmatpush.msra.mxu0 %v3070
        %3130 = vmatpush.msra.mxu0 %v3069
        %3131 = vmatpush.msra.mxu0 %v3068
        %3132 = vmatpush.msra.mxu0 %v3067
        %3133 = vmatmul.f32.gmra.mxu0 %v3094
        %v3134 = vpop.f32.mrf.mxu0
        %v3135 = vadd.f32 %v3085, %v3134
        %3136 = vmatmul.f32.gmra.mxu0 %v3097
        %v3137 = vpop.f32.mrf.mxu0
        %v3138 = vadd.f32 %v3086, %v3137
        %3139 = vmatmul.f32.gmra.mxu0 %v3100
        %v3140 = vpop.f32.mrf.mxu0
        %v3141 = vadd.f32 %v3087, %v3140
        %3142 = vmatmul.f32.gmra.mxu0 %v3103
        %v3143 = vpop.f32.mrf.mxu0
        %v3144 = vadd.f32 %v3088, %v3143
        %3145 = vmatmul.f32.gmra.mxu0 %v3106
        %v3146 = vpop.f32.mrf.mxu0
        %v3147 = vadd.f32 %v3089, %v3146
        %3148 = vmatmul.f32.gmra.mxu0 %v3109
        %v3149 = vpop.f32.mrf.mxu0
        %v3150 = vadd.f32 %v3090, %v3149
        %3151 = vmatmul.f32.gmra.mxu0 %v3112
        %v3152 = vpop.f32.mrf.mxu0
        %v3153 = vadd.f32 %v3091, %v3152
        %3154 = vmatmul.f32.gmra.mxu0 %v3115
        %v3155 = vpop.f32.mrf.mxu0
        %v3156 = vadd.f32 %v3092, %v3155
        %3157 = vdwg.mxu0
        %v3158 = vadd.f32 %v2538, %v2917
        %v3159 = vadd.f32 %v2539, %v2919
        %v3160 = vadd.f32 %v2540, %v2922
        %v3161 = vadd.f32 %v2541, %v2924
        %v3162 = vadd.f32 %v2542, %v2927
        %v3163 = vadd.f32 %v2543, %v2929
        %v3164 = vadd.f32 %v2544, %v2932
        %v3165 = vadd.f32 %v2545, %v2934
        %s3166 = scalar_lea.vmem %s16, 128
        %v3167 = vld [vmem:[%s3166] sm:$0xff]
        %v3168 = vld [vmem:[%s3166 + $0x8] sm:$0xff]
        %v3169 = vld [vmem:[%s3166 + $0x10] sm:$0xff]
        %v3170 = vld [vmem:[%s3166 + $0x18] sm:$0xff]
        %v3171 = vld [vmem:[%s3166 + $0x20] sm:$0xff]
        %v3172 = vld [vmem:[%s3166 + $0x28] sm:$0xff]
        %v3173 = vld [vmem:[%s3166 + $0x30] sm:$0xff]
        %v3174 = vld [vmem:[%s3166 + $0x38] sm:$0xff]
        %s3175 = scalar_lea.vmem %s17, 128
        %v3176 = vld [vmem:[%s3175] sm:$0xff]
        %v3177 = vld [vmem:[%s3175 + $0x8] sm:$0xff]
        %v3178 = vld [vmem:[%s3175 + $0x10] sm:$0xff]
        %v3179 = vld [vmem:[%s3175 + $0x18] sm:$0xff]
        %v3180 = vld [vmem:[%s3175 + $0x20] sm:$0xff]
        %v3181 = vld [vmem:[%s3175 + $0x28] sm:$0xff]
        %v3182 = vld [vmem:[%s3175 + $0x30] sm:$0xff]
        %v3183 = vld [vmem:[%s3175 + $0x38] sm:$0xff]
        %v3185 = vsel %vm990, %v3167, 0
        %v3188 = vsel %vm990, %v3168, 0
        %v3191 = vsel %vm990, %v3169, 0
        %v3194 = vsel %vm990, %v3170, 0
        %v3197 = vsel %vm990, %v3171, 0
        %v3200 = vsel %vm990, %v3172, 0
        %v3203 = vsel %vm990, %v3173, 0
        %v3206 = vsel %vm990, %v3174, 0
        %3208 = vmatpush.msra.mxu0 0.0
        %3209 = vmatpush.msra.mxu0 0.0
        %3210 = vmatpush.msra.mxu0 0.0
        %3211 = vmatpush.msra.mxu0 0.0
        %3212 = vmatpush.msra.mxu0 0.0
        %3213 = vmatpush.msra.mxu0 0.0
        %3214 = vmatpush.msra.mxu0 0.0
        %3215 = vmatpush.msra.mxu0 0.0
        %3216 = vmatpush.msra.mxu0 %v3156
        %3217 = vmatpush.msra.mxu0 %v3153
        %3218 = vmatpush.msra.mxu0 %v3150
        %3219 = vmatpush.msra.mxu0 %v3147
        %3220 = vmatpush.msra.mxu0 %v3144
        %3221 = vmatpush.msra.mxu0 %v3141
        %3222 = vmatpush.msra.mxu0 %v3138
        %3223 = vmatpush.msra.mxu0 %v3135
        %3224 = vmatmul.f32.gmra.mxu0 %v3185
        %v3225 = vpop.f32.mrf.mxu0
        %v3226 = vadd.f32 %v3176, %v3225
        %3227 = vmatmul.f32.gmra.mxu0 %v3188
        %v3228 = vpop.f32.mrf.mxu0
        %v3229 = vadd.f32 %v3177, %v3228
        %3230 = vmatmul.f32.gmra.mxu0 %v3191
        %v3231 = vpop.f32.mrf.mxu0
        %v3232 = vadd.f32 %v3178, %v3231
        %3233 = vmatmul.f32.gmra.mxu0 %v3194
        %v3234 = vpop.f32.mrf.mxu0
        %v3235 = vadd.f32 %v3179, %v3234
        %3236 = vmatmul.f32.gmra.mxu0 %v3197
        %v3237 = vpop.f32.mrf.mxu0
        %v3238 = vadd.f32 %v3180, %v3237
        %3239 = vmatmul.f32.gmra.mxu0 %v3200
        %v3240 = vpop.f32.mrf.mxu0
        %v3241 = vadd.f32 %v3181, %v3240
        %3242 = vmatmul.f32.gmra.mxu0 %v3203
        %v3243 = vpop.f32.mrf.mxu0
        %v3244 = vadd.f32 %v3182, %v3243
        %3245 = vmatmul.f32.gmra.mxu0 %v3206
        %v3246 = vpop.f32.mrf.mxu0
        %v3247 = vadd.f32 %v3183, %v3246
        %3248 = vdwg.mxu0
        %v3249 = vsub.f32 %v3226, %v2976
        %v3250 = vsub.f32 %v3229, %v2977
        %v3251 = vsub.f32 %v3232, %v2978
        %v3252 = vsub.f32 %v3235, %v2979
        %v3253 = vsub.f32 %v3238, %v2980
        %v3254 = vsub.f32 %v3241, %v2981
        %v3255 = vsub.f32 %v3244, %v2982
        %v3256 = vsub.f32 %v3247, %v2983
        %3258 = vset.pattern.permute.xlu0 0
        %3259 = vperm.xlu0 %3258, %v3249
        %v3260 = vpop.permute.xlu0 %3259
        %3263 = vset.pattern.permute.xlu0 0
        %3264 = vperm.xlu0 %3263, %v3250
        %v3265 = vpop.permute.xlu0 %3264
        %3268 = vset.pattern.permute.xlu0 0
        %3269 = vperm.xlu0 %3268, %v3251
        %v3270 = vpop.permute.xlu0 %3269
        %3273 = vset.pattern.permute.xlu0 0
        %3274 = vperm.xlu0 %3273, %v3252
        %v3275 = vpop.permute.xlu0 %3274
        %3278 = vset.pattern.permute.xlu0 0
        %3279 = vperm.xlu0 %3278, %v3253
        %v3280 = vpop.permute.xlu0 %3279
        %3283 = vset.pattern.permute.xlu0 0
        %3284 = vperm.xlu0 %3283, %v3254
        %v3285 = vpop.permute.xlu0 %3284
        %3288 = vset.pattern.permute.xlu0 0
        %3289 = vperm.xlu0 %3288, %v3255
        %v3290 = vpop.permute.xlu0 %3289
        %3293 = vset.pattern.permute.xlu0 0
        %3294 = vperm.xlu0 %3293, %v3256
        %v3295 = vpop.permute.xlu0 %3294
        %v3297 = vadd.f32 %v3158, %v3260
        %v3298 = vadd.f32 %v3159, %v3265
        %v3299 = vadd.f32 %v3160, %v3270
        %v3300 = vadd.f32 %v3161, %v3275
        %v3301 = vadd.f32 %v3162, %v3280
        %v3302 = vadd.f32 %v3163, %v3285
        %v3303 = vadd.f32 %v3164, %v3290
        %v3304 = vadd.f32 %v3165, %v3295
        %v3305 = vld [vmem:[%s18] sm:$0xff]
        %v3306 = vld [vmem:[%s18 + $0x8] sm:$0xff]
        %v3307 = vld [vmem:[%s18 + $0x10] sm:$0xff]
        %v3308 = vld [vmem:[%s18 + $0x18] sm:$0xff]
        %v3309 = vld [vmem:[%s18 + $0x20] sm:$0xff]
        %v3310 = vld [vmem:[%s18 + $0x28] sm:$0xff]
        %v3311 = vld [vmem:[%s18 + $0x30] sm:$0xff]
        %v3312 = vld [vmem:[%s18 + $0x38] sm:$0xff]
        %3314 = vset.pattern.permute.xlu0 0
        %3315 = vperm.xlu0 %3314, %v3305
        %v3316 = vpop.permute.xlu0 %3315
        %3319 = vset.pattern.permute.xlu0 0
        %3320 = vperm.xlu0 %3319, %v3306
        %v3321 = vpop.permute.xlu0 %3320
        %3324 = vset.pattern.permute.xlu0 0
        %3325 = vperm.xlu0 %3324, %v3307
        %v3326 = vpop.permute.xlu0 %3325
        %3329 = vset.pattern.permute.xlu0 0
        %3330 = vperm.xlu0 %3329, %v3308
        %v3331 = vpop.permute.xlu0 %3330
        %3334 = vset.pattern.permute.xlu0 0
        %3335 = vperm.xlu0 %3334, %v3309
        %v3336 = vpop.permute.xlu0 %3335
        %3339 = vset.pattern.permute.xlu0 0
        %3340 = vperm.xlu0 %3339, %v3310
        %v3341 = vpop.permute.xlu0 %3340
        %3344 = vset.pattern.permute.xlu0 0
        %3345 = vperm.xlu0 %3344, %v3311
        %v3346 = vpop.permute.xlu0 %3345
        %3349 = vset.pattern.permute.xlu0 0
        %3350 = vperm.xlu0 %3349, %v3312
        %v3351 = vpop.permute.xlu0 %3350
        %v3353 = vmul.f32 %v3297, %v3316
        %v3354 = vmul.f32 %v3298, %v3321
        %v3355 = vmul.f32 %v3299, %v3326
        %v3356 = vmul.f32 %v3300, %v3331
        %v3357 = vmul.f32 %v3301, %v3336
        %v3358 = vmul.f32 %v3302, %v3341
        %v3359 = vmul.f32 %v3303, %v3346
        %v3360 = vmul.f32 %v3304, %v3351
        %v3361 = vld [vmem:[%s19] sm:$0xff]
        %v3362 = vld [vmem:[%s19 + $0x8] sm:$0xff]
        %v3363 = vld [vmem:[%s19 + $0x10] sm:$0xff]
        %v3364 = vld [vmem:[%s19 + $0x18] sm:$0xff]
        %v3365 = vld [vmem:[%s19 + $0x20] sm:$0xff]
        %v3366 = vld [vmem:[%s19 + $0x28] sm:$0xff]
        %v3367 = vld [vmem:[%s19 + $0x30] sm:$0xff]
        %v3368 = vld [vmem:[%s19 + $0x38] sm:$0xff]
        %3370 = vset.pattern.permute.xlu0 0
        %3371 = vperm.xlu0 %3370, %v3361
        %v3372 = vpop.permute.xlu0 %3371
        %3375 = vset.pattern.permute.xlu0 0
        %3376 = vperm.xlu0 %3375, %v3362
        %v3377 = vpop.permute.xlu0 %3376
        %3380 = vset.pattern.permute.xlu0 0
        %3381 = vperm.xlu0 %3380, %v3363
        %v3382 = vpop.permute.xlu0 %3381
        %3385 = vset.pattern.permute.xlu0 0
        %3386 = vperm.xlu0 %3385, %v3364
        %v3387 = vpop.permute.xlu0 %3386
        %3390 = vset.pattern.permute.xlu0 0
        %3391 = vperm.xlu0 %3390, %v3365
        %v3392 = vpop.permute.xlu0 %3391
        %3395 = vset.pattern.permute.xlu0 0
        %3396 = vperm.xlu0 %3395, %v3366
        %v3397 = vpop.permute.xlu0 %3396
        %3400 = vset.pattern.permute.xlu0 0
        %3401 = vperm.xlu0 %3400, %v3367
        %v3402 = vpop.permute.xlu0 %3401
        %3405 = vset.pattern.permute.xlu0 0
        %3406 = vperm.xlu0 %3405, %v3368
        %v3407 = vpop.permute.xlu0 %3406
        %v3409 = vadd.f32 %v3353, %v3372
        %v3410 = vadd.f32 %v3354, %v3377
        %v3411 = vadd.f32 %v3355, %v3382
        %v3412 = vadd.f32 %v3356, %v3387
        %v3413 = vadd.f32 %v3357, %v3392
        %v3414 = vadd.f32 %v3358, %v3397
        %v3415 = vadd.f32 %v3359, %v3402
        %v3416 = vadd.f32 %v3360, %v3407
        %v3417 = vmax.f32 %v3409, 0.0
        %v3418 = vmax.f32 %v3410, 0.0
        %v3419 = vmax.f32 %v3411, 0.0
        %v3420 = vmax.f32 %v3412, 0.0
        %v3421 = vmax.f32 %v3413, 0.0
        %v3422 = vmax.f32 %v3414, 0.0
        %v3423 = vmax.f32 %v3415, 0.0
        %v3424 = vmax.f32 %v3416, 0.0
        %v3425 = vld [vmem:[%s20] sm:$0xf]
        %v3426 = vld [vmem:[%s20 + $0x4] sm:$0xf]
        %v3427 = vld [vmem:[%s20 + $0x8] sm:$0xf]
        %v3428 = vld [vmem:[%s20 + $0xc] sm:$0xf]
        %v3429 = vld [vmem:[%s20 + $0x10] sm:$0xf]
        %v3430 = vld [vmem:[%s20 + $0x14] sm:$0xf]
        %v3431 = vld [vmem:[%s20 + $0x18] sm:$0xf]
        %v3432 = vld [vmem:[%s20 + $0x1c] sm:$0xf]
        %v3433 = vpack.c.bf16 %v3418, %v3417
        %v3434 = vpack.c.bf16 %v3420, %v3419
        %v3435 = vpack.c.bf16 %v3422, %v3421
        %v3436 = vpack.c.bf16 %v3424, %v3423
        %v3437 = vld [vmem:[%s21] sm:$0xff]
        %v3438 = vld [vmem:[%s21 + $0x8] sm:$0xff]
        %v3439 = vld [vmem:[%s21 + $0x10] sm:$0xff]
        %v3440 = vld [vmem:[%s21 + $0x18] sm:$0xff]
        %v3441 = vld [vmem:[%s21 + $0x20] sm:$0xff]
        %v3442 = vld [vmem:[%s21 + $0x28] sm:$0xff]
        %v3443 = vld [vmem:[%s21 + $0x30] sm:$0xff]
        %v3444 = vld [vmem:[%s21 + $0x38] sm:$0xff]
        %3446 = vset.pattern.permute.xlu0 0
        %3447 = vperm.xlu0 %3446, %v3437
        %v3448 = vpop.permute.xlu0 %3447
        %3451 = vset.pattern.permute.xlu0 0
        %3452 = vperm.xlu0 %3451, %v3438
        %v3453 = vpop.permute.xlu0 %3452
        %3456 = vset.pattern.permute.xlu0 0
        %3457 = vperm.xlu0 %3456, %v3439
        %v3458 = vpop.permute.xlu0 %3457
        %3461 = vset.pattern.permute.xlu0 0
        %3462 = vperm.xlu0 %3461, %v3440
        %v3463 = vpop.permute.xlu0 %3462
        %3466 = vset.pattern.permute.xlu0 0
        %3467 = vperm.xlu0 %3466, %v3441
        %v3468 = vpop.permute.xlu0 %3467
        %3471 = vset.pattern.permute.xlu0 0
        %3472 = vperm.xlu0 %3471, %v3442
        %v3473 = vpop.permute.xlu0 %3472
        %3476 = vset.pattern.permute.xlu0 0
        %3477 = vperm.xlu0 %3476, %v3443
        %v3478 = vpop.permute.xlu0 %3477
        %3481 = vset.pattern.permute.xlu0 0
        %3482 = vperm.xlu0 %3481, %v3444
        %v3483 = vpop.permute.xlu0 %3482
        %v3493 = vunpack.c.l.b16 %v3425
        %v3494 = vunpack.c.l.b16 %v3426
        %v3495 = vunpack.c.l.b16 %v3427
        %v3496 = vunpack.c.l.b16 %v3428
        %v3497 = vunpack.c.l.b16 %v3429
        %v3498 = vunpack.c.l.b16 %v3430
        %v3499 = vunpack.c.l.b16 %v3431
        %v3500 = vunpack.c.l.b16 %v3432
        %v3501 = vpack.c.b16 %v3494, %v3493
        %v3502 = vpack.c.b16 %v3496, %v3495
        %v3503 = vpack.c.b16 %v3498, %v3497
        %v3504 = vpack.c.b16 %v3500, %v3499
        %v3506 = vsel %vm990, %v3501, 0
        %v3509 = vsel %vm990, %v3502, 0
        %v3512 = vsel %vm990, %v3503, 0
        %v3515 = vsel %vm990, %v3504, 0
        %3517 = vmatpush.bf16.msra.mxu0 0
        %3518 = vmatpush.bf16.msra.mxu0 0
        %3519 = vmatpush.bf16.msra.mxu0 0
        %3520 = vmatpush.bf16.msra.mxu0 0
        %3521 = vmatpush.bf16.msra.mxu0 %v3436
        %3522 = vmatpush.bf16.msra.mxu0 %v3435
        %3523 = vmatpush.bf16.msra.mxu0 %v3434
        %3524 = vmatpush.bf16.msra.mxu0 %v3433
        %3525 = vmatmul.bf16.gmra.mxu0 %v3506
        %v3526 = vpop.f32.mrf.mxu0
        %v3527 = vadd.f32 %v3448, %v3526
        %v3528 = vpop.f32.mrf.mxu0
        %v3529 = vadd.f32 %v3453, %v3528
        %3530 = vmatmul.bf16.gmra.mxu0 %v3509
        %v3531 = vpop.f32.mrf.mxu0
        %v3532 = vadd.f32 %v3458, %v3531
        %v3533 = vpop.f32.mrf.mxu0
        %v3534 = vadd.f32 %v3463, %v3533
        %3535 = vmatmul.bf16.gmra.mxu0 %v3512
        %v3536 = vpop.f32.mrf.mxu0
        %v3537 = vadd.f32 %v3468, %v3536
        %v3538 = vpop.f32.mrf.mxu0
        %v3539 = vadd.f32 %v3473, %v3538
        %3540 = vmatmul.bf16.gmra.mxu0 %v3515
        %v3541 = vpop.f32.mrf.mxu0
        %v3542 = vadd.f32 %v3478, %v3541
        %v3543 = vpop.f32.mrf.mxu0
        %v3544 = vadd.f32 %v3483, %v3543
        %3545 = vdwg.mxu0
        %v3546 = vmax.f32 %v3527, 0.0
        %v3547 = vmax.f32 %v3529, 0.0
        %v3548 = vmax.f32 %v3532, 0.0
        %v3549 = vmax.f32 %v3534, 0.0
        %v3550 = vmax.f32 %v3537, 0.0
        %v3551 = vmax.f32 %v3539, 0.0
        %v3552 = vmax.f32 %v3542, 0.0
        %v3553 = vmax.f32 %v3544, 0.0
        %v3554 = vld [vmem:[%s22] sm:$0xf]
        %v3555 = vld [vmem:[%s22 + $0x4] sm:$0xf]
        %v3556 = vld [vmem:[%s22 + $0x8] sm:$0xf]
        %v3557 = vld [vmem:[%s22 + $0xc] sm:$0xf]
        %v3558 = vld [vmem:[%s22 + $0x10] sm:$0xf]
        %v3559 = vld [vmem:[%s22 + $0x14] sm:$0xf]
        %v3560 = vld [vmem:[%s22 + $0x18] sm:$0xf]
        %v3561 = vld [vmem:[%s22 + $0x1c] sm:$0xf]
        %v3562 = vpack.c.bf16 %v3547, %v3546
        %v3563 = vpack.c.bf16 %v3549, %v3548
        %v3564 = vpack.c.bf16 %v3551, %v3550
        %v3565 = vpack.c.bf16 %v3553, %v3552
        %v3566 = vld [vmem:[%s23] sm:$0xff]
        %v3567 = vld [vmem:[%s23 + $0x8] sm:$0xff]
        %v3568 = vld [vmem:[%s23 + $0x10] sm:$0xff]
        %v3569 = vld [vmem:[%s23 + $0x18] sm:$0xff]
        %v3570 = vld [vmem:[%s23 + $0x20] sm:$0xff]
        %v3571 = vld [vmem:[%s23 + $0x28] sm:$0xff]
        %v3572 = vld [vmem:[%s23 + $0x30] sm:$0xff]
        %v3573 = vld [vmem:[%s23 + $0x38] sm:$0xff]
        %3575 = vset.pattern.permute.xlu0 0
        %3576 = vperm.xlu0 %3575, %v3566
        %v3577 = vpop.permute.xlu0 %3576
        %3580 = vset.pattern.permute.xlu0 0
        %3581 = vperm.xlu0 %3580, %v3567
        %v3582 = vpop.permute.xlu0 %3581
        %3585 = vset.pattern.permute.xlu0 0
        %3586 = vperm.xlu0 %3585, %v3568
        %v3587 = vpop.permute.xlu0 %3586
        %3590 = vset.pattern.permute.xlu0 0
        %3591 = vperm.xlu0 %3590, %v3569
        %v3592 = vpop.permute.xlu0 %3591
        %3595 = vset.pattern.permute.xlu0 0
        %3596 = vperm.xlu0 %3595, %v3570
        %v3597 = vpop.permute.xlu0 %3596
        %3600 = vset.pattern.permute.xlu0 0
        %3601 = vperm.xlu0 %3600, %v3571
        %v3602 = vpop.permute.xlu0 %3601
        %3605 = vset.pattern.permute.xlu0 0
        %3606 = vperm.xlu0 %3605, %v3572
        %v3607 = vpop.permute.xlu0 %3606
        %3610 = vset.pattern.permute.xlu0 0
        %3611 = vperm.xlu0 %3610, %v3573
        %v3612 = vpop.permute.xlu0 %3611
        %v3622 = vunpack.c.l.b16 %v3554
        %v3623 = vunpack.c.l.b16 %v3555
        %v3624 = vunpack.c.l.b16 %v3556
        %v3625 = vunpack.c.l.b16 %v3557
        %v3626 = vunpack.c.l.b16 %v3558
        %v3627 = vunpack.c.l.b16 %v3559
        %v3628 = vunpack.c.l.b16 %v3560
        %v3629 = vunpack.c.l.b16 %v3561
        %v3630 = vpack.c.b16 %v3623, %v3622
        %v3631 = vpack.c.b16 %v3625, %v3624
        %v3632 = vpack.c.b16 %v3627, %v3626
        %v3633 = vpack.c.b16 %v3629, %v3628
        %v3635 = vsel %vm990, %v3630, 0
        %v3638 = vsel %vm990, %v3631, 0
        %v3641 = vsel %vm990, %v3632, 0
        %v3644 = vsel %vm990, %v3633, 0
        %3646 = vmatpush.bf16.msra.mxu0 0
        %3647 = vmatpush.bf16.msra.mxu0 0
        %3648 = vmatpush.bf16.msra.mxu0 0
        %3649 = vmatpush.bf16.msra.mxu0 0
        %3650 = vmatpush.bf16.msra.mxu0 %v3565
        %3651 = vmatpush.bf16.msra.mxu0 %v3564
        %3652 = vmatpush.bf16.msra.mxu0 %v3563
        %3653 = vmatpush.bf16.msra.mxu0 %v3562
        %3654 = vmatmul.bf16.gmra.mxu0 %v3635
        %v3655 = vpop.f32.mrf.mxu0
        %v3656 = vadd.f32 %v3577, %v3655
        %v3657 = vpop.f32.mrf.mxu0
        %v3658 = vadd.f32 %v3582, %v3657
        %3659 = vmatmul.bf16.gmra.mxu0 %v3638
        %v3660 = vpop.f32.mrf.mxu0
        %v3661 = vadd.f32 %v3587, %v3660
        %v3662 = vpop.f32.mrf.mxu0
        %v3663 = vadd.f32 %v3592, %v3662
        %3664 = vmatmul.bf16.gmra.mxu0 %v3641
        %v3665 = vpop.f32.mrf.mxu0
        %v3666 = vadd.f32 %v3597, %v3665
        %v3667 = vpop.f32.mrf.mxu0
        %v3668 = vadd.f32 %v3602, %v3667
        %3669 = vmatmul.bf16.gmra.mxu0 %v3644
        %v3670 = vpop.f32.mrf.mxu0
        %v3671 = vadd.f32 %v3607, %v3670
        %v3672 = vpop.f32.mrf.mxu0
        %v3673 = vadd.f32 %v3612, %v3672
        %3674 = vdwg.mxu0
        %v3675 = vmax.f32 %v3656, 0.0
        %v3676 = vmax.f32 %v3658, 0.0
        %v3677 = vmax.f32 %v3661, 0.0
        %v3678 = vmax.f32 %v3663, 0.0
        %v3679 = vmax.f32 %v3666, 0.0
        %v3680 = vmax.f32 %v3668, 0.0
        %v3681 = vmax.f32 %v3671, 0.0
        %v3682 = vmax.f32 %v3673, 0.0
        %v3683 = vld [vmem:[%s24] sm:$0x1]
        %v3684 = vld [vmem:[#allocation2] sm:$0x1]
        %3686 = vset.pattern.permute.xlu0 0
        %3687 = vperm.xlu0 %3686, %v3684
        %v3688 = vpop.permute.xlu0 %3687
        %v3690 = vperm.slane %v3688, 0
        %v3692 = vsel %vm990, %v3683, 0
        %3694 = vmatpush.msra.mxu0 0.0
        %3695 = vmatpush.msra.mxu0 0.0
        %3696 = vmatpush.msra.mxu0 0.0
        %3697 = vmatpush.msra.mxu0 0.0
        %3698 = vmatpush.msra.mxu0 0.0
        %3699 = vmatpush.msra.mxu0 0.0
        %3700 = vmatpush.msra.mxu0 0.0
        %3701 = vmatpush.msra.mxu0 0.0
        %3702 = vmatpush.msra.mxu0 %v3682
        %3703 = vmatpush.msra.mxu0 %v3681
        %3704 = vmatpush.msra.mxu0 %v3680
        %3705 = vmatpush.msra.mxu0 %v3679
        %3706 = vmatpush.msra.mxu0 %v3678
        %3707 = vmatpush.msra.mxu0 %v3677
        %3708 = vmatpush.msra.mxu0 %v3676
        %3709 = vmatpush.msra.mxu0 %v3675
        %3710 = vmatmul.f32.gmra.mxu0 %v3692
        %v3711 = vpop.f32.mrf.mxu0
        %v3712 = vadd.f32 %v3690, %v3711
        %3713 = vdwg.mxu0
        %3714 = vst [vmem:[%s781] sm:$0x1] %v3712
        %s3715 = sand.u32 %s601, 1
        %s3716 = scalar_lea.sflag [#allocation4], %s3715
        %s3717 = sand.u32 %s601, 1
        %s3718 = scalar_lea.vmem [#allocation3], %s3717
        // Predicated region
        $region125: #{tpu_custom_call.1} parent=123 // pred_check
          %p3719 = pneg %p611
        $region126: #{tpu_custom_call.1} parent=123 // pred_check_branch
          %3721 = sbr.rel (%p3719) target = $region128
        $region127: #{tpu_custom_call.1} parent=123 // pred_region
          %3723 = vsyncadd %s3716, 0
          %s3724 = scalar_lea.hbm %s26, %s42
          %s3726 = sshll.u32 %s3718, 4
          %s3727 = int_to_ptr.vmem [resolvable:$true] %s3726
          %s3728 = sshll.u32 %s3724, 4
          %s3729 = int_to_ptr.hbm [resolvable:$true] %s3728
          %3731 = dma.vmem_to_hbm [thread:$0]  %s3727, 16, %s3729, %s3716
        $region128: #{tpu_custom_call.1} parent=123 // pred_fallthru
          _
      $region124: #{tpu_custom_call.1} parent=5 // pred_fallthru
        _
      %p3732 = scmp.le.s32.totalorder 2, %s37
      // Predicated region
      $region129: #{tpu_custom_call.1} parent=5 // pred_check
        %p3733 = pneg %p3732
      $region130: #{tpu_custom_call.1} parent=5 // pred_check_branch
        %3735 = sbr.rel (%p3733) target = $region132
      $region131: #{tpu_custom_call.1} parent=5 // pred_region
        %s3736 = ssub.s32 %s37, 2
        // Predicated region
        $region133: #{tpu_custom_call.1} parent=131 // pred_check
          %p3737 = pneg %p617
        $region134: #{tpu_custom_call.1} parent=131 // pred_check_branch
          %3739 = sbr.rel (%p3737) target = $region136
        $region135: #{tpu_custom_call.1} parent=131 // pred_region
          %s3740 = sand.u32 %s602, 1
          %s3741 = scalar_lea.sflag [#allocation4], %s3740
          %s3742 = sand.u32 %s602, 1
          %s3743 = scalar_lea.vmem [#allocation3], %s3742
          %3745 = dma.done %s3741, 16
        $region136: #{tpu_custom_call.1} parent=131 // pred_fallthru
          _
      $region132: #{tpu_custom_call.1} parent=5 // pred_fallthru
        _
    $region6: #{tpu_custom_call.1} parent=1 // loop_footer
      %s41 = sadd.s32 1, %s37
    $region7: #{tpu_custom_call.1} parent=1 // loop_footer_branch
      %36 = sbr.rel target = $region3
    $region8: #{tpu_custom_call.1} parent=1 // loop_exit
      _
    %3746 = vsyncpa [#allocation4], 1
    %s3747 = scalar_lea.sflag [#allocation4], 1
    %3748 = vsyncpa %s3747, 1

</llo_original>
